<compile_context>
chip_gen: v7x
topology: tpu7x:2x2x1
jax: 0.10.0
libtpu: 0.0.40
codegen_flags: <defaults>
</compile_context>

<pallas_src>
import functools
import math

import jax
import jax.numpy as jnp
from jax.experimental import pallas as pl
from jax.experimental.pallas import tpu as pltpu

_VMEM_LIMIT = 32 * 1024 * 1024  # safe scoped-VMEM cap on v5e/v6e/v7x


# --------------------------- fused attention block ---------------------------

def _attn_block_kernel(x_ref, wq_ref, wk_ref, wv_ref, bq_ref, bk_ref, bv_ref,
                       wo_ref, bo_ref, g_ref, b_ref, mask_ref, o_ref,
                       *, nhead, scale, eps):
    """One batch element: QKV proj -> MHA -> out proj -> residual -> LayerNorm."""
    x = x_ref[0].astype(jnp.float32)          # (S, D)
    cdt = wq_ref.dtype                        # bf16 MXU operand dtype
    x_mm = x.astype(cdt)
    mask = mask_ref[...]                      # (S, S) additive f32

    acc = jnp.zeros(x.shape, jnp.float32)     # (S, D) attention output accumulator
    for h in range(nhead):                    # unrolled at trace time
        q = jnp.dot(x_mm, wq_ref[h], preferred_element_type=jnp.float32) + bq_ref[h]
        k = jnp.dot(x_mm, wk_ref[h], preferred_element_type=jnp.float32) + bk_ref[h]
        v = jnp.dot(x_mm, wv_ref[h], preferred_element_type=jnp.float32) + bv_ref[h]
        qb, kb, vb = q.astype(cdt), k.astype(cdt), v.astype(cdt)
        # scores = q @ k^T  (contract last dims; no explicit transpose materialized)
        s = jax.lax.dot_general(qb, kb, (((1,), (1,)), ((), ())),
                                preferred_element_type=jnp.float32)
        s = s * scale + mask
        s = s - jnp.max(s, axis=-1, keepdims=True)
        p = jnp.exp(s)
        p = p * pl.reciprocal(jnp.sum(p, axis=-1, keepdims=True), approx=True)
        o = jnp.dot(p.astype(cdt), vb, preferred_element_type=jnp.float32)  # (S, dk)
        acc = acc + jnp.dot(o.astype(cdt), wo_ref[h],
                            preferred_element_type=jnp.float32)             # (S, D)

    attn = acc + bo_ref[...]
    # residual + LayerNorm (fused E[x], E[x^2]) in f32
    y = x + attn
    mu = jnp.mean(y, axis=-1, keepdims=True)
    msq = jnp.mean(y * y, axis=-1, keepdims=True)
    var = jnp.maximum(msq - mu * mu, 0.0)
    yn = (y - mu) * jax.lax.rsqrt(var + eps)
    o_ref[0] = (yn * g_ref[...] + b_ref[...]).astype(o_ref.dtype)


def attention_block(x, layer, mask, *, nhead, scale, eps=1e-5):
    """x: (B, S, D) f32, mask: (S, S) additive f32 -> (B, S, D)."""
    B, S, D = x.shape
    dk = D // nhead
    xspec = pl.BlockSpec((1, S, D), lambda b: (b, 0, 0))
    full3 = lambda shp: pl.BlockSpec(shp, lambda b: (0, 0, 0))
    full2 = lambda shp: pl.BlockSpec(shp, lambda b: (0, 0))
    return pl.pallas_call(
        functools.partial(_attn_block_kernel, nhead=nhead, scale=scale, eps=eps),
        out_shape=jax.ShapeDtypeStruct((B, S, D), x.dtype),
        grid=(B,),
        in_specs=[
            xspec,
            full3((nhead, D, dk)), full3((nhead, D, dk)), full3((nhead, D, dk)),
            full3((nhead, 1, dk)), full3((nhead, 1, dk)), full3((nhead, 1, dk)),
            full3((nhead, dk, D)),
            full2((1, D)),                 # b_out
            full2((1, D)), full2((1, D)),  # ln1 gamma / beta
            full2((S, S)),                 # mask
        ],
        out_specs=xspec,
        compiler_params=pltpu.CompilerParams(
            dimension_semantics=("parallel",),
            vmem_limit_bytes=_VMEM_LIMIT),
    )(x, layer["wq"], layer["wk"], layer["wv"],
      layer["bq"], layer["bk"], layer["bv"],
      layer["wo"], layer["bo"], layer["ln1_g"], layer["ln1_b"], mask)


# ------------------------------ fused FFN block -------------------------------

def _ffn_block_kernel(x_ref, w1_ref, b1_ref, w2_ref, b2_ref, g_ref, b_ref, o_ref,
                      *, eps):
    x = x_ref[...].astype(jnp.float32)                       # (tm, D)
    h = jnp.dot(x.astype(w1_ref.dtype), w1_ref[...],
                preferred_element_type=jnp.float32) + b1_ref[...]
    h = jnp.maximum(h, 0.0)
    ff = jnp.dot(h.astype(w2_ref.dtype), w2_ref[...],
                 preferred_element_type=jnp.float32) + b2_ref[...]
    y = x + ff
    mu = jnp.mean(y, axis=-1, keepdims=True)
    msq = jnp.mean(y * y, axis=-1, keepdims=True)
    var = jnp.maximum(msq - mu * mu, 0.0)
    yn = (y - mu) * jax.lax.rsqrt(var + eps)
    o_ref[...] = (yn * g_ref[...] + b_ref[...]).astype(o_ref.dtype)


def ffn_block(x2d, layer, *, block_rows, eps=1e-5):
    """x2d: (T, D) token rows -> (T, D)."""
    T, D = x2d.shape
    Dh = layer["w_ff1"].shape[1]
    tm = block_rows
    return pl.pallas_call(
        functools.partial(_ffn_block_kernel, eps=eps),
        out_shape=jax.ShapeDtypeStruct((T, D), x2d.dtype),
        grid=(T // tm,),
        in_specs=[
            pl.BlockSpec((tm, D), lambda i: (i, 0)),
            pl.BlockSpec((D, Dh), lambda i: (0, 0)),
            pl.BlockSpec((1, Dh), lambda i: (0, 0)),
            pl.BlockSpec((Dh, D), lambda i: (0, 0)),
            pl.BlockSpec((1, D), lambda i: (0, 0)),
            pl.BlockSpec((1, D), lambda i: (0, 0)),
            pl.BlockSpec((1, D), lambda i: (0, 0)),
        ],
        out_specs=pl.BlockSpec((tm, D), lambda i: (i, 0)),
        compiler_params=pltpu.CompilerParams(
            dimension_semantics=("parallel",),
            vmem_limit_bytes=_VMEM_LIMIT),
    )(x2d, layer["w_ff1"], layer["b_ff1"], layer["w_ff2"], layer["b_ff2"],
      layer["ln2_g"], layer["ln2_b"])


# ------------------------------ tiled decoder ---------------------------------

def _decoder_kernel(x_ref, w_ref, b_ref, o_ref):
    y = jnp.dot(x_ref[...].astype(w_ref.dtype), w_ref[...],
                preferred_element_type=jnp.float32) + b_ref[...]
    o_ref[...] = y.astype(o_ref.dtype)


def decoder(x2d, w, b, *, tm, tn):
    """x2d: (T, D), w: (D, ntoken) bf16, b: (1, ntoken) -> (T, ntoken) f32."""
    T, D = x2d.shape
    N = w.shape[1]
    return pl.pallas_call(
        _decoder_kernel,
        out_shape=jax.ShapeDtypeStruct((T, N), jnp.float32),
        grid=(T // tm, N // tn),
        in_specs=[
            pl.BlockSpec((tm, D), lambda i, j: (i, 0)),
            pl.BlockSpec((D, tn), lambda i, j: (0, j)),
            pl.BlockSpec((1, tn), lambda i, j: (0, j)),
        ],
        out_specs=pl.BlockSpec((tm, tn), lambda i, j: (i, j)),
        compiler_params=pltpu.CompilerParams(
            dimension_semantics=("parallel", "parallel"),
            vmem_limit_bytes=_VMEM_LIMIT),
    )(x2d, w, b)


# ----------------------------- Parameter setup --------------------------------

def make_positional_encoding(max_len, d_model):
    position = jnp.arange(max_len, dtype=jnp.float32)[:, None]
    div_term = jnp.exp(jnp.arange(0, d_model, 2, dtype=jnp.float32)
                       * (-math.log(10000.0) / d_model))
    pe = jnp.zeros((max_len, 1, d_model), dtype=jnp.float32)
    pe = pe.at[:, 0, 0::2].set(jnp.sin(position * div_term))
    pe = pe.at[:, 0, 1::2].set(jnp.cos(position * div_term))
    return pe


def init_params(key, ntoken, d_model, nhead, d_hid, nlayers, max_len=64,
                mm_dtype=jnp.bfloat16):
    initrange = 0.1
    dk = d_model // nhead
    keys = jax.random.split(key, 2 + nlayers)

    def uni(k, shape, bound):
        return jax.random.uniform(k, shape, jnp.float32, -bound, bound)

    params = {
        "embedding": uni(keys[0], (ntoken, d_model), initrange),
        "pe": make_positional_encoding(max_len, d_model),
        # decoder: nn.Linear(d_model, ntoken); stored transposed as (d_model, ntoken)
        "w_dec": uni(keys[1], (ntoken, d_model), initrange).T.astype(mm_dtype),
        "b_dec": jnp.zeros((1, ntoken), jnp.float32),
        "layers": [],
    }
    for l in range(nlayers):
        lk = jax.random.split(keys[2 + l], 8)
        bd = 1.0 / math.sqrt(d_model)
        bh = 1.0 / math.sqrt(d_hid)
        w_in = uni(lk[0], (d_model, 3 * d_model), bd)     # = in_proj_weight^T
        b_in = jnp.zeros((3 * d_model,), jnp.float32)
        w_out = uni(lk[1], (d_model, d_model), bd)        # = out_proj.weight^T
        wq, wk, wv = jnp.split(w_in, 3, axis=1)
        bq, bk, bv = jnp.split(b_in, 3)
        per_head_w = lambda w: w.reshape(d_model, nhead, dk).transpose(1, 0, 2)
        per_head_b = lambda b: b.reshape(nhead, 1, dk)
        params["layers"].append({
            "wq": per_head_w(wq).astype(mm_dtype),        # (H, D, dk)
            "wk": per_head_w(wk).astype(mm_dtype),
            "wv": per_head_w(wv).astype(mm_dtype),
            "bq": per_head_b(bq), "bk": per_head_b(bk), "bv": per_head_b(bv),
            "wo": w_out.reshape(nhead, dk, d_model).astype(mm_dtype),  # (H, dk, D)
            "bo": uni(lk[2], (1, d_model), bd),
            "w_ff1": uni(lk[3], (d_model, d_hid), bd).astype(mm_dtype),
            "b_ff1": uni(lk[4], (1, d_hid), bd),
            "w_ff2": uni(lk[5], (d_hid, d_model), bh).astype(mm_dtype),
            "b_ff2": uni(lk[6], (1, d_model), bh),
            "ln1_g": jnp.ones((1, d_model), jnp.float32),
            "ln1_b": jnp.zeros((1, d_model), jnp.float32),
            "ln2_g": jnp.ones((1, d_model), jnp.float32),
            "ln2_b": jnp.zeros((1, d_model), jnp.float32),
        })
    return params


# ----------------------------- Forward pass ------------------------------------

def transformer_forward(params, src, src_mask, *, d_model, nhead, ntoken):
    """src: (seq_len, batch) int32; src_mask: (seq_len, seq_len) additive f32.
    Returns (seq_len, batch, ntoken) f32."""
    S, B = src.shape
    D = d_model
    dk = D // nhead

    # Embedding gather + sqrt(d_model) scale + positional encoding, batch-major.
    # Fused by XLA into the gather pass (dynamic gather has no blocked Pallas form here).
    emb = params["embedding"][src.T]                  # (B, S, D)
    pe = params["pe"][:S].transpose(1, 0, 2)          # (1, S, D)
    x = emb * math.sqrt(D) + pe                       # (B, S, D) f32

    T = B * S
    tm = 8 if (T % 8 == 0 and T >= 8) else T          # row tile (parallel axis)

    for layer in params["layers"]:
        x = attention_block(x, layer, src_mask, nhead=nhead, scale=1.0 / math.sqrt(dk))
        x = ffn_block(x.reshape(T, D), layer, block_rows=tm).reshape(B, S, D)

    tn = 128 if ntoken % 128 == 0 else ntoken         # decoder ntoken tile
    logits = decoder(x.reshape(T, D), params["w_dec"], params["b_dec"], tm=tm, tn=tn)
    # back to PyTorch (seq_len, batch, ntoken) layout
    return logits.reshape(B, S, ntoken).transpose(1, 0, 2)


# ----------------------------------- Main ---------------------------------------

if __name__ == "__main__":
    seq_len, batch = 8, 2
    # small but lane-dense demo shapes (d_model/d_hid/ntoken multiples of 128)
    ntoken, d_model, nhead, d_hid, nlayers = 256, 128, 2, 256, 2

    key = jax.random.PRNGKey(0)
    k_param, k_src = jax.random.split(key)
    params = init_params(k_param, ntoken, d_model, nhead, d_hid, nlayers)

    src = jax.random.randint(k_src, (seq_len, batch), 0, ntoken, dtype=jnp.int32)
    # causal additive mask (generate_square_subsequent_mask semantics)
    src_mask = jnp.where(
        jnp.arange(seq_len)[None, :] <= jnp.arange(seq_len)[:, None],
        0.0, -1e9).astype(jnp.float32)

    fwd = jax.jit(functools.partial(
        transformer_forward, d_model=d_model, nhead=nhead, ntoken=ntoken))
    out = fwd(params, src, src_mask)
    jax.block_until_ready(out)

    assert out.shape == (seq_len, batch, ntoken)
    assert bool(jnp.all(jnp.isfinite(out)))
    print("KERNEL_OK")
</pallas_src>

<mosaic_0001>
module attributes {stable_mosaic.version = 11 : i64} {
  func.func @_attn_block_kernel(%arg0: i32, %arg1: memref<1x8x128xf32, #tpu.memory_space<vmem>>, %arg2: memref<2x128x64xbf16, #tpu.memory_space<vmem>>, %arg3: memref<2x128x64xbf16, #tpu.memory_space<vmem>>, %arg4: memref<2x128x64xbf16, #tpu.memory_space<vmem>>, %arg5: memref<2x1x64xf32, #tpu.memory_space<vmem>>, %arg6: memref<2x1x64xf32, #tpu.memory_space<vmem>>, %arg7: memref<2x1x64xf32, #tpu.memory_space<vmem>>, %arg8: memref<2x64x128xbf16, #tpu.memory_space<vmem>>, %arg9: memref<1x128xf32, #tpu.memory_space<vmem>>, %arg10: memref<1x128xf32, #tpu.memory_space<vmem>>, %arg11: memref<1x128xf32, #tpu.memory_space<vmem>>, %arg12: memref<8x8xf32, #tpu.memory_space<vmem>>, %arg13: memref<1x8x128xf32, #tpu.memory_space<vmem>>) attributes {dimension_semantics = [#tpu.dimension_semantics<parallel>], iteration_bounds = array<i64: 2>, scalar_prefetch = 0 : i64, scratch_operands = 0 : i64, tpu.core_type = #tpu.core_type<tc>, window_params = [{transform_indices = @transform_0, window_bounds = array<i64: 1, 8, 128>}, {pipeline_mode = #tpu.pipeline_mode<synchronous>, transform_indices = @transform_1, window_bounds = array<i64: 2, 128, 64>}, {pipeline_mode = #tpu.pipeline_mode<synchronous>, transform_indices = @transform_2, window_bounds = array<i64: 2, 128, 64>}, {pipeline_mode = #tpu.pipeline_mode<synchronous>, transform_indices = @transform_3, window_bounds = array<i64: 2, 128, 64>}, {pipeline_mode = #tpu.pipeline_mode<synchronous>, transform_indices = @transform_4, window_bounds = array<i64: 2, 1, 64>}, {pipeline_mode = #tpu.pipeline_mode<synchronous>, transform_indices = @transform_5, window_bounds = array<i64: 2, 1, 64>}, {pipeline_mode = #tpu.pipeline_mode<synchronous>, transform_indices = @transform_6, window_bounds = array<i64: 2, 1, 64>}, {pipeline_mode = #tpu.pipeline_mode<synchronous>, transform_indices = @transform_7, window_bounds = array<i64: 2, 64, 128>}, {pipeline_mode = #tpu.pipeline_mode<synchronous>, transform_indices = @transform_8, window_bounds = array<i64: 1, 128>}, {pipeline_mode = #tpu.pipeline_mode<synchronous>, transform_indices = @transform_9, window_bounds = array<i64: 1, 128>}, {pipeline_mode = #tpu.pipeline_mode<synchronous>, transform_indices = @transform_10, window_bounds = array<i64: 1, 128>}, {pipeline_mode = #tpu.pipeline_mode<synchronous>, transform_indices = @transform_11, window_bounds = array<i64: 8, 8>}, {transform_indices = @transform_12, window_bounds = array<i64: 1, 8, 128>}]} {
    %c0 = arith.constant 0 : index
    %c0_0 = arith.constant 0 : index
    %c0_1 = arith.constant 0 : index
    %0 = vector.load %arg1[%c0, %c0_0, %c0_1] : memref<1x8x128xf32, #tpu.memory_space<vmem>>, vector<1x8x128xf32>
    %1 = vector.shape_cast %0 : vector<1x8x128xf32> to vector<8x128xf32>
    %2 = arith.truncf %1 : vector<8x128xf32> to vector<8x128xbf16>
    %c0_2 = arith.constant 0 : index
    %c0_3 = arith.constant 0 : index
    %3 = vector.load %arg12[%c0_2, %c0_3] : memref<8x8xf32, #tpu.memory_space<vmem>>, vector<8x8xf32>
    %cst = arith.constant 0.000000e+00 : f32
    %4 = vector.broadcast %cst : f32 to vector<8x128xf32>
    %c0_4 = arith.constant 0 : index
    %c0_5 = arith.constant 0 : index
    %c0_6 = arith.constant 0 : index
    %5 = vector.load %arg2[%c0_4, %c0_5, %c0_6] : memref<2x128x64xbf16, #tpu.memory_space<vmem>>, vector<1x128x64xbf16>
    %6 = vector.shape_cast %5 : vector<1x128x64xbf16> to vector<128x64xbf16>
    %cst_7 = arith.constant dense<0.000000e+00> : vector<8x64xf32>
    %7 = tpu.matmul %2, %6, %cst_7 {dimension_numbers = #tpu.dot_dimension_numbers<[1], [0], [0], [1], [0, 0, 1, 1], [], []>} : vector<8x128xbf16>, vector<128x64xbf16>, vector<8x64xf32> -> vector<8x64xf32>
    %c0_8 = arith.constant 0 : index
    %c0_9 = arith.constant 0 : index
    %c0_10 = arith.constant 0 : index
    %8 = vector.load %arg5[%c0_8, %c0_9, %c0_10] : memref<2x1x64xf32, #tpu.memory_space<vmem>>, vector<1x1x64xf32>
    %9 = vector.shape_cast %8 : vector<1x1x64xf32> to vector<1x64xf32>
    %10 = vector.broadcast %9 : vector<1x64xf32> to vector<8x64xf32>
    %11 = arith.addf %7, %10 : vector<8x64xf32>
    %c0_11 = arith.constant 0 : index
    %c0_12 = arith.constant 0 : index
    %c0_13 = arith.constant 0 : index
    %12 = vector.load %arg3[%c0_11, %c0_12, %c0_13] : memref<2x128x64xbf16, #tpu.memory_space<vmem>>, vector<1x128x64xbf16>
    %13 = vector.shape_cast %12 : vector<1x128x64xbf16> to vector<128x64xbf16>
    %cst_14 = arith.constant dense<0.000000e+00> : vector<8x64xf32>
    %14 = tpu.matmul %2, %13, %cst_14 {dimension_numbers = #tpu.dot_dimension_numbers<[1], [0], [0], [1], [0, 0, 1, 1], [], []>} : vector<8x128xbf16>, vector<128x64xbf16>, vector<8x64xf32> -> vector<8x64xf32>
    %c0_15 = arith.constant 0 : index
    %c0_16 = arith.constant 0 : index
    %c0_17 = arith.constant 0 : index
    %15 = vector.load %arg6[%c0_15, %c0_16, %c0_17] : memref<2x1x64xf32, #tpu.memory_space<vmem>>, vector<1x1x64xf32>
    %16 = vector.shape_cast %15 : vector<1x1x64xf32> to vector<1x64xf32>
    %17 = vector.broadcast %16 : vector<1x64xf32> to vector<8x64xf32>
    %18 = arith.addf %14, %17 : vector<8x64xf32>
    %c0_18 = arith.constant 0 : index
    %c0_19 = arith.constant 0 : index
    %c0_20 = arith.constant 0 : index
    %19 = vector.load %arg4[%c0_18, %c0_19, %c0_20] : memref<2x128x64xbf16, #tpu.memory_space<vmem>>, vector<1x128x64xbf16>
    %20 = vector.shape_cast %19 : vector<1x128x64xbf16> to vector<128x64xbf16>
    %cst_21 = arith.constant dense<0.000000e+00> : vector<8x64xf32>
    %21 = tpu.matmul %2, %20, %cst_21 {dimension_numbers = #tpu.dot_dimension_numbers<[1], [0], [0], [1], [0, 0, 1, 1], [], []>} : vector<8x128xbf16>, vector<128x64xbf16>, vector<8x64xf32> -> vector<8x64xf32>
    %c0_22 = arith.constant 0 : index
    %c0_23 = arith.constant 0 : index
    %c0_24 = arith.constant 0 : index
    %22 = vector.load %arg7[%c0_22, %c0_23, %c0_24] : memref<2x1x64xf32, #tpu.memory_space<vmem>>, vector<1x1x64xf32>
    %23 = vector.shape_cast %22 : vector<1x1x64xf32> to vector<1x64xf32>
    %24 = vector.broadcast %23 : vector<1x64xf32> to vector<8x64xf32>
    %25 = arith.addf %21, %24 : vector<8x64xf32>
    %26 = arith.truncf %11 : vector<8x64xf32> to vector<8x64xbf16>
    %27 = arith.truncf %18 : vector<8x64xf32> to vector<8x64xbf16>
    %28 = arith.truncf %25 : vector<8x64xf32> to vector<8x64xbf16>
    %cst_25 = arith.constant dense<0.000000e+00> : vector<8x8xf32>
    %29 = tpu.matmul %26, %27, %cst_25 {dimension_numbers = #tpu.dot_dimension_numbers<[1], [1], [0], [0], [0, 0, 1, 0], [], []>} : vector<8x64xbf16>, vector<8x64xbf16>, vector<8x8xf32> -> vector<8x8xf32>
    %cst_26 = arith.constant 1.250000e-01 : f32
    %30 = vector.broadcast %cst_26 : f32 to vector<8x8xf32>
    %31 = arith.mulf %29, %30 : vector<8x8xf32>
    %32 = arith.addf %31, %3 : vector<8x8xf32>
    %cst_27 = arith.constant dense<0xFF800000> : vector<8xf32>
    %33 = vector.multi_reduction <maximumf>, %32, %cst_27 [1] : vector<8x8xf32> to vector<8xf32>
    %34 = vector.shape_cast %33 : vector<8xf32> to vector<8x1xf32>
    %35 = vector.broadcast %34 : vector<8x1xf32> to vector<8x8xf32>
    %36 = arith.subf %32, %35 : vector<8x8xf32>
    %37 = math.exp %36 : vector<8x8xf32>
    %cst_28 = arith.constant dense<0.000000e+00> : vector<8xf32>
    %38 = vector.multi_reduction <add>, %37, %cst_28 [1] : vector<8x8xf32> to vector<8xf32>
    %39 = vector.shape_cast %38 : vector<8xf32> to vector<8x1xf32>
    %40 = tpu.reciprocal %39 {approx = true} : vector<8x1xf32> -> vector<8x1xf32>
    %41 = vector.broadcast %40 : vector<8x1xf32> to vector<8x8xf32>
    %42 = arith.mulf %37, %41 : vector<8x8xf32>
    %43 = arith.truncf %42 : vector<8x8xf32> to vector<8x8xbf16>
    %cst_29 = arith.constant dense<0.000000e+00> : vector<8x64xf32>
    %44 = tpu.matmul %43, %28, %cst_29 {dimension_numbers = #tpu.dot_dimension_numbers<[1], [0], [0], [1], [0, 0, 1, 1], [], []>} : vector<8x8xbf16>, vector<8x64xbf16>, vector<8x64xf32> -> vector<8x64xf32>
    %45 = arith.truncf %44 : vector<8x64xf32> to vector<8x64xbf16>
    %c0_30 = arith.constant 0 : index
    %c0_31 = arith.constant 0 : index
    %c0_32 = arith.constant 0 : index
    %46 = vector.load %arg8[%c0_30, %c0_31, %c0_32] : memref<2x64x128xbf16, #tpu.memory_space<vmem>>, vector<1x64x128xbf16>
    %47 = vector.shape_cast %46 : vector<1x64x128xbf16> to vector<64x128xbf16>
    %cst_33 = arith.constant dense<0.000000e+00> : vector<8x128xf32>
    %48 = tpu.matmul %45, %47, %cst_33 {dimension_numbers = #tpu.dot_dimension_numbers<[1], [0], [0], [1], [0, 0, 1, 1], [], []>} : vector<8x64xbf16>, vector<64x128xbf16>, vector<8x128xf32> -> vector<8x128xf32>
    %49 = arith.addf %4, %48 : vector<8x128xf32>
    %c1 = arith.constant 1 : index
    %c0_34 = arith.constant 0 : index
    %c0_35 = arith.constant 0 : index
    %50 = vector.load %arg2[%c1, %c0_34, %c0_35] : memref<2x128x64xbf16, #tpu.memory_space<vmem>>, vector<1x128x64xbf16>
    %51 = vector.shape_cast %50 : vector<1x128x64xbf16> to vector<128x64xbf16>
    %cst_36 = arith.constant dense<0.000000e+00> : vector<8x64xf32>
    %52 = tpu.matmul %2, %51, %cst_36 {dimension_numbers = #tpu.dot_dimension_numbers<[1], [0], [0], [1], [0, 0, 1, 1], [], []>} : vector<8x128xbf16>, vector<128x64xbf16>, vector<8x64xf32> -> vector<8x64xf32>
    %c1_37 = arith.constant 1 : index
    %c0_38 = arith.constant 0 : index
    %c0_39 = arith.constant 0 : index
    %53 = vector.load %arg5[%c1_37, %c0_38, %c0_39] : memref<2x1x64xf32, #tpu.memory_space<vmem>>, vector<1x1x64xf32>
    %54 = vector.shape_cast %53 : vector<1x1x64xf32> to vector<1x64xf32>
    %55 = vector.broadcast %54 : vector<1x64xf32> to vector<8x64xf32>
    %56 = arith.addf %52, %55 : vector<8x64xf32>
    %c1_40 = arith.constant 1 : index
    %c0_41 = arith.constant 0 : index
    %c0_42 = arith.constant 0 : index
    %57 = vector.load %arg3[%c1_40, %c0_41, %c0_42] : memref<2x128x64xbf16, #tpu.memory_space<vmem>>, vector<1x128x64xbf16>
    %58 = vector.shape_cast %57 : vector<1x128x64xbf16> to vector<128x64xbf16>
    %cst_43 = arith.constant dense<0.000000e+00> : vector<8x64xf32>
    %59 = tpu.matmul %2, %58, %cst_43 {dimension_numbers = #tpu.dot_dimension_numbers<[1], [0], [0], [1], [0, 0, 1, 1], [], []>} : vector<8x128xbf16>, vector<128x64xbf16>, vector<8x64xf32> -> vector<8x64xf32>
    %c1_44 = arith.constant 1 : index
    %c0_45 = arith.constant 0 : index
    %c0_46 = arith.constant 0 : index
    %60 = vector.load %arg6[%c1_44, %c0_45, %c0_46] : memref<2x1x64xf32, #tpu.memory_space<vmem>>, vector<1x1x64xf32>
    %61 = vector.shape_cast %60 : vector<1x1x64xf32> to vector<1x64xf32>
    %62 = vector.broadcast %61 : vector<1x64xf32> to vector<8x64xf32>
    %63 = arith.addf %59, %62 : vector<8x64xf32>
    %c1_47 = arith.constant 1 : index
    %c0_48 = arith.constant 0 : index
    %c0_49 = arith.constant 0 : index
    %64 = vector.load %arg4[%c1_47, %c0_48, %c0_49] : memref<2x128x64xbf16, #tpu.memory_space<vmem>>, vector<1x128x64xbf16>
    %65 = vector.shape_cast %64 : vector<1x128x64xbf16> to vector<128x64xbf16>
    %cst_50 = arith.constant dense<0.000000e+00> : vector<8x64xf32>
    %66 = tpu.matmul %2, %65, %cst_50 {dimension_numbers = #tpu.dot_dimension_numbers<[1], [0], [0], [1], [0, 0, 1, 1], [], []>} : vector<8x128xbf16>, vector<128x64xbf16>, vector<8x64xf32> -> vector<8x64xf32>
    %c1_51 = arith.constant 1 : index
    %c0_52 = arith.constant 0 : index
    %c0_53 = arith.constant 0 : index
    %67 = vector.load %arg7[%c1_51, %c0_52, %c0_53] : memref<2x1x64xf32, #tpu.memory_space<vmem>>, vector<1x1x64xf32>
    %68 = vector.shape_cast %67 : vector<1x1x64xf32> to vector<1x64xf32>
    %69 = vector.broadcast %68 : vector<1x64xf32> to vector<8x64xf32>
    %70 = arith.addf %66, %69 : vector<8x64xf32>
    %71 = arith.truncf %56 : vector<8x64xf32> to vector<8x64xbf16>
    %72 = arith.truncf %63 : vector<8x64xf32> to vector<8x64xbf16>
    %73 = arith.truncf %70 : vector<8x64xf32> to vector<8x64xbf16>
    %cst_54 = arith.constant dense<0.000000e+00> : vector<8x8xf32>
    %74 = tpu.matmul %71, %72, %cst_54 {dimension_numbers = #tpu.dot_dimension_numbers<[1], [1], [0], [0], [0, 0, 1, 0], [], []>} : vector<8x64xbf16>, vector<8x64xbf16>, vector<8x8xf32> -> vector<8x8xf32>
    %cst_55 = arith.constant 1.250000e-01 : f32
    %75 = vector.broadcast %cst_55 : f32 to vector<8x8xf32>
    %76 = arith.mulf %74, %75 : vector<8x8xf32>
    %77 = arith.addf %76, %3 : vector<8x8xf32>
    %cst_56 = arith.constant dense<0xFF800000> : vector<8xf32>
    %78 = vector.multi_reduction <maximumf>, %77, %cst_56 [1] : vector<8x8xf32> to vector<8xf32>
    %79 = vector.shape_cast %78 : vector<8xf32> to vector<8x1xf32>
    %80 = vector.broadcast %79 : vector<8x1xf32> to vector<8x8xf32>
    %81 = arith.subf %77, %80 : vector<8x8xf32>
    %82 = math.exp %81 : vector<8x8xf32>
    %cst_57 = arith.constant dense<0.000000e+00> : vector<8xf32>
    %83 = vector.multi_reduction <add>, %82, %cst_57 [1] : vector<8x8xf32> to vector<8xf32>
    %84 = vector.shape_cast %83 : vector<8xf32> to vector<8x1xf32>
    %85 = tpu.reciprocal %84 {approx = true} : vector<8x1xf32> -> vector<8x1xf32>
    %86 = vector.broadcast %85 : vector<8x1xf32> to vector<8x8xf32>
    %87 = arith.mulf %82, %86 : vector<8x8xf32>
    %88 = arith.truncf %87 : vector<8x8xf32> to vector<8x8xbf16>
    %cst_58 = arith.constant dense<0.000000e+00> : vector<8x64xf32>
    %89 = tpu.matmul %88, %73, %cst_58 {dimension_numbers = #tpu.dot_dimension_numbers<[1], [0], [0], [1], [0, 0, 1, 1], [], []>} : vector<8x8xbf16>, vector<8x64xbf16>, vector<8x64xf32> -> vector<8x64xf32>
    %90 = arith.truncf %89 : vector<8x64xf32> to vector<8x64xbf16>
    %c1_59 = arith.constant 1 : index
    %c0_60 = arith.constant 0 : index
    %c0_61 = arith.constant 0 : index
    %91 = vector.load %arg8[%c1_59, %c0_60, %c0_61] : memref<2x64x128xbf16, #tpu.memory_space<vmem>>, vector<1x64x128xbf16>
    %92 = vector.shape_cast %91 : vector<1x64x128xbf16> to vector<64x128xbf16>
    %cst_62 = arith.constant dense<0.000000e+00> : vector<8x128xf32>
    %93 = tpu.matmul %90, %92, %cst_62 {dimension_numbers = #tpu.dot_dimension_numbers<[1], [0], [0], [1], [0, 0, 1, 1], [], []>} : vector<8x64xbf16>, vector<64x128xbf16>, vector<8x128xf32> -> vector<8x128xf32>
    %94 = arith.addf %49, %93 : vector<8x128xf32>
    %c0_63 = arith.constant 0 : index
    %c0_64 = arith.constant 0 : index
    %95 = vector.load %arg9[%c0_63, %c0_64] : memref<1x128xf32, #tpu.memory_space<vmem>>, vector<1x128xf32>
    %96 = vector.broadcast %95 : vector<1x128xf32> to vector<8x128xf32>
    %97 = arith.addf %94, %96 : vector<8x128xf32>
    %98 = arith.addf %1, %97 : vector<8x128xf32>
    %cst_65 = arith.constant dense<0.000000e+00> : vector<8xf32>
    %99 = vector.multi_reduction <add>, %98, %cst_65 [1] : vector<8x128xf32> to vector<8xf32>
    %100 = vector.shape_cast %99 : vector<8xf32> to vector<8x1xf32>
    %cst_66 = arith.constant 1.280000e+02 : f32
    %101 = vector.broadcast %cst_66 : f32 to vector<8x1xf32>
    %102 = arith.divf %100, %101 : vector<8x1xf32>
    %103 = arith.mulf %98, %98 : vector<8x128xf32>
    %cst_67 = arith.constant dense<0.000000e+00> : vector<8xf32>
    %104 = vector.multi_reduction <add>, %103, %cst_67 [1] : vector<8x128xf32> to vector<8xf32>
    %105 = vector.shape_cast %104 : vector<8xf32> to vector<8x1xf32>
    %cst_68 = arith.constant 1.280000e+02 : f32
    %106 = vector.broadcast %cst_68 : f32 to vector<8x1xf32>
    %107 = arith.divf %105, %106 : vector<8x1xf32>
    %108 = arith.mulf %102, %102 : vector<8x1xf32>
    %109 = arith.subf %107, %108 : vector<8x1xf32>
    %cst_69 = arith.constant 0.000000e+00 : f32
    %110 = vector.broadcast %cst_69 : f32 to vector<8x1xf32>
    %111 = arith.maximumf %109, %110 : vector<8x1xf32>
    %112 = vector.broadcast %102 : vector<8x1xf32> to vector<8x128xf32>
    %113 = arith.subf %98, %112 : vector<8x128xf32>
    %cst_70 = arith.constant 9.99999974E-6 : f32
    %114 = vector.broadcast %cst_70 : f32 to vector<8x1xf32>
    %115 = arith.addf %111, %114 : vector<8x1xf32>
    %116 = math.rsqrt %115 : vector<8x1xf32>
    %117 = vector.broadcast %116 : vector<8x1xf32> to vector<8x128xf32>
    %118 = arith.mulf %113, %117 : vector<8x128xf32>
    %c0_71 = arith.constant 0 : index
    %c0_72 = arith.constant 0 : index
    %119 = vector.load %arg10[%c0_71, %c0_72] : memref<1x128xf32, #tpu.memory_space<vmem>>, vector<1x128xf32>
    %120 = vector.broadcast %119 : vector<1x128xf32> to vector<8x128xf32>
    %121 = arith.mulf %118, %120 : vector<8x128xf32>
    %c0_73 = arith.constant 0 : index
    %c0_74 = arith.constant 0 : index
    %122 = vector.load %arg11[%c0_73, %c0_74] : memref<1x128xf32, #tpu.memory_space<vmem>>, vector<1x128xf32>
    %123 = vector.broadcast %122 : vector<1x128xf32> to vector<8x128xf32>
    %124 = arith.addf %121, %123 : vector<8x128xf32>
    %c0_75 = arith.constant 0 : index
    %c0_76 = arith.constant 0 : index
    %c0_77 = arith.constant 0 : index
    %125 = vector.load %arg13[%c0_75, %c0_76, %c0_77] : memref<1x8x128xf32, #tpu.memory_space<vmem>>, vector<1x8x128xf32>
    %126 = vector.shape_cast %125 : vector<1x8x128xf32> to vector<8x128xf32>
    %127 = vector.shape_cast %124 : vector<8x128xf32> to vector<1x8x128xf32>
    tpu.vector_store %arg13[%c0_75, %c0_76, %c0_77], %127 {strides = array<i32>} : memref<1x8x128xf32, #tpu.memory_space<vmem>>, vector<1x8x128xf32>,
    return
  }
  func.func @transform_0(%arg0: i32) -> (i32, i32, i32) {
    %c0_i32 = arith.constant 0 : i32
    %c0_i32_0 = arith.constant 0 : i32
    %c0_i32_1 = arith.constant 0 : i32
    return %arg0, %c0_i32, %c0_i32_0 : i32, i32, i32
  }
  func.func @transform_1(%arg0: i32) -> (i32, i32, i32) {
    %c0_i32 = arith.constant 0 : i32
    %c0_i32_0 = arith.constant 0 : i32
    %c0_i32_1 = arith.constant 0 : i32
    %c0_i32_2 = arith.constant 0 : i32
    return %c0_i32, %c0_i32_0, %c0_i32_1 : i32, i32, i32
  }
  func.func @transform_2(%arg0: i32) -> (i32, i32, i32) {
    %c0_i32 = arith.constant 0 : i32
    %c0_i32_0 = arith.constant 0 : i32
    %c0_i32_1 = arith.constant 0 : i32
    %c0_i32_2 = arith.constant 0 : i32
    return %c0_i32, %c0_i32_0, %c0_i32_1 : i32, i32, i32
  }
  func.func @transform_3(%arg0: i32) -> (i32, i32, i32) {
    %c0_i32 = arith.constant 0 : i32
    %c0_i32_0 = arith.constant 0 : i32
    %c0_i32_1 = arith.constant 0 : i32
    %c0_i32_2 = arith.constant 0 : i32
    return %c0_i32, %c0_i32_0, %c0_i32_1 : i32, i32, i32
  }
  func.func @transform_4(%arg0: i32) -> (i32, i32, i32) {
    %c0_i32 = arith.constant 0 : i32
    %c0_i32_0 = arith.constant 0 : i32
    %c0_i32_1 = arith.constant 0 : i32
    %c0_i32_2 = arith.constant 0 : i32
    return %c0_i32, %c0_i32_0, %c0_i32_1 : i32, i32, i32
  }
  func.func @transform_5(%arg0: i32) -> (i32, i32, i32) {
    %c0_i32 = arith.constant 0 : i32
    %c0_i32_0 = arith.constant 0 : i32
    %c0_i32_1 = arith.constant 0 : i32
    %c0_i32_2 = arith.constant 0 : i32
    return %c0_i32, %c0_i32_0, %c0_i32_1 : i32, i32, i32
  }
  func.func @transform_6(%arg0: i32) -> (i32, i32, i32) {
    %c0_i32 = arith.constant 0 : i32
    %c0_i32_0 = arith.constant 0 : i32
    %c0_i32_1 = arith.constant 0 : i32
    %c0_i32_2 = arith.constant 0 : i32
    return %c0_i32, %c0_i32_0, %c0_i32_1 : i32, i32, i32
  }
  func.func @transform_7(%arg0: i32) -> (i32, i32, i32) {
    %c0_i32 = arith.constant 0 : i32
    %c0_i32_0 = arith.constant 0 : i32
    %c0_i32_1 = arith.constant 0 : i32
    %c0_i32_2 = arith.constant 0 : i32
    return %c0_i32, %c0_i32_0, %c0_i32_1 : i32, i32, i32
  }
  func.func @transform_8(%arg0: i32) -> (i32, i32) {
    %c0_i32 = arith.constant 0 : i32
    %c0_i32_0 = arith.constant 0 : i32
    %c0_i32_1 = arith.constant 0 : i32
    return %c0_i32, %c0_i32_0 : i32, i32
  }
  func.func @transform_9(%arg0: i32) -> (i32, i32) {
    %c0_i32 = arith.constant 0 : i32
    %c0_i32_0 = arith.constant 0 : i32
    %c0_i32_1 = arith.constant 0 : i32
    return %c0_i32, %c0_i32_0 : i32, i32
  }
  func.func @transform_10(%arg0: i32) -> (i32, i32) {
    %c0_i32 = arith.constant 0 : i32
    %c0_i32_0 = arith.constant 0 : i32
    %c0_i32_1 = arith.constant 0 : i32
    return %c0_i32, %c0_i32_0 : i32, i32
  }
  func.func @transform_11(%arg0: i32) -> (i32, i32) {
    %c0_i32 = arith.constant 0 : i32
    %c0_i32_0 = arith.constant 0 : i32
    %c0_i32_1 = arith.constant 0 : i32
    return %c0_i32, %c0_i32_0 : i32, i32
  }
  func.func @transform_12(%arg0: i32) -> (i32, i32, i32) {
    %c0_i32 = arith.constant 0 : i32
    %c0_i32_0 = arith.constant 0 : i32
    %c0_i32_1 = arith.constant 0 : i32
    return %arg0, %c0_i32, %c0_i32_0 : i32, i32, i32
  }
}

module attributes {stable_mosaic.version = 11 : i64} {
  func.func @_decoder_kernel(%arg0: i32, %arg1: i32, %arg2: memref<8x128xf32, #tpu.memory_space<vmem>>, %arg3: memref<128x128xbf16, #tpu.memory_space<vmem>>, %arg4: memref<1x128xf32, #tpu.memory_space<vmem>>, %arg5: memref<8x128xf32, #tpu.memory_space<vmem>>) attributes {dimension_semantics = [#tpu.dimension_semantics<parallel>, #tpu.dimension_semantics<parallel>], iteration_bounds = array<i64: 2, 2>, scalar_prefetch = 0 : i64, scratch_operands = 0 : i64, tpu.core_type = #tpu.core_type<tc>, window_params = [{transform_indices = @transform_0, window_bounds = array<i64: 8, 128>}, {transform_indices = @transform_1, window_bounds = array<i64: 128, 128>}, {transform_indices = @transform_2, window_bounds = array<i64: 1, 128>}, {transform_indices = @transform_3, window_bounds = array<i64: 8, 128>}]} {
    %c0 = arith.constant 0 : index
    %c0_0 = arith.constant 0 : index
    %0 = vector.load %arg2[%c0, %c0_0] : memref<8x128xf32, #tpu.memory_space<vmem>>, vector<8x128xf32>
    %1 = arith.truncf %0 : vector<8x128xf32> to vector<8x128xbf16>
    %c0_1 = arith.constant 0 : index
    %c0_2 = arith.constant 0 : index
    %2 = vector.load %arg3[%c0_1, %c0_2] : memref<128x128xbf16, #tpu.memory_space<vmem>>, vector<128x128xbf16>
    %cst = arith.constant dense<0.000000e+00> : vector<8x128xf32>
    %3 = tpu.matmul %1, %2, %cst {dimension_numbers = #tpu.dot_dimension_numbers<[1], [0], [0], [1], [0, 0, 1, 1], [], []>} : vector<8x128xbf16>, vector<128x128xbf16>, vector<8x128xf32> -> vector<8x128xf32>
    %c0_3 = arith.constant 0 : index
    %c0_4 = arith.constant 0 : index
    %4 = vector.load %arg4[%c0_3, %c0_4] : memref<1x128xf32, #tpu.memory_space<vmem>>, vector<1x128xf32>
    %5 = vector.broadcast %4 : vector<1x128xf32> to vector<8x128xf32>
    %6 = arith.addf %3, %5 : vector<8x128xf32>
    %c0_5 = arith.constant 0 : index
    %c0_6 = arith.constant 0 : index
    %7 = vector.load %arg5[%c0_5, %c0_6] : memref<8x128xf32, #tpu.memory_space<vmem>>, vector<8x128xf32>
    tpu.vector_store %arg5[%c0_5, %c0_6], %6 {strides = array<i32>} : memref<8x128xf32, #tpu.memory_space<vmem>>, vector<8x128xf32>,
    return
  }
  func.func @transform_0(%arg0: i32, %arg1: i32) -> (i32, i32) {
    %c0_i32 = arith.constant 0 : i32
    %c0_i32_0 = arith.constant 0 : i32
    return %arg0, %c0_i32 : i32, i32
  }
  func.func @transform_1(%arg0: i32, %arg1: i32) -> (i32, i32) {
    %c0_i32 = arith.constant 0 : i32
    %c0_i32_0 = arith.constant 0 : i32
    return %c0_i32, %arg1 : i32, i32
  }
  func.func @transform_2(%arg0: i32, %arg1: i32) -> (i32, i32) {
    %c0_i32 = arith.constant 0 : i32
    %c0_i32_0 = arith.constant 0 : i32
    return %c0_i32, %arg1 : i32, i32
  }
  func.func @transform_3(%arg0: i32, %arg1: i32) -> (i32, i32) {
    %c0_i32 = arith.constant 0 : i32
    return %arg0, %arg1 : i32, i32
  }
}

module attributes {stable_mosaic.version = 11 : i64} {
  func.func @_ffn_block_kernel(%arg0: i32, %arg1: memref<8x128xf32, #tpu.memory_space<vmem>>, %arg2: memref<128x256xbf16, #tpu.memory_space<vmem>>, %arg3: memref<1x256xf32, #tpu.memory_space<vmem>>, %arg4: memref<256x128xbf16, #tpu.memory_space<vmem>>, %arg5: memref<1x128xf32, #tpu.memory_space<vmem>>, %arg6: memref<1x128xf32, #tpu.memory_space<vmem>>, %arg7: memref<1x128xf32, #tpu.memory_space<vmem>>, %arg8: memref<8x128xf32, #tpu.memory_space<vmem>>) attributes {dimension_semantics = [#tpu.dimension_semantics<parallel>], iteration_bounds = array<i64: 2>, scalar_prefetch = 0 : i64, scratch_operands = 0 : i64, tpu.core_type = #tpu.core_type<tc>, window_params = [{transform_indices = @transform_0, window_bounds = array<i64: 8, 128>}, {pipeline_mode = #tpu.pipeline_mode<synchronous>, transform_indices = @transform_1, window_bounds = array<i64: 128, 256>}, {pipeline_mode = #tpu.pipeline_mode<synchronous>, transform_indices = @transform_2, window_bounds = array<i64: 1, 256>}, {pipeline_mode = #tpu.pipeline_mode<synchronous>, transform_indices = @transform_3, window_bounds = array<i64: 256, 128>}, {pipeline_mode = #tpu.pipeline_mode<synchronous>, transform_indices = @transform_4, window_bounds = array<i64: 1, 128>}, {pipeline_mode = #tpu.pipeline_mode<synchronous>, transform_indices = @transform_5, window_bounds = array<i64: 1, 128>}, {pipeline_mode = #tpu.pipeline_mode<synchronous>, transform_indices = @transform_6, window_bounds = array<i64: 1, 128>}, {transform_indices = @transform_7, window_bounds = array<i64: 8, 128>}]} {
    %c0 = arith.constant 0 : index
    %c0_0 = arith.constant 0 : index
    %0 = vector.load %arg1[%c0, %c0_0] : memref<8x128xf32, #tpu.memory_space<vmem>>, vector<8x128xf32>
    %1 = arith.truncf %0 : vector<8x128xf32> to vector<8x128xbf16>
    %c0_1 = arith.constant 0 : index
    %c0_2 = arith.constant 0 : index
    %2 = vector.load %arg2[%c0_1, %c0_2] : memref<128x256xbf16, #tpu.memory_space<vmem>>, vector<128x256xbf16>
    %cst = arith.constant dense<0.000000e+00> : vector<8x256xf32>
    %3 = tpu.matmul %1, %2, %cst {dimension_numbers = #tpu.dot_dimension_numbers<[1], [0], [0], [1], [0, 0, 1, 1], [], []>} : vector<8x128xbf16>, vector<128x256xbf16>, vector<8x256xf32> -> vector<8x256xf32>
    %c0_3 = arith.constant 0 : index
    %c0_4 = arith.constant 0 : index
    %4 = vector.load %arg3[%c0_3, %c0_4] : memref<1x256xf32, #tpu.memory_space<vmem>>, vector<1x256xf32>
    %5 = vector.broadcast %4 : vector<1x256xf32> to vector<8x256xf32>
    %6 = arith.addf %3, %5 : vector<8x256xf32>
    %cst_5 = arith.constant 0.000000e+00 : f32
    %7 = vector.broadcast %cst_5 : f32 to vector<8x256xf32>
    %8 = arith.maximumf %6, %7 : vector<8x256xf32>
    %9 = arith.truncf %8 : vector<8x256xf32> to vector<8x256xbf16>
    %c0_6 = arith.constant 0 : index
    %c0_7 = arith.constant 0 : index
    %10 = vector.load %arg4[%c0_6, %c0_7] : memref<256x128xbf16, #tpu.memory_space<vmem>>, vector<256x128xbf16>
    %cst_8 = arith.constant dense<0.000000e+00> : vector<8x128xf32>
    %11 = tpu.matmul %9, %10, %cst_8 {dimension_numbers = #tpu.dot_dimension_numbers<[1], [0], [0], [1], [0, 0, 1, 1], [], []>} : vector<8x256xbf16>, vector<256x128xbf16>, vector<8x128xf32> -> vector<8x128xf32>
    %c0_9 = arith.constant 0 : index
    %c0_10 = arith.constant 0 : index
    %12 = vector.load %arg5[%c0_9, %c0_10] : memref<1x128xf32, #tpu.memory_space<vmem>>, vector<1x128xf32>
    %13 = vector.broadcast %12 : vector<1x128xf32> to vector<8x128xf32>
    %14 = arith.addf %11, %13 : vector<8x128xf32>
    %15 = arith.addf %0, %14 : vector<8x128xf32>
    %cst_11 = arith.constant dense<0.000000e+00> : vector<8xf32>
    %16 = vector.multi_reduction <add>, %15, %cst_11 [1] : vector<8x128xf32> to vector<8xf32>
    %17 = vector.shape_cast %16 : vector<8xf32> to vector<8x1xf32>
    %cst_12 = arith.constant 1.280000e+02 : f32
    %18 = vector.broadcast %cst_12 : f32 to vector<8x1xf32>
    %19 = arith.divf %17, %18 : vector<8x1xf32>
    %20 = arith.mulf %15, %15 : vector<8x128xf32>
    %cst_13 = arith.constant dense<0.000000e+00> : vector<8xf32>
    %21 = vector.multi_reduction <add>, %20, %cst_13 [1] : vector<8x128xf32> to vector<8xf32>
    %22 = vector.shape_cast %21 : vector<8xf32> to vector<8x1xf32>
    %cst_14 = arith.constant 1.280000e+02 : f32
    %23 = vector.broadcast %cst_14 : f32 to vector<8x1xf32>
    %24 = arith.divf %22, %23 : vector<8x1xf32>
    %25 = arith.mulf %19, %19 : vector<8x1xf32>
    %26 = arith.subf %24, %25 : vector<8x1xf32>
    %cst_15 = arith.constant 0.000000e+00 : f32
    %27 = vector.broadcast %cst_15 : f32 to vector<8x1xf32>
    %28 = arith.maximumf %26, %27 : vector<8x1xf32>
    %29 = vector.broadcast %19 : vector<8x1xf32> to vector<8x128xf32>
    %30 = arith.subf %15, %29 : vector<8x128xf32>
    %cst_16 = arith.constant 9.99999974E-6 : f32
    %31 = vector.broadcast %cst_16 : f32 to vector<8x1xf32>
    %32 = arith.addf %28, %31 : vector<8x1xf32>
    %33 = math.rsqrt %32 : vector<8x1xf32>
    %34 = vector.broadcast %33 : vector<8x1xf32> to vector<8x128xf32>
    %35 = arith.mulf %30, %34 : vector<8x128xf32>
    %c0_17 = arith.constant 0 : index
    %c0_18 = arith.constant 0 : index
    %36 = vector.load %arg6[%c0_17, %c0_18] : memref<1x128xf32, #tpu.memory_space<vmem>>, vector<1x128xf32>
    %37 = vector.broadcast %36 : vector<1x128xf32> to vector<8x128xf32>
    %38 = arith.mulf %35, %37 : vector<8x128xf32>
    %c0_19 = arith.constant 0 : index
    %c0_20 = arith.constant 0 : index
    %39 = vector.load %arg7[%c0_19, %c0_20] : memref<1x128xf32, #tpu.memory_space<vmem>>, vector<1x128xf32>
    %40 = vector.broadcast %39 : vector<1x128xf32> to vector<8x128xf32>
    %41 = arith.addf %38, %40 : vector<8x128xf32>
    %c0_21 = arith.constant 0 : index
    %c0_22 = arith.constant 0 : index
    %42 = vector.load %arg8[%c0_21, %c0_22] : memref<8x128xf32, #tpu.memory_space<vmem>>, vector<8x128xf32>
    tpu.vector_store %arg8[%c0_21, %c0_22], %41 {strides = array<i32>} : memref<8x128xf32, #tpu.memory_space<vmem>>, vector<8x128xf32>,
    return
  }
  func.func @transform_0(%arg0: i32) -> (i32, i32) {
    %c0_i32 = arith.constant 0 : i32
    %c0_i32_0 = arith.constant 0 : i32
    return %arg0, %c0_i32 : i32, i32
  }
  func.func @transform_1(%arg0: i32) -> (i32, i32) {
    %c0_i32 = arith.constant 0 : i32
    %c0_i32_0 = arith.constant 0 : i32
    %c0_i32_1 = arith.constant 0 : i32
    return %c0_i32, %c0_i32_0 : i32, i32
  }
  func.func @transform_2(%arg0: i32) -> (i32, i32) {
    %c0_i32 = arith.constant 0 : i32
    %c0_i32_0 = arith.constant 0 : i32
    %c0_i32_1 = arith.constant 0 : i32
    return %c0_i32, %c0_i32_0 : i32, i32
  }
  func.func @transform_3(%arg0: i32) -> (i32, i32) {
    %c0_i32 = arith.constant 0 : i32
    %c0_i32_0 = arith.constant 0 : i32
    %c0_i32_1 = arith.constant 0 : i32
    return %c0_i32, %c0_i32_0 : i32, i32
  }
  func.func @transform_4(%arg0: i32) -> (i32, i32) {
    %c0_i32 = arith.constant 0 : i32
    %c0_i32_0 = arith.constant 0 : i32
    %c0_i32_1 = arith.constant 0 : i32
    return %c0_i32, %c0_i32_0 : i32, i32
  }
  func.func @transform_5(%arg0: i32) -> (i32, i32) {
    %c0_i32 = arith.constant 0 : i32
    %c0_i32_0 = arith.constant 0 : i32
    %c0_i32_1 = arith.constant 0 : i32
    return %c0_i32, %c0_i32_0 : i32, i32
  }
  func.func @transform_6(%arg0: i32) -> (i32, i32) {
    %c0_i32 = arith.constant 0 : i32
    %c0_i32_0 = arith.constant 0 : i32
    %c0_i32_1 = arith.constant 0 : i32
    return %c0_i32, %c0_i32_0 : i32, i32
  }
  func.func @transform_7(%arg0: i32) -> (i32, i32) {
    %c0_i32 = arith.constant 0 : i32
    %c0_i32_0 = arith.constant 0 : i32
    return %arg0, %c0_i32 : i32, i32
  }
}

</mosaic_0001>

<llo_original>
// kernel: transformer_forward.9
$region0: #{transformer_forward.9}
  #allocation0 [shape = 'u32[]', space=smem, size = 0x4, offset = 0x4, fixed_abs, tag = 'smem constant byte address 0x4 - core index']
  #allocation1 [shape = 'u32[144,128]{1,0:T(1,128)}', space=vmem, size = 0x12000, scoped, tag = 'internal scratch']
  %s0 = inlined_call_operand.vmem [shape: f32[16,128], index: 0, kind: input, shape index: {}]
  %s1 = inlined_call_operand.vmem [shape: bf16[128,256], index: 1, kind: input, shape index: {}]
  %s2 = inlined_call_operand.vmem [shape: f32[1,256], index: 2, kind: input, shape index: {}]
  %s3 = inlined_call_operand.vmem [shape: f32[16,256], index: 3, kind: output, shape index: {}]
  %s4 = sld [smem:[#allocation0]]
  $region86: #{transformer_forward.9} parent=0
    _
  %s6 = ssub.s32 1, %s4
  %s7 = scalar_select 0, %s6, %s4
  $region1: #{transformer_forward.9} parent=0
    #allocation2 [shape = 'u8[65536]{0}', space=vmem, size = 0x10000, scoped, tag = 'input window, operand 1']
    loop: start=0, step=1, limit=6
    $region2: #{transformer_forward.9} parent=1 // loop_pre_header
      _
    $region3: #{transformer_forward.9} parent=1 // loop_header
      %s9 = sphi 0, %s13
      %p10 = scmp.ge.s32.totalorder %s9, 6
      %s16 = sphi 0, %s28
      %s17 = sphi 0, %s24
      %s18 = sphi 0, %s16
      %s19 = sphi 0, %s17
      %s20 = sphi 0, %s18
      %s21 = sphi 0, %s19
      %s31 = sphi 0, %s33
      %s34 = sphi 0, %s31
      %s35 = sphi 0, %s34
      %s51 = sphi 0, %s35
      %s57 = sphi 0, %s59
      %s60 = sphi 0, %s57
      %s61 = sphi 0, %s60
      %s77 = sphi 0, %s61
      %s83 = sphi 0, %s85
      %s86 = sphi 0, %s83
      %s87 = sphi 0, %s86
      %s103 = sphi 0, %s87
      %s111 = sphi 0, %s113
      %s114 = sphi 0, %s111
      %s115 = sphi 0, %s114
      %s131 = sphi 0, %s115
    $region4: #{transformer_forward.9} parent=1 // loop_header_branch
      %12 = sbr.rel (%p10) target = $region8
    $region5: #{transformer_forward.9} parent=1 // loop_body
      %s14 = ssub.s32 %s9, 1
      %s15 = ssub.s32 %s9, 2
      %s22 = sadd.s32 1, %s17
      %p23 = scmp.ge.s32.totalorder %s22, 2
      %s24 = scalar_select %p23, 0, %s22
      %s25 = sadd.s32 1, %s16
      %s26 = scalar_select %p23, %s25, %s16
      %p27 = scmp.ge.s32.totalorder %s26, 2
      %s28 = scalar_select %p27, 0, %s26
      %s29 = ssub.s32 %s16, %s28
      %p30 = scmp.eq.s32.totalorder %s29, 0
      %s32 = sadd.s32 %s31, 1
      %s33 = scalar_select %p30, %s31, %s32
      %p36 = pneg %p30
      %p37 = scmp.eq.s32.totalorder %s9, 3
      %p38 = por %p36, %p37
      %p39 = scmp.ne.s32.totalorder %s31, %s34
      %p40 = scmp.eq.s32.totalorder %s9, 0
      %p41 = por %p39, %p40
      %p42 = scmp.ne.s32.totalorder %s31, %s34
      %p43 = scmp.eq.s32.totalorder %s14, 3
      %p44 = por %p42, %p43
      %p45 = scmp.ne.s32.totalorder %s34, %s35
      %p46 = scmp.eq.s32.totalorder %s14, 0
      %p47 = por %p45, %p46
      %p48 = scmp.ne.s32.totalorder %s34, %s35
      %p49 = scmp.eq.s32.totalorder %s15, 3
      %p50 = por %p48, %p49
      %p52 = scmp.ne.s32.totalorder %s35, %s51
      %p53 = scmp.eq.s32.totalorder %s15, 0
      %p54 = por %p52, %p53
      %s55 = ssub.s32 %s17, %s24
      %p56 = scmp.eq.s32.totalorder %s55, 0
      %s58 = sadd.s32 %s57, 1
      %s59 = scalar_select %p56, %s57, %s58
      %p62 = pneg %p56
      %p63 = scmp.eq.s32.totalorder %s9, 3
      %p64 = por %p62, %p63
      %p65 = scmp.ne.s32.totalorder %s57, %s60
      %p66 = scmp.eq.s32.totalorder %s9, 0
      %p67 = por %p65, %p66
      %p68 = scmp.ne.s32.totalorder %s57, %s60
      %p69 = scmp.eq.s32.totalorder %s14, 3
      %p70 = por %p68, %p69
      %p71 = scmp.ne.s32.totalorder %s60, %s61
      %p72 = scmp.eq.s32.totalorder %s14, 0
      %p73 = por %p71, %p72
      %p74 = scmp.ne.s32.totalorder %s60, %s61
      %p75 = scmp.eq.s32.totalorder %s15, 3
      %p76 = por %p74, %p75
      %p78 = scmp.ne.s32.totalorder %s61, %s77
      %p79 = scmp.eq.s32.totalorder %s15, 0
      %p80 = por %p78, %p79
      %s81 = ssub.s32 %s17, %s24
      %p82 = scmp.eq.s32.totalorder %s81, 0
      %s84 = sadd.s32 %s83, 1
      %s85 = scalar_select %p82, %s83, %s84
      %p88 = pneg %p82
      %p89 = scmp.eq.s32.totalorder %s9, 3
      %p90 = por %p88, %p89
      %p91 = scmp.ne.s32.totalorder %s83, %s86
      %p92 = scmp.eq.s32.totalorder %s9, 0
      %p93 = por %p91, %p92
      %p94 = scmp.ne.s32.totalorder %s83, %s86
      %p95 = scmp.eq.s32.totalorder %s14, 3
      %p96 = por %p94, %p95
      %p97 = scmp.ne.s32.totalorder %s86, %s87
      %p98 = scmp.eq.s32.totalorder %s14, 0
      %p99 = por %p97, %p98
      %p100 = scmp.ne.s32.totalorder %s86, %s87
      %p101 = scmp.eq.s32.totalorder %s15, 3
      %p102 = por %p100, %p101
      %p104 = scmp.ne.s32.totalorder %s87, %s103
      %p105 = scmp.eq.s32.totalorder %s15, 0
      %p106 = por %p104, %p105
      %s107 = ssub.s32 %s16, %s28
      %s108 = ssub.s32 %s17, %s24
      %s109 = sor.u32 %s107, %s108
      %p110 = scmp.eq.s32.totalorder %s109, 0
      %s112 = sadd.s32 %s111, 1
      %s113 = scalar_select %p110, %s111, %s112
      %p116 = pneg %p110
      %p117 = scmp.eq.s32.totalorder %s9, 3
      %p118 = por %p116, %p117
      %p119 = scmp.ne.s32.totalorder %s111, %s114
      %p120 = scmp.eq.s32.totalorder %s9, 0
      %p121 = por %p119, %p120
      %p122 = scmp.ne.s32.totalorder %s111, %s114
      %p123 = scmp.eq.s32.totalorder %s14, 3
      %p124 = por %p122, %p123
      %p125 = scmp.ne.s32.totalorder %s114, %s115
      %p126 = scmp.eq.s32.totalorder %s14, 0
      %p127 = por %p125, %p126
      %p128 = scmp.ne.s32.totalorder %s114, %s115
      %p129 = scmp.eq.s32.totalorder %s15, 3
      %p130 = por %p128, %p129
      %p132 = scmp.ne.s32.totalorder %s115, %s131
      %p133 = scmp.eq.s32.totalorder %s15, 0
      %p134 = por %p132, %p133
      %p135 = scmp.le.s32.totalorder 1, %s9
      %p136 = scmp.lt.s32.totalorder %s9, 5
      %p137 = pnand %p135, %p136
      %p138 = pneg %p137
      // Predicated region
      $region9: #{transformer_forward.9} parent=5 // pred_check
        _
      $region10: #{transformer_forward.9} parent=5 // pred_check_branch
        %140 = sbr.rel (%p137) target = $region12
      $region11: #{transformer_forward.9} parent=5 // pred_region
        %s141 = ssub.s32 %s9, 1
      $region12: #{transformer_forward.9} parent=5 // pred_fallthru
        _
      %p142 = scmp.lt.s32.totalorder %s9, 4
      // Predicated region
      $region13: #{transformer_forward.9} parent=5 // pred_check
        %p143 = pneg %p142
      $region14: #{transformer_forward.9} parent=5 // pred_check_branch
        %145 = sbr.rel (%p143) target = $region16
      $region15: #{transformer_forward.9} parent=5 // pred_region
        // Predicated region
        $region17: #{transformer_forward.9} parent=15 // pred_check
          %p146 = pneg %p41
        $region18: #{transformer_forward.9} parent=15 // pred_check_branch
          %148 = sbr.rel (%p146) target = $region20
        $region19: #{transformer_forward.9} parent=15 // pred_region
          %p149 = scmp.lt.s32.totalorder %s16, 1
          %s150 = scalar_select %p149, %s16, 1
          %s151 = smul.addr %s150, 8
          %s152 = scalar_lea.vmem %s0, %s151
        $region20: #{transformer_forward.9} parent=15 // pred_fallthru
          _
        // Predicated region
        $region21: #{transformer_forward.9} parent=15 // pred_check
          %p153 = pneg %p67
        $region22: #{transformer_forward.9} parent=15 // pred_check_branch
          %155 = sbr.rel (%p153) target = $region24
        $region23: #{transformer_forward.9} parent=15 // pred_region
          %s156 = sand.u32 %s57, 1
          %s157 = sand.u32 %s57, 1
          %s158 = smul.addr %s157, 64
          %s159 = scalar_lea.vmem [#allocation2], %s158
          %s160 = smul.addr %s17, 4
          %s161 = scalar_lea.vmem %s1, %s160
          // Predicated region
          $region25: #{transformer_forward.9} parent=23 // pred_check
            _
          $region26: #{transformer_forward.9} parent=23 // pred_check_branch
            %163 = sbr.rel (0) target = $region28
          $region27: #{transformer_forward.9} parent=23 // pred_region
            // Predicated region
            $region29: #{transformer_forward.9} parent=27 // pred_check
              _
            $region30: #{transformer_forward.9} parent=27 // pred_check_branch
              %165 = sbr.rel target = $region32
            $region31: #{transformer_forward.9} parent=27 // pred_region
              // Predicated region
              $region44: #{transformer_forward.9} parent=31 // pred_check
                _
              $region45: #{transformer_forward.9} parent=31 // pred_check_branch
                %210 = sbr.rel (0) target = $region47
              $region46: #{transformer_forward.9} parent=31 // pred_region
                loop: start=0, step=1, limit=1
                $region48: #{transformer_forward.9} parent=46 // loop_pre_header
                  _
                $region49: #{transformer_forward.9} parent=46 // loop_header
                  %s212 = sphi 0, %s216
                  %p213 = scmp.ge.s32.totalorder %s212, 1
                  %s217 = sphi %s161, %s161
                  %s218 = sphi %s159, %s159
                $region50: #{transformer_forward.9} parent=46 // loop_header_branch
                  %215 = sbr.rel (%p213) target = $region54
                $region51: #{transformer_forward.9} parent=46 // loop_body
                  _
                $region52: #{transformer_forward.9} parent=46 // loop_footer
                  %s216 = sadd.s32 1, %s212
                $region53: #{transformer_forward.9} parent=46 // loop_footer_branch
                  %211 = sbr.rel target = $region49
                $region54: #{transformer_forward.9} parent=46 // loop_exit
                  _
                loop: start=0, step=1, limit=1
                $region55: #{transformer_forward.9} parent=46 // loop_pre_header
                  _
                $region56: #{transformer_forward.9} parent=46 // loop_header
                  %s221 = sphi 0, %s225
                  %p222 = scmp.ge.s32.totalorder %s221, 1
                  %s226 = sphi %s161, %s161
                  %s227 = sphi %s159, %s159
                $region57: #{transformer_forward.9} parent=46 // loop_header_branch
                  %224 = sbr.rel (%p222) target = $region61
                $region58: #{transformer_forward.9} parent=46 // loop_body
                  %v228 = vld [vmem:[%s226] sm:$0xf]
                  %229 = vst [vmem:[%s227] sm:$0xf] %v228
                  %v230 = vld [vmem:[%s226 + $0x8] sm:$0xf]
                  %231 = vst [vmem:[%s227 + $0x4] sm:$0xf] %v230
                  %v232 = vld [vmem:[%s226 + $0x10] sm:$0xf]
                  %233 = vst [vmem:[%s227 + $0x8] sm:$0xf] %v232
                  %v234 = vld [vmem:[%s226 + $0x18] sm:$0xf]
                  %235 = vst [vmem:[%s227 + $0xc] sm:$0xf] %v234
                  %v236 = vld [vmem:[%s226 + $0x20] sm:$0xf]
                  %237 = vst [vmem:[%s227 + $0x10] sm:$0xf] %v236
                  %v238 = vld [vmem:[%s226 + $0x28] sm:$0xf]
                  %239 = vst [vmem:[%s227 + $0x14] sm:$0xf] %v238
                  %v240 = vld [vmem:[%s226 + $0x30] sm:$0xf]
                  %241 = vst [vmem:[%s227 + $0x18] sm:$0xf] %v240
                  %v242 = vld [vmem:[%s226 + $0x38] sm:$0xf]
                  %243 = vst [vmem:[%s227 + $0x1c] sm:$0xf] %v242
                  %v244 = vld [vmem:[%s226 + $0x40] sm:$0xf]
                  %245 = vst [vmem:[%s227 + $0x20] sm:$0xf] %v244
                  %v246 = vld [vmem:[%s226 + $0x48] sm:$0xf]
                  %247 = vst [vmem:[%s227 + $0x24] sm:$0xf] %v246
                  %v248 = vld [vmem:[%s226 + $0x50] sm:$0xf]
                  %249 = vst [vmem:[%s227 + $0x28] sm:$0xf] %v248
                  %v250 = vld [vmem:[%s226 + $0x58] sm:$0xf]
                  %251 = vst [vmem:[%s227 + $0x2c] sm:$0xf] %v250
                  %v252 = vld [vmem:[%s226 + $0x60] sm:$0xf]
                  %253 = vst [vmem:[%s227 + $0x30] sm:$0xf] %v252
                  %v254 = vld [vmem:[%s226 + $0x68] sm:$0xf]
                  %255 = vst [vmem:[%s227 + $0x34] sm:$0xf] %v254
                  %v256 = vld [vmem:[%s226 + $0x70] sm:$0xf]
                  %257 = vst [vmem:[%s227 + $0x38] sm:$0xf] %v256
                  %v258 = vld [vmem:[%s226 + $0x78] sm:$0xf]
                  %259 = vst [vmem:[%s227 + $0x3c] sm:$0xf] %v258
                $region59: #{transformer_forward.9} parent=46 // loop_footer
                  %s225 = sadd.s32 1, %s221
                $region60: #{transformer_forward.9} parent=46 // loop_footer_branch
                  %220 = sbr.rel target = $region56
                $region61: #{transformer_forward.9} parent=46 // loop_exit
                  _
              $region47: #{transformer_forward.9} parent=31 // pred_fallthru
                _
            $region32: #{transformer_forward.9} parent=27 // pred_fallthru
              _
            // Predicated region
            $region33: #{transformer_forward.9} parent=27 // pred_check
              _
            $region34: #{transformer_forward.9} parent=27 // pred_check_branch
              %167 = sbr.rel (0) target = $region36
            $region35: #{transformer_forward.9} parent=27 // pred_region
              loop: start=0, step=1, limit=1
              $region37: #{transformer_forward.9} parent=35 // loop_pre_header
                _
              $region38: #{transformer_forward.9} parent=35 // loop_header
                %s170 = sphi 0, %s174
                %p171 = scmp.ge.s32.totalorder %s170, 1
                %s175 = sphi %s161, %s161
                %s176 = sphi %s159, %s159
              $region39: #{transformer_forward.9} parent=35 // loop_header_branch
                %173 = sbr.rel (%p171) target = $region43
              $region40: #{transformer_forward.9} parent=35 // loop_body
                %v177 = vld [vmem:[%s175] sm:$0xf]
                %178 = vst [vmem:[%s176] sm:$0xf] %v177
                %v179 = vld [vmem:[%s175 + $0x8] sm:$0xf]
                %180 = vst [vmem:[%s176 + $0x4] sm:$0xf] %v179
                %v181 = vld [vmem:[%s175 + $0x10] sm:$0xf]
                %182 = vst [vmem:[%s176 + $0x8] sm:$0xf] %v181
                %v183 = vld [vmem:[%s175 + $0x18] sm:$0xf]
                %184 = vst [vmem:[%s176 + $0xc] sm:$0xf] %v183
                %v185 = vld [vmem:[%s175 + $0x20] sm:$0xf]
                %186 = vst [vmem:[%s176 + $0x10] sm:$0xf] %v185
                %v187 = vld [vmem:[%s175 + $0x28] sm:$0xf]
                %188 = vst [vmem:[%s176 + $0x14] sm:$0xf] %v187
                %v189 = vld [vmem:[%s175 + $0x30] sm:$0xf]
                %190 = vst [vmem:[%s176 + $0x18] sm:$0xf] %v189
                %v191 = vld [vmem:[%s175 + $0x38] sm:$0xf]
                %192 = vst [vmem:[%s176 + $0x1c] sm:$0xf] %v191
                %v193 = vld [vmem:[%s175 + $0x40] sm:$0xf]
                %194 = vst [vmem:[%s176 + $0x20] sm:$0xf] %v193
                %v195 = vld [vmem:[%s175 + $0x48] sm:$0xf]
                %196 = vst [vmem:[%s176 + $0x24] sm:$0xf] %v195
                %v197 = vld [vmem:[%s175 + $0x50] sm:$0xf]
                %198 = vst [vmem:[%s176 + $0x28] sm:$0xf] %v197
                %v199 = vld [vmem:[%s175 + $0x58] sm:$0xf]
                %200 = vst [vmem:[%s176 + $0x2c] sm:$0xf] %v199
                %v201 = vld [vmem:[%s175 + $0x60] sm:$0xf]
                %202 = vst [vmem:[%s176 + $0x30] sm:$0xf] %v201
                %v203 = vld [vmem:[%s175 + $0x68] sm:$0xf]
                %204 = vst [vmem:[%s176 + $0x34] sm:$0xf] %v203
                %v205 = vld [vmem:[%s175 + $0x70] sm:$0xf]
                %206 = vst [vmem:[%s176 + $0x38] sm:$0xf] %v205
                %v207 = vld [vmem:[%s175 + $0x78] sm:$0xf]
                %208 = vst [vmem:[%s176 + $0x3c] sm:$0xf] %v207
              $region41: #{transformer_forward.9} parent=35 // loop_footer
                %s174 = sadd.s32 1, %s170
              $region42: #{transformer_forward.9} parent=35 // loop_footer_branch
                %169 = sbr.rel target = $region38
              $region43: #{transformer_forward.9} parent=35 // loop_exit
                _
            $region36: #{transformer_forward.9} parent=27 // pred_fallthru
              _
          $region28: #{transformer_forward.9} parent=23 // pred_fallthru
            _
          %260 = vnop
        $region24: #{transformer_forward.9} parent=15 // pred_fallthru
          _
        // Predicated region
        $region62: #{transformer_forward.9} parent=15 // pred_check
          %p261 = pneg %p93
        $region63: #{transformer_forward.9} parent=15 // pred_check_branch
          %263 = sbr.rel (%p261) target = $region65
        $region64: #{transformer_forward.9} parent=15 // pred_region
          %p264 = scmp.lt.s32.totalorder %s17, 1
          %s265 = scalar_select %p264, %s17, 1
          %s266 = scalar_lea.vmem %s2, %s265
        $region65: #{transformer_forward.9} parent=15 // pred_fallthru
          _
      $region16: #{transformer_forward.9} parent=5 // pred_fallthru
        _
      %p267 = scmp.le.s32.totalorder 1, %s9
      %p268 = scmp.lt.s32.totalorder %s9, 5
      %p269 = pnand %p267, %p268
      %p270 = pneg %p269
      // Predicated region
      $region66: #{transformer_forward.9} parent=5 // pred_check
        _
      $region67: #{transformer_forward.9} parent=5 // pred_check_branch
        %272 = sbr.rel (%p269) target = $region69
      $region68: #{transformer_forward.9} parent=5 // pred_region
        %s273 = ssub.s32 %s9, 1
        %s274 = sand.u32 %s60, 1
        %s275 = sand.u32 %s60, 1
        %s276 = smul.addr %s275, 64
        %s277 = scalar_lea.vmem [#allocation2], %s276
        // Predicated region
        $region70: #{transformer_forward.9} parent=68 // pred_check
          %p278 = pneg %p73
        $region71: #{transformer_forward.9} parent=68 // pred_check_branch
          %280 = sbr.rel (%p278) target = $region73
        $region72: #{transformer_forward.9} parent=68 // pred_region
          _
        $region73: #{transformer_forward.9} parent=68 // pred_fallthru
          _
        %p281 = scmp.lt.s32.totalorder %s18, 1
        %s282 = scalar_select %p281, %s18, 1
        %s283 = smul.addr %s282, 8
        %s284 = scalar_lea.vmem %s0, %s283
        %p285 = pneg %p47
        %p286 = pneg %p44
        %s287 = sand.u32 %s60, 1
        %s288 = sand.u32 %s60, 1
        %s289 = smul.addr %s288, 64
        %s290 = scalar_lea.vmem [#allocation2], %s289
        %p291 = pneg %p73
        %p292 = pneg %p70
        %p293 = scmp.lt.s32.totalorder %s19, 1
        %s294 = scalar_select %p293, %s19, 1
        %s295 = scalar_lea.vmem %s2, %s294
        %p296 = pneg %p99
        %p297 = pneg %p96
        %p298 = pneg %p127
        %p299 = pneg %p124
        %p300 = scmp.lt.s32.totalorder %s18, 1
        %s301 = scalar_select %p300, %s18, 1
        %p302 = scmp.lt.s32.totalorder %s19, 1
        %s303 = scalar_select %p302, %s19, 1
        %s304 = smul.addr %s301, 2
        %s305 = sadd.s32 %s303, %s304
        %s306 = smul.addr %s305, 8
        %s307 = scalar_lea.vmem %s3, %s306
        %p308 = scmp.lt.s32.totalorder %s18, 1
        %s309 = scalar_select %p308, %s18, 1
        %s310 = smul.addr %s309, 8
        %s311 = scalar_lea.vmem %s0, %s310
        %p312 = scmp.lt.s32.totalorder %s19, 1
        %s313 = scalar_select %p312, %s19, 1
        %s314 = scalar_lea.vmem %s2, %s313
        %p315 = scmp.lt.s32.totalorder %s18, 1
        %s316 = scalar_select %p315, %s18, 1
        %p317 = scmp.lt.s32.totalorder %s19, 1
        %s318 = scalar_select %p317, %s19, 1
        %s319 = smul.addr %s316, 2
        %s320 = sadd.s32 %s318, %s319
        %s321 = smul.addr %s320, 8
        %s322 = scalar_lea.vmem %s3, %s321
        %v324 = vld [vmem:[%s311] sm:$0xff]
        %v325 = vpack.c.bf16 %v324, %v324
        %v326 = vld [vmem:[%s277] sm:$0xf]
        %v327 = vld [vmem:[%s277 + $0x4] sm:$0xf]
        %v328 = vld [vmem:[%s277 + $0x8] sm:$0xf]
        %v329 = vld [vmem:[%s277 + $0xc] sm:$0xf]
        %v330 = vld [vmem:[%s277 + $0x10] sm:$0xf]
        %v331 = vld [vmem:[%s277 + $0x14] sm:$0xf]
        %v332 = vld [vmem:[%s277 + $0x18] sm:$0xf]
        %v333 = vld [vmem:[%s277 + $0x1c] sm:$0xf]
        %v334 = vld [vmem:[%s277 + $0x20] sm:$0xf]
        %v335 = vld [vmem:[%s277 + $0x24] sm:$0xf]
        %v336 = vld [vmem:[%s277 + $0x28] sm:$0xf]
        %v337 = vld [vmem:[%s277 + $0x2c] sm:$0xf]
        %v338 = vld [vmem:[%s277 + $0x30] sm:$0xf]
        %v339 = vld [vmem:[%s277 + $0x34] sm:$0xf]
        %v340 = vld [vmem:[%s277 + $0x38] sm:$0xf]
        %v341 = vld [vmem:[%s277 + $0x3c] sm:$0xf]
        %v342 = vld [vmem:[%s314] sm:$0x1]
        %v344 = vlaneseq
        %v345 = vshrl.u32 %v344, 7
        %v346 = vsub.s32 0, %v345
        %v347 = vrot.slane %v342, %v346
        %v365 = vunpack.c.l.b16 %v326
        %v366 = vunpack.c.l.b16 %v327
        %v367 = vunpack.c.l.b16 %v328
        %v368 = vunpack.c.l.b16 %v329
        %v369 = vunpack.c.l.b16 %v330
        %v370 = vunpack.c.l.b16 %v331
        %v371 = vunpack.c.l.b16 %v332
        %v372 = vunpack.c.l.b16 %v333
        %v373 = vunpack.c.l.b16 %v334
        %v374 = vunpack.c.l.b16 %v335
        %v375 = vunpack.c.l.b16 %v336
        %v376 = vunpack.c.l.b16 %v337
        %v377 = vunpack.c.l.b16 %v338
        %v378 = vunpack.c.l.b16 %v339
        %v379 = vunpack.c.l.b16 %v340
        %v380 = vunpack.c.l.b16 %v341
        %v381 = vpack.c.b16 %v366, %v365
        %v382 = vpack.c.b16 %v368, %v367
        %v383 = vpack.c.b16 %v370, %v369
        %v384 = vpack.c.b16 %v372, %v371
        %v385 = vpack.c.b16 %v374, %v373
        %v386 = vpack.c.b16 %v376, %v375
        %v387 = vpack.c.b16 %v378, %v377
        %v388 = vpack.c.b16 %v380, %v379
        %397 = vmatprep.subr.bf16.mxu0 0
        %398 = vmatpush1.bf16.msra.mxu0 %v381
        %399 = vmatprep.subr.bf16.mxu0 0
        %400 = vmatpush1.bf16.msra.mxu0 %v382
        %401 = vmatprep.subr.bf16.mxu0 0
        %402 = vmatpush1.bf16.msra.mxu0 %v383
        %403 = vmatprep.subr.bf16.mxu0 0
        %404 = vmatpush1.bf16.msra.mxu0 %v384
        %405 = vmatprep.subr.bf16.mxu0 0
        %406 = vmatpush1.bf16.msra.mxu0 %v385
        %407 = vmatprep.subr.bf16.mxu0 0
        %408 = vmatpush1.bf16.msra.mxu0 %v386
        %409 = vmatprep.subr.bf16.mxu0 0
        %410 = vmatpush1.bf16.msra.mxu0 %v387
        %411 = vmatprep.subr.bf16.mxu0 0
        %412 = vmatpush1.bf16.msra.mxu0 %v388
        %413 = vmatprep.subr.bf16.mxu0 0
        %414 = vmatpush1.bf16.msra.mxu0 0
        %415 = vmatprep.subr.bf16.mxu0 0
        %416 = vmatpush1.bf16.msra.mxu0 0
        %417 = vmatprep.subr.bf16.mxu0 0
        %418 = vmatpush1.bf16.msra.mxu0 0
        %419 = vmatprep.subr.bf16.mxu0 0
        %420 = vmatpush1.bf16.msra.mxu0 0
        %421 = vmatprep.subr.bf16.mxu0 0
        %422 = vmatpush1.bf16.msra.mxu0 0
        %423 = vmatprep.subr.bf16.mxu0 0
        %424 = vmatpush1.bf16.msra.mxu0 0
        %425 = vmatprep.subr.bf16.mxu0 0
        %426 = vmatpush1.bf16.msra.mxu0 0
        %427 = vmatprep.subr.bf16.mxu0 0
        %428 = vmatpush1.bf16.msra.mxu0 0
        %429 = vmatprep.mubr.bf16.mxu0 0
        %430 = vmatmul.mubr.bf16.gmra.mrb[0].mxu0 %v325
        %v431 = vpop.f32.mrb[0].mxu0
        %v432 = vadd.f32 %v347, %v431
        %v433 = vpop.f32.mrb[0].mxu0
        %v434 = vpop.f32.mrb[0].mxu0
        %v435 = vpop.f32.mrb[0].mxu0
        %436 = vdwg.mxu0
        %437 = vst [vmem:[%s322] sm:$0xff] %v432
        %p438 = scmp.lt.s32.totalorder %s18, 1
        %s439 = scalar_select %p438, %s18, 1
        %p440 = scmp.lt.s32.totalorder %s19, 1
        %s441 = scalar_select %p440, %s19, 1
        %s442 = smul.addr %s439, 2
        %s443 = sadd.s32 %s441, %s442
        %s444 = smul.addr %s443, 8
        %s445 = scalar_lea.vmem %s3, %s444
        // Predicated region
        $region74: #{transformer_forward.9} parent=68 // pred_check
          %p446 = pneg %p124
        $region75: #{transformer_forward.9} parent=68 // pred_check_branch
          %448 = sbr.rel (%p446) target = $region77
        $region76: #{transformer_forward.9} parent=68 // pred_region
          _
        $region77: #{transformer_forward.9} parent=68 // pred_fallthru
          _
      $region69: #{transformer_forward.9} parent=5 // pred_fallthru
        _
      %p449 = scmp.le.s32.totalorder 2, %s9
      // Predicated region
      $region78: #{transformer_forward.9} parent=5 // pred_check
        %p450 = pneg %p449
      $region79: #{transformer_forward.9} parent=5 // pred_check_branch
        %452 = sbr.rel (%p450) target = $region81
      $region80: #{transformer_forward.9} parent=5 // pred_region
        %s453 = ssub.s32 %s9, 2
        // Predicated region
        $region82: #{transformer_forward.9} parent=80 // pred_check
          %p454 = pneg %p130
        $region83: #{transformer_forward.9} parent=80 // pred_check_branch
          %456 = sbr.rel (%p454) target = $region85
        $region84: #{transformer_forward.9} parent=80 // pred_region
          %p457 = scmp.lt.s32.totalorder %s20, 1
          %s458 = scalar_select %p457, %s20, 1
          %p459 = scmp.lt.s32.totalorder %s21, 1
          %s460 = scalar_select %p459, %s21, 1
          %s461 = smul.addr %s458, 2
          %s462 = sadd.s32 %s460, %s461
          %s463 = smul.addr %s462, 8
          %s464 = scalar_lea.vmem %s3, %s463
        $region85: #{transformer_forward.9} parent=80 // pred_fallthru
          _
      $region81: #{transformer_forward.9} parent=5 // pred_fallthru
        _
    $region6: #{transformer_forward.9} parent=1 // loop_footer
      %s13 = sadd.s32 1, %s9
    $region7: #{transformer_forward.9} parent=1 // loop_footer_branch
      %8 = sbr.rel target = $region3
    $region8: #{transformer_forward.9} parent=1 // loop_exit
      _

// kernel: transformer_forward.6
$region0: #{transformer_forward.6}
  #allocation0 [shape = 'u32[]', space=smem, size = 0x4, offset = 0x4, fixed_abs, tag = 'smem constant byte address 0x4 - core index']
  #allocation1 [shape = 'u32[144,128]{1,0:T(1,128)}', space=vmem, size = 0x12000, scoped, tag = 'internal scratch']
  %s0 = inlined_call_operand.vmem [shape: f32[16,128], index: 0, kind: input, shape index: {}]
  %s1 = inlined_call_operand.vmem [shape: bf16[128,256], index: 1, kind: input, shape index: {}]
  %s2 = inlined_call_operand.vmem [shape: f32[1,256], index: 2, kind: input, shape index: {}]
  %s3 = inlined_call_operand.vmem [shape: bf16[256,128], index: 3, kind: input, shape index: {}]
  %s4 = inlined_call_operand.vmem [shape: f32[1,128], index: 4, kind: input, shape index: {}]
  %s5 = inlined_call_operand.vmem [shape: f32[1,128], index: 5, kind: input, shape index: {}]
  %s6 = inlined_call_operand.vmem [shape: f32[1,128], index: 6, kind: input, shape index: {}]
  %s7 = inlined_call_operand.vmem [shape: f32[16,128], index: 7, kind: output, shape index: {}]
  %s8 = sld [smem:[#allocation0]]
  $region61: #{transformer_forward.6} parent=0
    _
  %s10 = ssub.s32 1, %s8
  %s11 = scalar_select 0, %s10, %s8
  loop: start=0, step=1, limit=4
  $region2: #{transformer_forward.6} parent=0 // loop_pre_header
    _
  $region3: #{transformer_forward.6} parent=0 // loop_header
    %s13 = sphi 0, %s17
    %p14 = scmp.ge.s32.totalorder %s13, 4
    %s23 = sphi 0, %s25
    %s26 = sphi 0, %s23
    %s27 = sphi 0, %s26
    %s43 = sphi 0, %s27
    %s47 = sphi 0, %s47
    %s49 = sphi 0, %s47
    %s50 = sphi 0, %s49
    %s64 = sphi 0, %s50
    %s68 = sphi 0, %s68
    %s70 = sphi 0, %s68
    %s71 = sphi 0, %s70
    %s85 = sphi 0, %s71
    %s89 = sphi 0, %s89
    %s91 = sphi 0, %s89
    %s92 = sphi 0, %s91
    %s106 = sphi 0, %s92
    %s110 = sphi 0, %s110
    %s112 = sphi 0, %s110
    %s113 = sphi 0, %s112
    %s127 = sphi 0, %s113
    %s131 = sphi 0, %s131
    %s133 = sphi 0, %s131
    %s134 = sphi 0, %s133
    %s148 = sphi 0, %s134
    %s152 = sphi 0, %s152
    %s154 = sphi 0, %s152
    %s155 = sphi 0, %s154
    %s169 = sphi 0, %s155
    %s175 = sphi 0, %s177
    %s178 = sphi 0, %s175
    %s179 = sphi 0, %s178
    %s195 = sphi 0, %s179
  $region4: #{transformer_forward.6} parent=0 // loop_header_branch
    %16 = sbr.rel (%p14) target = $region8
  $region5: #{transformer_forward.6} parent=0 // loop_body
    %s18 = ssub.s32 %s13, 1
    %s19 = ssub.s32 %s13, 2
    %s20 = sadd.s32 %s13, 1
    %s21 = ssub.s32 %s13, %s20
    %p22 = scmp.eq.s32.totalorder %s21, 0
    %s24 = sadd.s32 %s23, 1
    %s25 = scalar_select %p22, %s23, %s24
    %p28 = pneg %p22
    %p29 = scmp.eq.s32.totalorder %s13, 1
    %p30 = por %p28, %p29
    %p31 = scmp.ne.s32.totalorder %s23, %s26
    %p32 = scmp.eq.s32.totalorder %s13, 0
    %p33 = por %p31, %p32
    %p34 = scmp.ne.s32.totalorder %s23, %s26
    %p35 = scmp.eq.s32.totalorder %s18, 1
    %p36 = por %p34, %p35
    %p37 = scmp.ne.s32.totalorder %s26, %s27
    %p38 = scmp.eq.s32.totalorder %s18, 0
    %p39 = por %p37, %p38
    %p40 = scmp.ne.s32.totalorder %s26, %s27
    %p41 = scmp.eq.s32.totalorder %s19, 1
    %p42 = por %p40, %p41
    %p44 = scmp.ne.s32.totalorder %s27, %s43
    %p45 = scmp.eq.s32.totalorder %s19, 0
    %p46 = por %p44, %p45
    %s48 = sadd.s32 %s47, 1
    %p51 = scmp.eq.s32.totalorder %s13, 1
    %p52 = scmp.ne.s32.totalorder %s47, %s49
    %p53 = scmp.eq.s32.totalorder %s13, 0
    %p54 = por %p52, %p53
    %p55 = scmp.ne.s32.totalorder %s47, %s49
    %p56 = scmp.eq.s32.totalorder %s18, 1
    %p57 = por %p55, %p56
    %p58 = scmp.ne.s32.totalorder %s49, %s50
    %p59 = scmp.eq.s32.totalorder %s18, 0
    %p60 = por %p58, %p59
    %p61 = scmp.ne.s32.totalorder %s49, %s50
    %p62 = scmp.eq.s32.totalorder %s19, 1
    %p63 = por %p61, %p62
    %p65 = scmp.ne.s32.totalorder %s50, %s64
    %p66 = scmp.eq.s32.totalorder %s19, 0
    %p67 = por %p65, %p66
    %s69 = sadd.s32 %s68, 1
    %p72 = scmp.eq.s32.totalorder %s13, 1
    %p73 = scmp.ne.s32.totalorder %s68, %s70
    %p74 = scmp.eq.s32.totalorder %s13, 0
    %p75 = por %p73, %p74
    %p76 = scmp.ne.s32.totalorder %s68, %s70
    %p77 = scmp.eq.s32.totalorder %s18, 1
    %p78 = por %p76, %p77
    %p79 = scmp.ne.s32.totalorder %s70, %s71
    %p80 = scmp.eq.s32.totalorder %s18, 0
    %p81 = por %p79, %p80
    %p82 = scmp.ne.s32.totalorder %s70, %s71
    %p83 = scmp.eq.s32.totalorder %s19, 1
    %p84 = por %p82, %p83
    %p86 = scmp.ne.s32.totalorder %s71, %s85
    %p87 = scmp.eq.s32.totalorder %s19, 0
    %p88 = por %p86, %p87
    %s90 = sadd.s32 %s89, 1
    %p93 = scmp.eq.s32.totalorder %s13, 1
    %p94 = scmp.ne.s32.totalorder %s89, %s91
    %p95 = scmp.eq.s32.totalorder %s13, 0
    %p96 = por %p94, %p95
    %p97 = scmp.ne.s32.totalorder %s89, %s91
    %p98 = scmp.eq.s32.totalorder %s18, 1
    %p99 = por %p97, %p98
    %p100 = scmp.ne.s32.totalorder %s91, %s92
    %p101 = scmp.eq.s32.totalorder %s18, 0
    %p102 = por %p100, %p101
    %p103 = scmp.ne.s32.totalorder %s91, %s92
    %p104 = scmp.eq.s32.totalorder %s19, 1
    %p105 = por %p103, %p104
    %p107 = scmp.ne.s32.totalorder %s92, %s106
    %p108 = scmp.eq.s32.totalorder %s19, 0
    %p109 = por %p107, %p108
    %s111 = sadd.s32 %s110, 1
    %p114 = scmp.eq.s32.totalorder %s13, 1
    %p115 = scmp.ne.s32.totalorder %s110, %s112
    %p116 = scmp.eq.s32.totalorder %s13, 0
    %p117 = por %p115, %p116
    %p118 = scmp.ne.s32.totalorder %s110, %s112
    %p119 = scmp.eq.s32.totalorder %s18, 1
    %p120 = por %p118, %p119
    %p121 = scmp.ne.s32.totalorder %s112, %s113
    %p122 = scmp.eq.s32.totalorder %s18, 0
    %p123 = por %p121, %p122
    %p124 = scmp.ne.s32.totalorder %s112, %s113
    %p125 = scmp.eq.s32.totalorder %s19, 1
    %p126 = por %p124, %p125
    %p128 = scmp.ne.s32.totalorder %s113, %s127
    %p129 = scmp.eq.s32.totalorder %s19, 0
    %p130 = por %p128, %p129
    %s132 = sadd.s32 %s131, 1
    %p135 = scmp.eq.s32.totalorder %s13, 1
    %p136 = scmp.ne.s32.totalorder %s131, %s133
    %p137 = scmp.eq.s32.totalorder %s13, 0
    %p138 = por %p136, %p137
    %p139 = scmp.ne.s32.totalorder %s131, %s133
    %p140 = scmp.eq.s32.totalorder %s18, 1
    %p141 = por %p139, %p140
    %p142 = scmp.ne.s32.totalorder %s133, %s134
    %p143 = scmp.eq.s32.totalorder %s18, 0
    %p144 = por %p142, %p143
    %p145 = scmp.ne.s32.totalorder %s133, %s134
    %p146 = scmp.eq.s32.totalorder %s19, 1
    %p147 = por %p145, %p146
    %p149 = scmp.ne.s32.totalorder %s134, %s148
    %p150 = scmp.eq.s32.totalorder %s19, 0
    %p151 = por %p149, %p150
    %s153 = sadd.s32 %s152, 1
    %p156 = scmp.eq.s32.totalorder %s13, 1
    %p157 = scmp.ne.s32.totalorder %s152, %s154
    %p158 = scmp.eq.s32.totalorder %s13, 0
    %p159 = por %p157, %p158
    %p160 = scmp.ne.s32.totalorder %s152, %s154
    %p161 = scmp.eq.s32.totalorder %s18, 1
    %p162 = por %p160, %p161
    %p163 = scmp.ne.s32.totalorder %s154, %s155
    %p164 = scmp.eq.s32.totalorder %s18, 0
    %p165 = por %p163, %p164
    %p166 = scmp.ne.s32.totalorder %s154, %s155
    %p167 = scmp.eq.s32.totalorder %s19, 1
    %p168 = por %p166, %p167
    %p170 = scmp.ne.s32.totalorder %s155, %s169
    %p171 = scmp.eq.s32.totalorder %s19, 0
    %p172 = por %p170, %p171
    %s173 = ssub.s32 %s13, %s20
    %p174 = scmp.eq.s32.totalorder %s173, 0
    %s176 = sadd.s32 %s175, 1
    %s177 = scalar_select %p174, %s175, %s176
    %p180 = pneg %p174
    %p181 = scmp.eq.s32.totalorder %s13, 1
    %p182 = por %p180, %p181
    %p183 = scmp.ne.s32.totalorder %s175, %s178
    %p184 = scmp.eq.s32.totalorder %s13, 0
    %p185 = por %p183, %p184
    %p186 = scmp.ne.s32.totalorder %s175, %s178
    %p187 = scmp.eq.s32.totalorder %s18, 1
    %p188 = por %p186, %p187
    %p189 = scmp.ne.s32.totalorder %s178, %s179
    %p190 = scmp.eq.s32.totalorder %s18, 0
    %p191 = por %p189, %p190
    %p192 = scmp.ne.s32.totalorder %s178, %s179
    %p193 = scmp.eq.s32.totalorder %s19, 1
    %p194 = por %p192, %p193
    %p196 = scmp.ne.s32.totalorder %s179, %s195
    %p197 = scmp.eq.s32.totalorder %s19, 0
    %p198 = por %p196, %p197
    %p199 = scmp.le.s32.totalorder 1, %s13
    %p200 = scmp.lt.s32.totalorder %s13, 3
    %p201 = pnand %p199, %p200
    %p202 = pneg %p201
    // Predicated region
    $region9: #{transformer_forward.6} parent=5 // pred_check
      _
    $region10: #{transformer_forward.6} parent=5 // pred_check_branch
      %204 = sbr.rel (%p201) target = $region12
    $region11: #{transformer_forward.6} parent=5 // pred_region
      %s205 = ssub.s32 %s13, 1
      // Predicated region
      $region13: #{transformer_forward.6} parent=11 // pred_check
        %p206 = pneg %p60
      $region14: #{transformer_forward.6} parent=11 // pred_check_branch
        %208 = sbr.rel (%p206) target = $region16
      $region15: #{transformer_forward.6} parent=11 // pred_region
        _
      $region16: #{transformer_forward.6} parent=11 // pred_fallthru
        _
      // Predicated region
      $region17: #{transformer_forward.6} parent=11 // pred_check
        %p209 = pneg %p81
      $region18: #{transformer_forward.6} parent=11 // pred_check_branch
        %211 = sbr.rel (%p209) target = $region20
      $region19: #{transformer_forward.6} parent=11 // pred_region
        _
      $region20: #{transformer_forward.6} parent=11 // pred_fallthru
        _
      // Predicated region
      $region21: #{transformer_forward.6} parent=11 // pred_check
        %p212 = pneg %p102
      $region22: #{transformer_forward.6} parent=11 // pred_check_branch
        %214 = sbr.rel (%p212) target = $region24
      $region23: #{transformer_forward.6} parent=11 // pred_region
        _
      $region24: #{transformer_forward.6} parent=11 // pred_fallthru
        _
      // Predicated region
      $region25: #{transformer_forward.6} parent=11 // pred_check
        %p215 = pneg %p123
      $region26: #{transformer_forward.6} parent=11 // pred_check_branch
        %217 = sbr.rel (%p215) target = $region28
      $region27: #{transformer_forward.6} parent=11 // pred_region
        _
      $region28: #{transformer_forward.6} parent=11 // pred_fallthru
        _
      // Predicated region
      $region29: #{transformer_forward.6} parent=11 // pred_check
        %p218 = pneg %p144
      $region30: #{transformer_forward.6} parent=11 // pred_check_branch
        %220 = sbr.rel (%p218) target = $region32
      $region31: #{transformer_forward.6} parent=11 // pred_region
        _
      $region32: #{transformer_forward.6} parent=11 // pred_fallthru
        _
      // Predicated region
      $region33: #{transformer_forward.6} parent=11 // pred_check
        %p221 = pneg %p165
      $region34: #{transformer_forward.6} parent=11 // pred_check_branch
        %223 = sbr.rel (%p221) target = $region36
      $region35: #{transformer_forward.6} parent=11 // pred_region
        _
      $region36: #{transformer_forward.6} parent=11 // pred_fallthru
        _
    $region12: #{transformer_forward.6} parent=5 // pred_fallthru
      _
    %p224 = scmp.lt.s32.totalorder %s13, 2
    // Predicated region
    $region37: #{transformer_forward.6} parent=5 // pred_check
      %p225 = pneg %p224
    $region38: #{transformer_forward.6} parent=5 // pred_check_branch
      %227 = sbr.rel (%p225) target = $region40
    $region39: #{transformer_forward.6} parent=5 // pred_region
      // Predicated region
      $region41: #{transformer_forward.6} parent=39 // pred_check
        %p228 = pneg %p33
      $region42: #{transformer_forward.6} parent=39 // pred_check_branch
        %230 = sbr.rel (%p228) target = $region44
      $region43: #{transformer_forward.6} parent=39 // pred_region
        %p231 = scmp.lt.s32.totalorder %s13, 1
        %s232 = scalar_select %p231, %s13, 1
        %s233 = smul.addr %s232, 8
        %s234 = scalar_lea.vmem %s0, %s233
      $region44: #{transformer_forward.6} parent=39 // pred_fallthru
        _
    $region40: #{transformer_forward.6} parent=5 // pred_fallthru
      _
    %p235 = scmp.le.s32.totalorder 1, %s13
    %p236 = scmp.lt.s32.totalorder %s13, 3
    %p237 = pnand %p235, %p236
    %p238 = pneg %p237
    // Predicated region
    $region45: #{transformer_forward.6} parent=5 // pred_check
      _
    $region46: #{transformer_forward.6} parent=5 // pred_check_branch
      %240 = sbr.rel (%p237) target = $region48
    $region47: #{transformer_forward.6} parent=5 // pred_region
      %s241 = ssub.s32 %s13, 1
      %p242 = scmp.lt.s32.totalorder %s18, 1
      %s243 = scalar_select %p242, %s18, 1
      %s244 = smul.addr %s243, 8
      %s245 = scalar_lea.vmem %s0, %s244
      %p246 = pneg %p39
      %p247 = pneg %p36
      %p248 = pneg %p60
      %p249 = pneg %p57
      %p250 = pneg %p81
      %p251 = pneg %p78
      %p252 = pneg %p102
      %p253 = pneg %p99
      %p254 = pneg %p123
      %p255 = pneg %p120
      %p256 = pneg %p144
      %p257 = pneg %p141
      %p258 = pneg %p165
      %p259 = pneg %p162
      %p260 = pneg %p191
      %p261 = pneg %p188
      %p262 = scmp.lt.s32.totalorder %s18, 1
      %s263 = scalar_select %p262, %s18, 1
      %s264 = smul.addr %s263, 8
      %s265 = scalar_lea.vmem %s7, %s264
      %p266 = scmp.lt.s32.totalorder %s18, 1
      %s267 = scalar_select %p266, %s18, 1
      %s268 = smul.addr %s267, 8
      %s269 = scalar_lea.vmem %s0, %s268
      %p270 = scmp.lt.s32.totalorder %s18, 1
      %s271 = scalar_select %p270, %s18, 1
      %s272 = smul.addr %s271, 8
      %s273 = scalar_lea.vmem %s7, %s272
      %v275 = vld [vmem:[%s269] sm:$0xff]
      %v276 = vpack.c.bf16 %v275, %v275
      %v277 = vld [vmem:[%s1] sm:$0xff]
      %v278 = vld [vmem:[%s1 + $0x8] sm:$0xff]
      %v279 = vld [vmem:[%s1 + $0x10] sm:$0xff]
      %v280 = vld [vmem:[%s1 + $0x18] sm:$0xff]
      %v281 = vld [vmem:[%s1 + $0x20] sm:$0xff]
      %v282 = vld [vmem:[%s1 + $0x28] sm:$0xff]
      %v283 = vld [vmem:[%s1 + $0x30] sm:$0xff]
      %v284 = vld [vmem:[%s1 + $0x38] sm:$0xff]
      %v285 = vld [vmem:[%s1 + $0x40] sm:$0xff]
      %v286 = vld [vmem:[%s1 + $0x48] sm:$0xff]
      %v287 = vld [vmem:[%s1 + $0x50] sm:$0xff]
      %v288 = vld [vmem:[%s1 + $0x58] sm:$0xff]
      %v289 = vld [vmem:[%s1 + $0x60] sm:$0xff]
      %v290 = vld [vmem:[%s1 + $0x68] sm:$0xff]
      %v291 = vld [vmem:[%s1 + $0x70] sm:$0xff]
      %v292 = vld [vmem:[%s1 + $0x78] sm:$0xff]
      %v293 = vld [vmem:[%s2] sm:$0x3]
      %v295 = vlaneseq
      %v296 = vshrl.u32 %v295, 7
      %v297 = vsub.s32 0, %v296
      %v298 = vrot.slane %v293, %v297
      %v299 = vlaneseq
      %v300 = vshrl.u32 %v299, 7
      %v301 = vsub.s32 1, %v300
      %v302 = vrot.slane %v293, %v301
      %v321 = vunpack.c.l.b16 %v277
      %v322 = vunpack.c.h.b16 %v277
      %v323 = vunpack.c.l.b16 %v278
      %v324 = vunpack.c.h.b16 %v278
      %v325 = vunpack.c.l.b16 %v279
      %v326 = vunpack.c.h.b16 %v279
      %v327 = vunpack.c.l.b16 %v280
      %v328 = vunpack.c.h.b16 %v280
      %v329 = vunpack.c.l.b16 %v281
      %v330 = vunpack.c.h.b16 %v281
      %v331 = vunpack.c.l.b16 %v282
      %v332 = vunpack.c.h.b16 %v282
      %v333 = vunpack.c.l.b16 %v283
      %v334 = vunpack.c.h.b16 %v283
      %v335 = vunpack.c.l.b16 %v284
      %v336 = vunpack.c.h.b16 %v284
      %v337 = vunpack.c.l.b16 %v285
      %v338 = vunpack.c.h.b16 %v285
      %v339 = vunpack.c.l.b16 %v286
      %v340 = vunpack.c.h.b16 %v286
      %v341 = vunpack.c.l.b16 %v287
      %v342 = vunpack.c.h.b16 %v287
      %v343 = vunpack.c.l.b16 %v288
      %v344 = vunpack.c.h.b16 %v288
      %v345 = vunpack.c.l.b16 %v289
      %v346 = vunpack.c.h.b16 %v289
      %v347 = vunpack.c.l.b16 %v290
      %v348 = vunpack.c.h.b16 %v290
      %v349 = vunpack.c.l.b16 %v291
      %v350 = vunpack.c.h.b16 %v291
      %v351 = vunpack.c.l.b16 %v292
      %v352 = vunpack.c.h.b16 %v292
      %v353 = vpack.c.b16 %v323, %v321
      %v354 = vpack.c.b16 %v324, %v322
      %v355 = vpack.c.b16 %v327, %v325
      %v356 = vpack.c.b16 %v328, %v326
      %v357 = vpack.c.b16 %v331, %v329
      %v358 = vpack.c.b16 %v332, %v330
      %v359 = vpack.c.b16 %v335, %v333
      %v360 = vpack.c.b16 %v336, %v334
      %v361 = vpack.c.b16 %v339, %v337
      %v362 = vpack.c.b16 %v340, %v338
      %v363 = vpack.c.b16 %v343, %v341
      %v364 = vpack.c.b16 %v344, %v342
      %v365 = vpack.c.b16 %v347, %v345
      %v366 = vpack.c.b16 %v348, %v346
      %v367 = vpack.c.b16 %v351, %v349
      %v368 = vpack.c.b16 %v352, %v350
      %385 = vmatprep.subr.bf16.mxu0 %v354
      %386 = vmatpush1.bf16.msra.mxu0 %v353
      %387 = vmatprep.subr.bf16.mxu0 %v356
      %388 = vmatpush1.bf16.msra.mxu0 %v355
      %389 = vmatprep.subr.bf16.mxu0 %v358
      %390 = vmatpush1.bf16.msra.mxu0 %v357
      %391 = vmatprep.subr.bf16.mxu0 %v360
      %392 = vmatpush1.bf16.msra.mxu0 %v359
      %393 = vmatprep.subr.bf16.mxu0 %v362
      %394 = vmatpush1.bf16.msra.mxu0 %v361
      %395 = vmatprep.subr.bf16.mxu0 %v364
      %396 = vmatpush1.bf16.msra.mxu0 %v363
      %397 = vmatprep.subr.bf16.mxu0 %v366
      %398 = vmatpush1.bf16.msra.mxu0 %v365
      %399 = vmatprep.subr.bf16.mxu0 %v368
      %400 = vmatpush1.bf16.msra.mxu0 %v367
      %401 = vmatprep.subr.bf16.mxu0 0
      %402 = vmatpush1.bf16.msra.mxu0 0
      %403 = vmatprep.subr.bf16.mxu0 0
      %404 = vmatpush1.bf16.msra.mxu0 0
      %405 = vmatprep.subr.bf16.mxu0 0
      %406 = vmatpush1.bf16.msra.mxu0 0
      %407 = vmatprep.subr.bf16.mxu0 0
      %408 = vmatpush1.bf16.msra.mxu0 0
      %409 = vmatprep.subr.bf16.mxu0 0
      %410 = vmatpush1.bf16.msra.mxu0 0
      %411 = vmatprep.subr.bf16.mxu0 0
      %412 = vmatpush1.bf16.msra.mxu0 0
      %413 = vmatprep.subr.bf16.mxu0 0
      %414 = vmatpush1.bf16.msra.mxu0 0
      %415 = vmatprep.subr.bf16.mxu0 0
      %416 = vmatpush1.bf16.msra.mxu0 0
      %417 = vmatprep.mubr.bf16.mxu0 0
      %418 = vmatmul.mubr.bf16.gmra.mrb[0].mxu0 %v276
      %v419 = vpop.f32.mrb[0].mxu0
      %v420 = vadd.f32 %v298, %v419
      %v421 = vpop.f32.mrb[0].mxu0
      %v422 = vadd.f32 %v302, %v421
      %v423 = vpop.f32.mrb[0].mxu0
      %v424 = vpop.f32.mrb[0].mxu0
      %425 = vdwg.mxu0
      %v426 = vmax.f32 %v420, 0.0
      %v427 = vmax.f32 %v422, 0.0
      %v428 = vpack.c.bf16 %v426, %v426
      %v429 = vpack.c.bf16 %v427, %v427
      %v430 = vld [vmem:[%s3] sm:$0xf]
      %v431 = vld [vmem:[%s3 + $0x4] sm:$0xf]
      %v432 = vld [vmem:[%s3 + $0x8] sm:$0xf]
      %v433 = vld [vmem:[%s3 + $0xc] sm:$0xf]
      %v434 = vld [vmem:[%s3 + $0x10] sm:$0xf]
      %v435 = vld [vmem:[%s3 + $0x14] sm:$0xf]
      %v436 = vld [vmem:[%s3 + $0x18] sm:$0xf]
      %v437 = vld [vmem:[%s3 + $0x1c] sm:$0xf]
      %v438 = vld [vmem:[%s3 + $0x20] sm:$0xf]
      %v439 = vld [vmem:[%s3 + $0x24] sm:$0xf]
      %v440 = vld [vmem:[%s3 + $0x28] sm:$0xf]
      %v441 = vld [vmem:[%s3 + $0x2c] sm:$0xf]
      %v442 = vld [vmem:[%s3 + $0x30] sm:$0xf]
      %v443 = vld [vmem:[%s3 + $0x34] sm:$0xf]
      %v444 = vld [vmem:[%s3 + $0x38] sm:$0xf]
      %v445 = vld [vmem:[%s3 + $0x3c] sm:$0xf]
      %v446 = vld [vmem:[%s3 + $0x40] sm:$0xf]
      %v447 = vld [vmem:[%s3 + $0x44] sm:$0xf]
      %v448 = vld [vmem:[%s3 + $0x48] sm:$0xf]
      %v449 = vld [vmem:[%s3 + $0x4c] sm:$0xf]
      %v450 = vld [vmem:[%s3 + $0x50] sm:$0xf]
      %v451 = vld [vmem:[%s3 + $0x54] sm:$0xf]
      %v452 = vld [vmem:[%s3 + $0x58] sm:$0xf]
      %v453 = vld [vmem:[%s3 + $0x5c] sm:$0xf]
      %v454 = vld [vmem:[%s3 + $0x60] sm:$0xf]
      %v455 = vld [vmem:[%s3 + $0x64] sm:$0xf]
      %v456 = vld [vmem:[%s3 + $0x68] sm:$0xf]
      %v457 = vld [vmem:[%s3 + $0x6c] sm:$0xf]
      %v458 = vld [vmem:[%s3 + $0x70] sm:$0xf]
      %v459 = vld [vmem:[%s3 + $0x74] sm:$0xf]
      %v460 = vld [vmem:[%s3 + $0x78] sm:$0xf]
      %v461 = vld [vmem:[%s3 + $0x7c] sm:$0xf]
      %v462 = vld [vmem:[%s4] sm:$0x1]
      %v464 = vlaneseq
      %v465 = vshrl.u32 %v464, 7
      %v466 = vsub.s32 0, %v465
      %v467 = vrot.slane %v462, %v466
      %v501 = vunpack.c.l.b16 %v430
      %v502 = vunpack.c.l.b16 %v431
      %v503 = vunpack.c.l.b16 %v432
      %v504 = vunpack.c.l.b16 %v433
      %v505 = vunpack.c.l.b16 %v434
      %v506 = vunpack.c.l.b16 %v435
      %v507 = vunpack.c.l.b16 %v436
      %v508 = vunpack.c.l.b16 %v437
      %v509 = vunpack.c.l.b16 %v438
      %v510 = vunpack.c.l.b16 %v439
      %v511 = vunpack.c.l.b16 %v440
      %v512 = vunpack.c.l.b16 %v441
      %v513 = vunpack.c.l.b16 %v442
      %v514 = vunpack.c.l.b16 %v443
      %v515 = vunpack.c.l.b16 %v444
      %v516 = vunpack.c.l.b16 %v445
      %v517 = vunpack.c.l.b16 %v446
      %v518 = vunpack.c.l.b16 %v447
      %v519 = vunpack.c.l.b16 %v448
      %v520 = vunpack.c.l.b16 %v449
      %v521 = vunpack.c.l.b16 %v450
      %v522 = vunpack.c.l.b16 %v451
      %v523 = vunpack.c.l.b16 %v452
      %v524 = vunpack.c.l.b16 %v453
      %v525 = vunpack.c.l.b16 %v454
      %v526 = vunpack.c.l.b16 %v455
      %v527 = vunpack.c.l.b16 %v456
      %v528 = vunpack.c.l.b16 %v457
      %v529 = vunpack.c.l.b16 %v458
      %v530 = vunpack.c.l.b16 %v459
      %v531 = vunpack.c.l.b16 %v460
      %v532 = vunpack.c.l.b16 %v461
      %v533 = vpack.c.b16 %v502, %v501
      %v534 = vpack.c.b16 %v504, %v503
      %v535 = vpack.c.b16 %v506, %v505
      %v536 = vpack.c.b16 %v508, %v507
      %v537 = vpack.c.b16 %v510, %v509
      %v538 = vpack.c.b16 %v512, %v511
      %v539 = vpack.c.b16 %v514, %v513
      %v540 = vpack.c.b16 %v516, %v515
      %v541 = vpack.c.b16 %v518, %v517
      %v542 = vpack.c.b16 %v520, %v519
      %v543 = vpack.c.b16 %v522, %v521
      %v544 = vpack.c.b16 %v524, %v523
      %v545 = vpack.c.b16 %v526, %v525
      %v546 = vpack.c.b16 %v528, %v527
      %v547 = vpack.c.b16 %v530, %v529
      %v548 = vpack.c.b16 %v532, %v531
      %565 = vmatprep.subr.bf16.mxu0 0
      %566 = vmatpush1.bf16.msra.mxu0 %v533
      %567 = vmatprep.subr.bf16.mxu0 0
      %568 = vmatpush1.bf16.msra.mxu0 %v534
      %569 = vmatprep.subr.bf16.mxu0 0
      %570 = vmatpush1.bf16.msra.mxu0 %v535
      %571 = vmatprep.subr.bf16.mxu0 0
      %572 = vmatpush1.bf16.msra.mxu0 %v536
      %573 = vmatprep.subr.bf16.mxu0 0
      %574 = vmatpush1.bf16.msra.mxu0 %v537
      %575 = vmatprep.subr.bf16.mxu0 0
      %576 = vmatpush1.bf16.msra.mxu0 %v538
      %577 = vmatprep.subr.bf16.mxu0 0
      %578 = vmatpush1.bf16.msra.mxu0 %v539
      %579 = vmatprep.subr.bf16.mxu0 0
      %580 = vmatpush1.bf16.msra.mxu0 %v540
      %581 = vmatprep.subr.bf16.mxu0 0
      %582 = vmatpush1.bf16.msra.mxu0 %v541
      %583 = vmatprep.subr.bf16.mxu0 0
      %584 = vmatpush1.bf16.msra.mxu0 %v542
      %585 = vmatprep.subr.bf16.mxu0 0
      %586 = vmatpush1.bf16.msra.mxu0 %v543
      %587 = vmatprep.subr.bf16.mxu0 0
      %588 = vmatpush1.bf16.msra.mxu0 %v544
      %589 = vmatprep.subr.bf16.mxu0 0
      %590 = vmatpush1.bf16.msra.mxu0 %v545
      %591 = vmatprep.subr.bf16.mxu0 0
      %592 = vmatpush1.bf16.msra.mxu0 %v546
      %593 = vmatprep.subr.bf16.mxu0 0
      %594 = vmatpush1.bf16.msra.mxu0 %v547
      %595 = vmatprep.subr.bf16.mxu0 0
      %596 = vmatpush1.bf16.msra.mxu0 %v548
      %597 = vmatprep.mubr.bf16.mxu0 %v429
      %598 = vmatmul.mubr.bf16.gmra.mrb[0].mxu0 %v428
      %v599 = vpop.f32.mrb[0].mxu0
      %v600 = vadd.f32 %v467, %v599
      %v601 = vpop.f32.mrb[0].mxu0
      %v602 = vpop.f32.mrb[0].mxu0
      %v603 = vpop.f32.mrb[0].mxu0
      %604 = vdwg.mxu0
      %v605 = vadd.f32 %v275, %v600
      %606 = vadd.xlane.f32.xlu0 %v605
      %v607 = vpop.xlane.xlu0 %606
      %v608 = vrcp.pop 128.0
      %v609 = vmul.f32 %v607, %v608
      %v610 = vmul.f32 %v605, %v605
      %611 = vadd.xlane.f32.xlu0 %v610
      %v612 = vpop.xlane.xlu0 %611
      %v613 = vmul.f32 %v612, %v608
      %v614 = vmul.f32 %v609, %v609
      %v615 = vsub.f32 %v613, %v614
      %v616 = vmax.f32 %v615, 0.0
      %v617 = vsub.f32 %v605, %v609
      %v618 = vadd.f32 %v616, 1e-05
      %v619 = vrsqrt.pop %v618
      %v620 = vmul.f32 %v617, %v619
      %v621 = vld [vmem:[%s5] sm:$0x1]
      %v623 = vlaneseq
      %v624 = vshrl.u32 %v623, 7
      %v625 = vsub.s32 0, %v624
      %v626 = vrot.slane %v621, %v625
      %v628 = vmul.f32 %v620, %v626
      %v629 = vld [vmem:[%s6] sm:$0x1]
      %v631 = vlaneseq
      %v632 = vshrl.u32 %v631, 7
      %v633 = vsub.s32 0, %v632
      %v634 = vrot.slane %v629, %v633
      %v636 = vadd.f32 %v628, %v634
      %637 = vst [vmem:[%s273] sm:$0xff] %v636
      %p638 = scmp.lt.s32.totalorder %s18, 1
      %s639 = scalar_select %p638, %s18, 1
      %s640 = smul.addr %s639, 8
      %s641 = scalar_lea.vmem %s7, %s640
      // Predicated region
      $region49: #{transformer_forward.6} parent=47 // pred_check
        %p642 = pneg %p188
      $region50: #{transformer_forward.6} parent=47 // pred_check_branch
        %644 = sbr.rel (%p642) target = $region52
      $region51: #{transformer_forward.6} parent=47 // pred_region
        _
      $region52: #{transformer_forward.6} parent=47 // pred_fallthru
        _
    $region48: #{transformer_forward.6} parent=5 // pred_fallthru
      _
    %p645 = scmp.le.s32.totalorder 2, %s13
    // Predicated region
    $region53: #{transformer_forward.6} parent=5 // pred_check
      %p646 = pneg %p645
    $region54: #{transformer_forward.6} parent=5 // pred_check_branch
      %648 = sbr.rel (%p646) target = $region56
    $region55: #{transformer_forward.6} parent=5 // pred_region
      %s649 = ssub.s32 %s13, 2
      // Predicated region
      $region57: #{transformer_forward.6} parent=55 // pred_check
        %p650 = pneg %p194
      $region58: #{transformer_forward.6} parent=55 // pred_check_branch
        %652 = sbr.rel (%p650) target = $region60
      $region59: #{transformer_forward.6} parent=55 // pred_region
        %p653 = scmp.lt.s32.totalorder %s19, 1
        %s654 = scalar_select %p653, %s19, 1
        %s655 = smul.addr %s654, 8
        %s656 = scalar_lea.vmem %s7, %s655
      $region60: #{transformer_forward.6} parent=55 // pred_fallthru
        _
    $region56: #{transformer_forward.6} parent=5 // pred_fallthru
      _
  $region6: #{transformer_forward.6} parent=0 // loop_footer
    %s17 = sadd.s32 1, %s13
  $region7: #{transformer_forward.6} parent=0 // loop_footer_branch
    %12 = sbr.rel target = $region3
  $region8: #{transformer_forward.6} parent=0 // loop_exit
    _

// kernel: transformer_forward.5
$region0: #{transformer_forward.5}
  #allocation0 [shape = 'u32[]', space=smem, size = 0x4, offset = 0x4, fixed_abs, tag = 'smem constant byte address 0x4 - core index']
  #allocation1 [shape = 'u32[144,128]{1,0:T(1,128)}', space=vmem, size = 0x12000, scoped, tag = 'internal scratch']
  %s0 = inlined_call_operand.vmem [shape: f32[2,8,128], index: 0, kind: input, shape index: {}]
  %s1 = inlined_call_operand.vmem [shape: bf16[2,128,64], index: 1, kind: input, shape index: {}]
  %s2 = inlined_call_operand.vmem [shape: bf16[2,128,64], index: 2, kind: input, shape index: {}]
  %s3 = inlined_call_operand.vmem [shape: bf16[2,128,64], index: 3, kind: input, shape index: {}]
  %s4 = inlined_call_operand.vmem [shape: f32[2,1,64], index: 4, kind: input, shape index: {}]
  %s5 = inlined_call_operand.vmem [shape: f32[2,1,64], index: 5, kind: input, shape index: {}]
  %s6 = inlined_call_operand.vmem [shape: f32[2,1,64], index: 6, kind: input, shape index: {}]
  %s7 = inlined_call_operand.vmem [shape: bf16[2,64,128], index: 7, kind: input, shape index: {}]
  %s8 = inlined_call_operand.vmem [shape: f32[1,128], index: 8, kind: input, shape index: {}]
  %s9 = inlined_call_operand.vmem [shape: f32[1,128], index: 9, kind: input, shape index: {}]
  %s10 = inlined_call_operand.vmem [shape: f32[1,128], index: 10, kind: input, shape index: {}]
  %s11 = inlined_call_operand.vmem [shape: f32[8,8], index: 11, kind: input, shape index: {}]
  %s12 = inlined_call_operand.vmem [shape: f32[2,8,128], index: 12, kind: output, shape index: {}]
  %s13 = sld [smem:[#allocation0]]
  $region81: #{transformer_forward.5} parent=0
    _
  %s15 = ssub.s32 1, %s13
  %s16 = scalar_select 0, %s15, %s13
  loop: start=0, step=1, limit=4
  $region2: #{transformer_forward.5} parent=0 // loop_pre_header
    _
  $region3: #{transformer_forward.5} parent=0 // loop_header
    %s18 = sphi 0, %s22
    %p19 = scmp.ge.s32.totalorder %s18, 4
    %s28 = sphi 0, %s30
    %s31 = sphi 0, %s28
    %s32 = sphi 0, %s31
    %s48 = sphi 0, %s32
    %s52 = sphi 0, %s52
    %s54 = sphi 0, %s52
    %s55 = sphi 0, %s54
    %s69 = sphi 0, %s55
    %s73 = sphi 0, %s73
    %s75 = sphi 0, %s73
    %s76 = sphi 0, %s75
    %s90 = sphi 0, %s76
    %s94 = sphi 0, %s94
    %s96 = sphi 0, %s94
    %s97 = sphi 0, %s96
    %s111 = sphi 0, %s97
    %s115 = sphi 0, %s115
    %s117 = sphi 0, %s115
    %s118 = sphi 0, %s117
    %s132 = sphi 0, %s118
    %s136 = sphi 0, %s136
    %s138 = sphi 0, %s136
    %s139 = sphi 0, %s138
    %s153 = sphi 0, %s139
    %s157 = sphi 0, %s157
    %s159 = sphi 0, %s157
    %s160 = sphi 0, %s159
    %s174 = sphi 0, %s160
    %s178 = sphi 0, %s178
    %s180 = sphi 0, %s178
    %s181 = sphi 0, %s180
    %s195 = sphi 0, %s181
    %s199 = sphi 0, %s199
    %s201 = sphi 0, %s199
    %s202 = sphi 0, %s201
    %s216 = sphi 0, %s202
    %s220 = sphi 0, %s220
    %s222 = sphi 0, %s220
    %s223 = sphi 0, %s222
    %s237 = sphi 0, %s223
    %s241 = sphi 0, %s241
    %s243 = sphi 0, %s241
    %s244 = sphi 0, %s243
    %s258 = sphi 0, %s244
    %s262 = sphi 0, %s262
    %s264 = sphi 0, %s262
    %s265 = sphi 0, %s264
    %s279 = sphi 0, %s265
    %s285 = sphi 0, %s287
    %s288 = sphi 0, %s285
    %s289 = sphi 0, %s288
    %s305 = sphi 0, %s289
  $region4: #{transformer_forward.5} parent=0 // loop_header_branch
    %21 = sbr.rel (%p19) target = $region8
  $region5: #{transformer_forward.5} parent=0 // loop_body
    %s23 = ssub.s32 %s18, 1
    %s24 = ssub.s32 %s18, 2
    %s25 = sadd.s32 %s18, 1
    %s26 = ssub.s32 %s18, %s25
    %p27 = scmp.eq.s32.totalorder %s26, 0
    %s29 = sadd.s32 %s28, 1
    %s30 = scalar_select %p27, %s28, %s29
    %p33 = pneg %p27
    %p34 = scmp.eq.s32.totalorder %s18, 1
    %p35 = por %p33, %p34
    %p36 = scmp.ne.s32.totalorder %s28, %s31
    %p37 = scmp.eq.s32.totalorder %s18, 0
    %p38 = por %p36, %p37
    %p39 = scmp.ne.s32.totalorder %s28, %s31
    %p40 = scmp.eq.s32.totalorder %s23, 1
    %p41 = por %p39, %p40
    %p42 = scmp.ne.s32.totalorder %s31, %s32
    %p43 = scmp.eq.s32.totalorder %s23, 0
    %p44 = por %p42, %p43
    %p45 = scmp.ne.s32.totalorder %s31, %s32
    %p46 = scmp.eq.s32.totalorder %s24, 1
    %p47 = por %p45, %p46
    %p49 = scmp.ne.s32.totalorder %s32, %s48
    %p50 = scmp.eq.s32.totalorder %s24, 0
    %p51 = por %p49, %p50
    %s53 = sadd.s32 %s52, 1
    %p56 = scmp.eq.s32.totalorder %s18, 1
    %p57 = scmp.ne.s32.totalorder %s52, %s54
    %p58 = scmp.eq.s32.totalorder %s18, 0
    %p59 = por %p57, %p58
    %p60 = scmp.ne.s32.totalorder %s52, %s54
    %p61 = scmp.eq.s32.totalorder %s23, 1
    %p62 = por %p60, %p61
    %p63 = scmp.ne.s32.totalorder %s54, %s55
    %p64 = scmp.eq.s32.totalorder %s23, 0
    %p65 = por %p63, %p64
    %p66 = scmp.ne.s32.totalorder %s54, %s55
    %p67 = scmp.eq.s32.totalorder %s24, 1
    %p68 = por %p66, %p67
    %p70 = scmp.ne.s32.totalorder %s55, %s69
    %p71 = scmp.eq.s32.totalorder %s24, 0
    %p72 = por %p70, %p71
    %s74 = sadd.s32 %s73, 1
    %p77 = scmp.eq.s32.totalorder %s18, 1
    %p78 = scmp.ne.s32.totalorder %s73, %s75
    %p79 = scmp.eq.s32.totalorder %s18, 0
    %p80 = por %p78, %p79
    %p81 = scmp.ne.s32.totalorder %s73, %s75
    %p82 = scmp.eq.s32.totalorder %s23, 1
    %p83 = por %p81, %p82
    %p84 = scmp.ne.s32.totalorder %s75, %s76
    %p85 = scmp.eq.s32.totalorder %s23, 0
    %p86 = por %p84, %p85
    %p87 = scmp.ne.s32.totalorder %s75, %s76
    %p88 = scmp.eq.s32.totalorder %s24, 1
    %p89 = por %p87, %p88
    %p91 = scmp.ne.s32.totalorder %s76, %s90
    %p92 = scmp.eq.s32.totalorder %s24, 0
    %p93 = por %p91, %p92
    %s95 = sadd.s32 %s94, 1
    %p98 = scmp.eq.s32.totalorder %s18, 1
    %p99 = scmp.ne.s32.totalorder %s94, %s96
    %p100 = scmp.eq.s32.totalorder %s18, 0
    %p101 = por %p99, %p100
    %p102 = scmp.ne.s32.totalorder %s94, %s96
    %p103 = scmp.eq.s32.totalorder %s23, 1
    %p104 = por %p102, %p103
    %p105 = scmp.ne.s32.totalorder %s96, %s97
    %p106 = scmp.eq.s32.totalorder %s23, 0
    %p107 = por %p105, %p106
    %p108 = scmp.ne.s32.totalorder %s96, %s97
    %p109 = scmp.eq.s32.totalorder %s24, 1
    %p110 = por %p108, %p109
    %p112 = scmp.ne.s32.totalorder %s97, %s111
    %p113 = scmp.eq.s32.totalorder %s24, 0
    %p114 = por %p112, %p113
    %s116 = sadd.s32 %s115, 1
    %p119 = scmp.eq.s32.totalorder %s18, 1
    %p120 = scmp.ne.s32.totalorder %s115, %s117
    %p121 = scmp.eq.s32.totalorder %s18, 0
    %p122 = por %p120, %p121
    %p123 = scmp.ne.s32.totalorder %s115, %s117
    %p124 = scmp.eq.s32.totalorder %s23, 1
    %p125 = por %p123, %p124
    %p126 = scmp.ne.s32.totalorder %s117, %s118
    %p127 = scmp.eq.s32.totalorder %s23, 0
    %p128 = por %p126, %p127
    %p129 = scmp.ne.s32.totalorder %s117, %s118
    %p130 = scmp.eq.s32.totalorder %s24, 1
    %p131 = por %p129, %p130
    %p133 = scmp.ne.s32.totalorder %s118, %s132
    %p134 = scmp.eq.s32.totalorder %s24, 0
    %p135 = por %p133, %p134
    %s137 = sadd.s32 %s136, 1
    %p140 = scmp.eq.s32.totalorder %s18, 1
    %p141 = scmp.ne.s32.totalorder %s136, %s138
    %p142 = scmp.eq.s32.totalorder %s18, 0
    %p143 = por %p141, %p142
    %p144 = scmp.ne.s32.totalorder %s136, %s138
    %p145 = scmp.eq.s32.totalorder %s23, 1
    %p146 = por %p144, %p145
    %p147 = scmp.ne.s32.totalorder %s138, %s139
    %p148 = scmp.eq.s32.totalorder %s23, 0
    %p149 = por %p147, %p148
    %p150 = scmp.ne.s32.totalorder %s138, %s139
    %p151 = scmp.eq.s32.totalorder %s24, 1
    %p152 = por %p150, %p151
    %p154 = scmp.ne.s32.totalorder %s139, %s153
    %p155 = scmp.eq.s32.totalorder %s24, 0
    %p156 = por %p154, %p155
    %s158 = sadd.s32 %s157, 1
    %p161 = scmp.eq.s32.totalorder %s18, 1
    %p162 = scmp.ne.s32.totalorder %s157, %s159
    %p163 = scmp.eq.s32.totalorder %s18, 0
    %p164 = por %p162, %p163
    %p165 = scmp.ne.s32.totalorder %s157, %s159
    %p166 = scmp.eq.s32.totalorder %s23, 1
    %p167 = por %p165, %p166
    %p168 = scmp.ne.s32.totalorder %s159, %s160
    %p169 = scmp.eq.s32.totalorder %s23, 0
    %p170 = por %p168, %p169
    %p171 = scmp.ne.s32.totalorder %s159, %s160
    %p172 = scmp.eq.s32.totalorder %s24, 1
    %p173 = por %p171, %p172
    %p175 = scmp.ne.s32.totalorder %s160, %s174
    %p176 = scmp.eq.s32.totalorder %s24, 0
    %p177 = por %p175, %p176
    %s179 = sadd.s32 %s178, 1
    %p182 = scmp.eq.s32.totalorder %s18, 1
    %p183 = scmp.ne.s32.totalorder %s178, %s180
    %p184 = scmp.eq.s32.totalorder %s18, 0
    %p185 = por %p183, %p184
    %p186 = scmp.ne.s32.totalorder %s178, %s180
    %p187 = scmp.eq.s32.totalorder %s23, 1
    %p188 = por %p186, %p187
    %p189 = scmp.ne.s32.totalorder %s180, %s181
    %p190 = scmp.eq.s32.totalorder %s23, 0
    %p191 = por %p189, %p190
    %p192 = scmp.ne.s32.totalorder %s180, %s181
    %p193 = scmp.eq.s32.totalorder %s24, 1
    %p194 = por %p192, %p193
    %p196 = scmp.ne.s32.totalorder %s181, %s195
    %p197 = scmp.eq.s32.totalorder %s24, 0
    %p198 = por %p196, %p197
    %s200 = sadd.s32 %s199, 1
    %p203 = scmp.eq.s32.totalorder %s18, 1
    %p204 = scmp.ne.s32.totalorder %s199, %s201
    %p205 = scmp.eq.s32.totalorder %s18, 0
    %p206 = por %p204, %p205
    %p207 = scmp.ne.s32.totalorder %s199, %s201
    %p208 = scmp.eq.s32.totalorder %s23, 1
    %p209 = por %p207, %p208
    %p210 = scmp.ne.s32.totalorder %s201, %s202
    %p211 = scmp.eq.s32.totalorder %s23, 0
    %p212 = por %p210, %p211
    %p213 = scmp.ne.s32.totalorder %s201, %s202
    %p214 = scmp.eq.s32.totalorder %s24, 1
    %p215 = por %p213, %p214
    %p217 = scmp.ne.s32.totalorder %s202, %s216
    %p218 = scmp.eq.s32.totalorder %s24, 0
    %p219 = por %p217, %p218
    %s221 = sadd.s32 %s220, 1
    %p224 = scmp.eq.s32.totalorder %s18, 1
    %p225 = scmp.ne.s32.totalorder %s220, %s222
    %p226 = scmp.eq.s32.totalorder %s18, 0
    %p227 = por %p225, %p226
    %p228 = scmp.ne.s32.totalorder %s220, %s222
    %p229 = scmp.eq.s32.totalorder %s23, 1
    %p230 = por %p228, %p229
    %p231 = scmp.ne.s32.totalorder %s222, %s223
    %p232 = scmp.eq.s32.totalorder %s23, 0
    %p233 = por %p231, %p232
    %p234 = scmp.ne.s32.totalorder %s222, %s223
    %p235 = scmp.eq.s32.totalorder %s24, 1
    %p236 = por %p234, %p235
    %p238 = scmp.ne.s32.totalorder %s223, %s237
    %p239 = scmp.eq.s32.totalorder %s24, 0
    %p240 = por %p238, %p239
    %s242 = sadd.s32 %s241, 1
    %p245 = scmp.eq.s32.totalorder %s18, 1
    %p246 = scmp.ne.s32.totalorder %s241, %s243
    %p247 = scmp.eq.s32.totalorder %s18, 0
    %p248 = por %p246, %p247
    %p249 = scmp.ne.s32.totalorder %s241, %s243
    %p250 = scmp.eq.s32.totalorder %s23, 1
    %p251 = por %p249, %p250
    %p252 = scmp.ne.s32.totalorder %s243, %s244
    %p253 = scmp.eq.s32.totalorder %s23, 0
    %p254 = por %p252, %p253
    %p255 = scmp.ne.s32.totalorder %s243, %s244
    %p256 = scmp.eq.s32.totalorder %s24, 1
    %p257 = por %p255, %p256
    %p259 = scmp.ne.s32.totalorder %s244, %s258
    %p260 = scmp.eq.s32.totalorder %s24, 0
    %p261 = por %p259, %p260
    %s263 = sadd.s32 %s262, 1
    %p266 = scmp.eq.s32.totalorder %s18, 1
    %p267 = scmp.ne.s32.totalorder %s262, %s264
    %p268 = scmp.eq.s32.totalorder %s18, 0
    %p269 = por %p267, %p268
    %p270 = scmp.ne.s32.totalorder %s262, %s264
    %p271 = scmp.eq.s32.totalorder %s23, 1
    %p272 = por %p270, %p271
    %p273 = scmp.ne.s32.totalorder %s264, %s265
    %p274 = scmp.eq.s32.totalorder %s23, 0
    %p275 = por %p273, %p274
    %p276 = scmp.ne.s32.totalorder %s264, %s265
    %p277 = scmp.eq.s32.totalorder %s24, 1
    %p278 = por %p276, %p277
    %p280 = scmp.ne.s32.totalorder %s265, %s279
    %p281 = scmp.eq.s32.totalorder %s24, 0
    %p282 = por %p280, %p281
    %s283 = ssub.s32 %s18, %s25
    %p284 = scmp.eq.s32.totalorder %s283, 0
    %s286 = sadd.s32 %s285, 1
    %s287 = scalar_select %p284, %s285, %s286
    %p290 = pneg %p284
    %p291 = scmp.eq.s32.totalorder %s18, 1
    %p292 = por %p290, %p291
    %p293 = scmp.ne.s32.totalorder %s285, %s288
    %p294 = scmp.eq.s32.totalorder %s18, 0
    %p295 = por %p293, %p294
    %p296 = scmp.ne.s32.totalorder %s285, %s288
    %p297 = scmp.eq.s32.totalorder %s23, 1
    %p298 = por %p296, %p297
    %p299 = scmp.ne.s32.totalorder %s288, %s289
    %p300 = scmp.eq.s32.totalorder %s23, 0
    %p301 = por %p299, %p300
    %p302 = scmp.ne.s32.totalorder %s288, %s289
    %p303 = scmp.eq.s32.totalorder %s24, 1
    %p304 = por %p302, %p303
    %p306 = scmp.ne.s32.totalorder %s289, %s305
    %p307 = scmp.eq.s32.totalorder %s24, 0
    %p308 = por %p306, %p307
    %p309 = scmp.le.s32.totalorder 1, %s18
    %p310 = scmp.lt.s32.totalorder %s18, 3
    %p311 = pnand %p309, %p310
    %p312 = pneg %p311
    // Predicated region
    $region9: #{transformer_forward.5} parent=5 // pred_check
      _
    $region10: #{transformer_forward.5} parent=5 // pred_check_branch
      %314 = sbr.rel (%p311) target = $region12
    $region11: #{transformer_forward.5} parent=5 // pred_region
      %s315 = ssub.s32 %s18, 1
      // Predicated region
      $region13: #{transformer_forward.5} parent=11 // pred_check
        %p316 = pneg %p65
      $region14: #{transformer_forward.5} parent=11 // pred_check_branch
        %318 = sbr.rel (%p316) target = $region16
      $region15: #{transformer_forward.5} parent=11 // pred_region
        _
      $region16: #{transformer_forward.5} parent=11 // pred_fallthru
        _
      // Predicated region
      $region17: #{transformer_forward.5} parent=11 // pred_check
        %p319 = pneg %p86
      $region18: #{transformer_forward.5} parent=11 // pred_check_branch
        %321 = sbr.rel (%p319) target = $region20
      $region19: #{transformer_forward.5} parent=11 // pred_region
        _
      $region20: #{transformer_forward.5} parent=11 // pred_fallthru
        _
      // Predicated region
      $region21: #{transformer_forward.5} parent=11 // pred_check
        %p322 = pneg %p107
      $region22: #{transformer_forward.5} parent=11 // pred_check_branch
        %324 = sbr.rel (%p322) target = $region24
      $region23: #{transformer_forward.5} parent=11 // pred_region
        _
      $region24: #{transformer_forward.5} parent=11 // pred_fallthru
        _
      // Predicated region
      $region25: #{transformer_forward.5} parent=11 // pred_check
        %p325 = pneg %p128
      $region26: #{transformer_forward.5} parent=11 // pred_check_branch
        %327 = sbr.rel (%p325) target = $region28
      $region27: #{transformer_forward.5} parent=11 // pred_region
        _
      $region28: #{transformer_forward.5} parent=11 // pred_fallthru
        _
      // Predicated region
      $region29: #{transformer_forward.5} parent=11 // pred_check
        %p328 = pneg %p149
      $region30: #{transformer_forward.5} parent=11 // pred_check_branch
        %330 = sbr.rel (%p328) target = $region32
      $region31: #{transformer_forward.5} parent=11 // pred_region
        _
      $region32: #{transformer_forward.5} parent=11 // pred_fallthru
        _
      // Predicated region
      $region33: #{transformer_forward.5} parent=11 // pred_check
        %p331 = pneg %p170
      $region34: #{transformer_forward.5} parent=11 // pred_check_branch
        %333 = sbr.rel (%p331) target = $region36
      $region35: #{transformer_forward.5} parent=11 // pred_region
        _
      $region36: #{transformer_forward.5} parent=11 // pred_fallthru
        _
      // Predicated region
      $region37: #{transformer_forward.5} parent=11 // pred_check
        %p334 = pneg %p191
      $region38: #{transformer_forward.5} parent=11 // pred_check_branch
        %336 = sbr.rel (%p334) target = $region40
      $region39: #{transformer_forward.5} parent=11 // pred_region
        _
      $region40: #{transformer_forward.5} parent=11 // pred_fallthru
        _
      // Predicated region
      $region41: #{transformer_forward.5} parent=11 // pred_check
        %p337 = pneg %p212
      $region42: #{transformer_forward.5} parent=11 // pred_check_branch
        %339 = sbr.rel (%p337) target = $region44
      $region43: #{transformer_forward.5} parent=11 // pred_region
        _
      $region44: #{transformer_forward.5} parent=11 // pred_fallthru
        _
      // Predicated region
      $region45: #{transformer_forward.5} parent=11 // pred_check
        %p340 = pneg %p233
      $region46: #{transformer_forward.5} parent=11 // pred_check_branch
        %342 = sbr.rel (%p340) target = $region48
      $region47: #{transformer_forward.5} parent=11 // pred_region
        _
      $region48: #{transformer_forward.5} parent=11 // pred_fallthru
        _
      // Predicated region
      $region49: #{transformer_forward.5} parent=11 // pred_check
        %p343 = pneg %p254
      $region50: #{transformer_forward.5} parent=11 // pred_check_branch
        %345 = sbr.rel (%p343) target = $region52
      $region51: #{transformer_forward.5} parent=11 // pred_region
        _
      $region52: #{transformer_forward.5} parent=11 // pred_fallthru
        _
      // Predicated region
      $region53: #{transformer_forward.5} parent=11 // pred_check
        %p346 = pneg %p275
      $region54: #{transformer_forward.5} parent=11 // pred_check_branch
        %348 = sbr.rel (%p346) target = $region56
      $region55: #{transformer_forward.5} parent=11 // pred_region
        _
      $region56: #{transformer_forward.5} parent=11 // pred_fallthru
        _
    $region12: #{transformer_forward.5} parent=5 // pred_fallthru
      _
    %p349 = scmp.lt.s32.totalorder %s18, 2
    // Predicated region
    $region57: #{transformer_forward.5} parent=5 // pred_check
      %p350 = pneg %p349
    $region58: #{transformer_forward.5} parent=5 // pred_check_branch
      %352 = sbr.rel (%p350) target = $region60
    $region59: #{transformer_forward.5} parent=5 // pred_region
      // Predicated region
      $region61: #{transformer_forward.5} parent=59 // pred_check
        %p353 = pneg %p38
      $region62: #{transformer_forward.5} parent=59 // pred_check_branch
        %355 = sbr.rel (%p353) target = $region64
      $region63: #{transformer_forward.5} parent=59 // pred_region
        %p356 = scmp.lt.s32.totalorder %s18, 1
        %s357 = scalar_select %p356, %s18, 1
        %s358 = smul.addr %s357, 8
        %s359 = scalar_lea.vmem %s0, %s358
      $region64: #{transformer_forward.5} parent=59 // pred_fallthru
        _
    $region60: #{transformer_forward.5} parent=5 // pred_fallthru
      _
    %p360 = scmp.le.s32.totalorder 1, %s18
    %p361 = scmp.lt.s32.totalorder %s18, 3
    %p362 = pnand %p360, %p361
    %p363 = pneg %p362
    // Predicated region
    $region65: #{transformer_forward.5} parent=5 // pred_check
      _
    $region66: #{transformer_forward.5} parent=5 // pred_check_branch
      %365 = sbr.rel (%p362) target = $region68
    $region67: #{transformer_forward.5} parent=5 // pred_region
      %s366 = ssub.s32 %s18, 1
      %p367 = scmp.lt.s32.totalorder %s23, 1
      %s368 = scalar_select %p367, %s23, 1
      %s369 = smul.addr %s368, 8
      %s370 = scalar_lea.vmem %s0, %s369
      %p371 = pneg %p44
      %p372 = pneg %p41
      %p373 = pneg %p65
      %p374 = pneg %p62
      %p375 = pneg %p86
      %p376 = pneg %p83
      %p377 = pneg %p107
      %p378 = pneg %p104
      %p379 = pneg %p128
      %p380 = pneg %p125
      %p381 = pneg %p149
      %p382 = pneg %p146
      %p383 = pneg %p170
      %p384 = pneg %p167
      %p385 = pneg %p191
      %p386 = pneg %p188
      %p387 = pneg %p212
      %p388 = pneg %p209
      %p389 = pneg %p233
      %p390 = pneg %p230
      %p391 = pneg %p254
      %p392 = pneg %p251
      %p393 = pneg %p275
      %p394 = pneg %p272
      %p395 = pneg %p301
      %p396 = pneg %p298
      %p397 = scmp.lt.s32.totalorder %s23, 1
      %s398 = scalar_select %p397, %s23, 1
      %s399 = smul.addr %s398, 8
      %s400 = scalar_lea.vmem %s12, %s399
      %p401 = scmp.lt.s32.totalorder %s23, 1
      %s402 = scalar_select %p401, %s23, 1
      %s403 = smul.addr %s402, 8
      %s404 = scalar_lea.vmem %s0, %s403
      %p405 = scmp.lt.s32.totalorder %s23, 1
      %s406 = scalar_select %p405, %s23, 1
      %s407 = smul.addr %s406, 8
      %s408 = scalar_lea.vmem %s12, %s407
      %v410 = vld [vmem:[%s404] sm:$0xff]
      %v411 = vpack.c.bf16 %v410, %v410
      %v412 = vld [vmem:[%s11] sm:$0xff]
      %v413 = vld [vmem:[%s1] sm:$0xf]
      %v414 = vld [vmem:[%s1 + $0x4] sm:$0xf]
      %v415 = vld [vmem:[%s1 + $0x8] sm:$0xf]
      %v416 = vld [vmem:[%s1 + $0xc] sm:$0xf]
      %v417 = vld [vmem:[%s1 + $0x10] sm:$0xf]
      %v418 = vld [vmem:[%s1 + $0x14] sm:$0xf]
      %v419 = vld [vmem:[%s1 + $0x18] sm:$0xf]
      %v420 = vld [vmem:[%s1 + $0x1c] sm:$0xf]
      %v421 = vld [vmem:[%s1 + $0x20] sm:$0xf]
      %v422 = vld [vmem:[%s1 + $0x24] sm:$0xf]
      %v423 = vld [vmem:[%s1 + $0x28] sm:$0xf]
      %v424 = vld [vmem:[%s1 + $0x2c] sm:$0xf]
      %v425 = vld [vmem:[%s1 + $0x30] sm:$0xf]
      %v426 = vld [vmem:[%s1 + $0x34] sm:$0xf]
      %v427 = vld [vmem:[%s1 + $0x38] sm:$0xf]
      %v428 = vld [vmem:[%s1 + $0x3c] sm:$0xf]
      %v429 = vld [vmem:[%s4] sm:$0x1]
      %v431 = vlaneseq
      %v432 = vshrl.u32 %v431, 7
      %v433 = vsub.s32 0, %v432
      %v434 = vrot.slane %v429, %v433
      %v452 = vunpack.c.l.b16 %v413
      %v453 = vunpack.c.l.b16 %v414
      %v454 = vunpack.c.l.b16 %v415
      %v455 = vunpack.c.l.b16 %v416
      %v456 = vunpack.c.l.b16 %v417
      %v457 = vunpack.c.l.b16 %v418
      %v458 = vunpack.c.l.b16 %v419
      %v459 = vunpack.c.l.b16 %v420
      %v460 = vunpack.c.l.b16 %v421
      %v461 = vunpack.c.l.b16 %v422
      %v462 = vunpack.c.l.b16 %v423
      %v463 = vunpack.c.l.b16 %v424
      %v464 = vunpack.c.l.b16 %v425
      %v465 = vunpack.c.l.b16 %v426
      %v466 = vunpack.c.l.b16 %v427
      %v467 = vunpack.c.l.b16 %v428
      %v468 = vpack.c.b16 %v453, %v452
      %v469 = vpack.c.b16 %v455, %v454
      %v470 = vpack.c.b16 %v457, %v456
      %v471 = vpack.c.b16 %v459, %v458
      %v472 = vpack.c.b16 %v461, %v460
      %v473 = vpack.c.b16 %v463, %v462
      %v474 = vpack.c.b16 %v465, %v464
      %v475 = vpack.c.b16 %v467, %v466
      %484 = vmatprep.subr.bf16.mxu0 0
      %485 = vmatpush1.bf16.msra.mxu0 %v468
      %486 = vmatprep.subr.bf16.mxu0 0
      %487 = vmatpush1.bf16.msra.mxu0 %v469
      %488 = vmatprep.subr.bf16.mxu0 0
      %489 = vmatpush1.bf16.msra.mxu0 %v470
      %490 = vmatprep.subr.bf16.mxu0 0
      %491 = vmatpush1.bf16.msra.mxu0 %v471
      %492 = vmatprep.subr.bf16.mxu0 0
      %493 = vmatpush1.bf16.msra.mxu0 %v472
      %494 = vmatprep.subr.bf16.mxu0 0
      %495 = vmatpush1.bf16.msra.mxu0 %v473
      %496 = vmatprep.subr.bf16.mxu0 0
      %497 = vmatpush1.bf16.msra.mxu0 %v474
      %498 = vmatprep.subr.bf16.mxu0 0
      %499 = vmatpush1.bf16.msra.mxu0 %v475
      %500 = vmatprep.subr.bf16.mxu0 0
      %501 = vmatpush1.bf16.msra.mxu0 0
      %502 = vmatprep.subr.bf16.mxu0 0
      %503 = vmatpush1.bf16.msra.mxu0 0
      %504 = vmatprep.subr.bf16.mxu0 0
      %505 = vmatpush1.bf16.msra.mxu0 0
      %506 = vmatprep.subr.bf16.mxu0 0
      %507 = vmatpush1.bf16.msra.mxu0 0
      %508 = vmatprep.subr.bf16.mxu0 0
      %509 = vmatpush1.bf16.msra.mxu0 0
      %510 = vmatprep.subr.bf16.mxu0 0
      %511 = vmatpush1.bf16.msra.mxu0 0
      %512 = vmatprep.subr.bf16.mxu0 0
      %513 = vmatpush1.bf16.msra.mxu0 0
      %514 = vmatprep.subr.bf16.mxu0 0
      %515 = vmatpush1.bf16.msra.mxu0 0
      %516 = vmatprep.mubr.bf16.mxu0 0
      %517 = vmatmul.mubr.bf16.gmra.mrb[0].mxu0 %v411
      %v518 = vpop.f32.mrb[0].mxu0
      %v519 = vadd.f32 %v434, %v518
      %v520 = vpop.f32.mrb[0].mxu0
      %v521 = vpop.f32.mrb[0].mxu0
      %v522 = vpop.f32.mrb[0].mxu0
      %523 = vdwg.mxu0
      %v524 = vld [vmem:[%s2] sm:$0xf]
      %v525 = vld [vmem:[%s2 + $0x4] sm:$0xf]
      %v526 = vld [vmem:[%s2 + $0x8] sm:$0xf]
      %v527 = vld [vmem:[%s2 + $0xc] sm:$0xf]
      %v528 = vld [vmem:[%s2 + $0x10] sm:$0xf]
      %v529 = vld [vmem:[%s2 + $0x14] sm:$0xf]
      %v530 = vld [vmem:[%s2 + $0x18] sm:$0xf]
      %v531 = vld [vmem:[%s2 + $0x1c] sm:$0xf]
      %v532 = vld [vmem:[%s2 + $0x20] sm:$0xf]
      %v533 = vld [vmem:[%s2 + $0x24] sm:$0xf]
      %v534 = vld [vmem:[%s2 + $0x28] sm:$0xf]
      %v535 = vld [vmem:[%s2 + $0x2c] sm:$0xf]
      %v536 = vld [vmem:[%s2 + $0x30] sm:$0xf]
      %v537 = vld [vmem:[%s2 + $0x34] sm:$0xf]
      %v538 = vld [vmem:[%s2 + $0x38] sm:$0xf]
      %v539 = vld [vmem:[%s2 + $0x3c] sm:$0xf]
      %v540 = vld [vmem:[%s5] sm:$0x1]
      %v542 = vlaneseq
      %v543 = vshrl.u32 %v542, 7
      %v544 = vsub.s32 0, %v543
      %v545 = vrot.slane %v540, %v544
      %v563 = vunpack.c.l.b16 %v524
      %v564 = vunpack.c.l.b16 %v525
      %v565 = vunpack.c.l.b16 %v526
      %v566 = vunpack.c.l.b16 %v527
      %v567 = vunpack.c.l.b16 %v528
      %v568 = vunpack.c.l.b16 %v529
      %v569 = vunpack.c.l.b16 %v530
      %v570 = vunpack.c.l.b16 %v531
      %v571 = vunpack.c.l.b16 %v532
      %v572 = vunpack.c.l.b16 %v533
      %v573 = vunpack.c.l.b16 %v534
      %v574 = vunpack.c.l.b16 %v535
      %v575 = vunpack.c.l.b16 %v536
      %v576 = vunpack.c.l.b16 %v537
      %v577 = vunpack.c.l.b16 %v538
      %v578 = vunpack.c.l.b16 %v539
      %v579 = vpack.c.b16 %v564, %v563
      %v580 = vpack.c.b16 %v566, %v565
      %v581 = vpack.c.b16 %v568, %v567
      %v582 = vpack.c.b16 %v570, %v569
      %v583 = vpack.c.b16 %v572, %v571
      %v584 = vpack.c.b16 %v574, %v573
      %v585 = vpack.c.b16 %v576, %v575
      %v586 = vpack.c.b16 %v578, %v577
      %595 = vmatprep.subr.bf16.mxu0 0
      %596 = vmatpush1.bf16.msra.mxu0 %v579
      %597 = vmatprep.subr.bf16.mxu0 0
      %598 = vmatpush1.bf16.msra.mxu0 %v580
      %599 = vmatprep.subr.bf16.mxu0 0
      %600 = vmatpush1.bf16.msra.mxu0 %v581
      %601 = vmatprep.subr.bf16.mxu0 0
      %602 = vmatpush1.bf16.msra.mxu0 %v582
      %603 = vmatprep.subr.bf16.mxu0 0
      %604 = vmatpush1.bf16.msra.mxu0 %v583
      %605 = vmatprep.subr.bf16.mxu0 0
      %606 = vmatpush1.bf16.msra.mxu0 %v584
      %607 = vmatprep.subr.bf16.mxu0 0
      %608 = vmatpush1.bf16.msra.mxu0 %v585
      %609 = vmatprep.subr.bf16.mxu0 0
      %610 = vmatpush1.bf16.msra.mxu0 %v586
      %611 = vmatprep.subr.bf16.mxu0 0
      %612 = vmatpush1.bf16.msra.mxu0 0
      %613 = vmatprep.subr.bf16.mxu0 0
      %614 = vmatpush1.bf16.msra.mxu0 0
      %615 = vmatprep.subr.bf16.mxu0 0
      %616 = vmatpush1.bf16.msra.mxu0 0
      %617 = vmatprep.subr.bf16.mxu0 0
      %618 = vmatpush1.bf16.msra.mxu0 0
      %619 = vmatprep.subr.bf16.mxu0 0
      %620 = vmatpush1.bf16.msra.mxu0 0
      %621 = vmatprep.subr.bf16.mxu0 0
      %622 = vmatpush1.bf16.msra.mxu0 0
      %623 = vmatprep.subr.bf16.mxu0 0
      %624 = vmatpush1.bf16.msra.mxu0 0
      %625 = vmatprep.subr.bf16.mxu0 0
      %626 = vmatpush1.bf16.msra.mxu0 0
      %627 = vmatprep.mubr.bf16.mxu0 0
      %628 = vmatmul.mubr.bf16.gmra.mrb[0].mxu0 %v411
      %v629 = vpop.f32.mrb[0].mxu0
      %v630 = vadd.f32 %v545, %v629
      %v631 = vpop.f32.mrb[0].mxu0
      %v632 = vpop.f32.mrb[0].mxu0
      %v633 = vpop.f32.mrb[0].mxu0
      %634 = vdwg.mxu0
      %v635 = vld [vmem:[%s3] sm:$0xf]
      %v636 = vld [vmem:[%s3 + $0x4] sm:$0xf]
      %v637 = vld [vmem:[%s3 + $0x8] sm:$0xf]
      %v638 = vld [vmem:[%s3 + $0xc] sm:$0xf]
      %v639 = vld [vmem:[%s3 + $0x10] sm:$0xf]
      %v640 = vld [vmem:[%s3 + $0x14] sm:$0xf]
      %v641 = vld [vmem:[%s3 + $0x18] sm:$0xf]
      %v642 = vld [vmem:[%s3 + $0x1c] sm:$0xf]
      %v643 = vld [vmem:[%s3 + $0x20] sm:$0xf]
      %v644 = vld [vmem:[%s3 + $0x24] sm:$0xf]
      %v645 = vld [vmem:[%s3 + $0x28] sm:$0xf]
      %v646 = vld [vmem:[%s3 + $0x2c] sm:$0xf]
      %v647 = vld [vmem:[%s3 + $0x30] sm:$0xf]
      %v648 = vld [vmem:[%s3 + $0x34] sm:$0xf]
      %v649 = vld [vmem:[%s3 + $0x38] sm:$0xf]
      %v650 = vld [vmem:[%s3 + $0x3c] sm:$0xf]
      %v651 = vld [vmem:[%s6] sm:$0x1]
      %v653 = vlaneseq
      %v654 = vshrl.u32 %v653, 7
      %v655 = vsub.s32 0, %v654
      %v656 = vrot.slane %v651, %v655
      %v674 = vunpack.c.l.b16 %v635
      %v675 = vunpack.c.l.b16 %v636
      %v676 = vunpack.c.l.b16 %v637
      %v677 = vunpack.c.l.b16 %v638
      %v678 = vunpack.c.l.b16 %v639
      %v679 = vunpack.c.l.b16 %v640
      %v680 = vunpack.c.l.b16 %v641
      %v681 = vunpack.c.l.b16 %v642
      %v682 = vunpack.c.l.b16 %v643
      %v683 = vunpack.c.l.b16 %v644
      %v684 = vunpack.c.l.b16 %v645
      %v685 = vunpack.c.l.b16 %v646
      %v686 = vunpack.c.l.b16 %v647
      %v687 = vunpack.c.l.b16 %v648
      %v688 = vunpack.c.l.b16 %v649
      %v689 = vunpack.c.l.b16 %v650
      %v690 = vpack.c.b16 %v675, %v674
      %v691 = vpack.c.b16 %v677, %v676
      %v692 = vpack.c.b16 %v679, %v678
      %v693 = vpack.c.b16 %v681, %v680
      %v694 = vpack.c.b16 %v683, %v682
      %v695 = vpack.c.b16 %v685, %v684
      %v696 = vpack.c.b16 %v687, %v686
      %v697 = vpack.c.b16 %v689, %v688
      %706 = vmatprep.subr.bf16.mxu0 0
      %707 = vmatpush1.bf16.msra.mxu0 %v690
      %708 = vmatprep.subr.bf16.mxu0 0
      %709 = vmatpush1.bf16.msra.mxu0 %v691
      %710 = vmatprep.subr.bf16.mxu0 0
      %711 = vmatpush1.bf16.msra.mxu0 %v692
      %712 = vmatprep.subr.bf16.mxu0 0
      %713 = vmatpush1.bf16.msra.mxu0 %v693
      %714 = vmatprep.subr.bf16.mxu0 0
      %715 = vmatpush1.bf16.msra.mxu0 %v694
      %716 = vmatprep.subr.bf16.mxu0 0
      %717 = vmatpush1.bf16.msra.mxu0 %v695
      %718 = vmatprep.subr.bf16.mxu0 0
      %719 = vmatpush1.bf16.msra.mxu0 %v696
      %720 = vmatprep.subr.bf16.mxu0 0
      %721 = vmatpush1.bf16.msra.mxu0 %v697
      %722 = vmatprep.subr.bf16.mxu0 0
      %723 = vmatpush1.bf16.msra.mxu0 0
      %724 = vmatprep.subr.bf16.mxu0 0
      %725 = vmatpush1.bf16.msra.mxu0 0
      %726 = vmatprep.subr.bf16.mxu0 0
      %727 = vmatpush1.bf16.msra.mxu0 0
      %728 = vmatprep.subr.bf16.mxu0 0
      %729 = vmatpush1.bf16.msra.mxu0 0
      %730 = vmatprep.subr.bf16.mxu0 0
      %731 = vmatpush1.bf16.msra.mxu0 0
      %732 = vmatprep.subr.bf16.mxu0 0
      %733 = vmatpush1.bf16.msra.mxu0 0
      %734 = vmatprep.subr.bf16.mxu0 0
      %735 = vmatpush1.bf16.msra.mxu0 0
      %736 = vmatprep.subr.bf16.mxu0 0
      %737 = vmatpush1.bf16.msra.mxu0 0
      %738 = vmatprep.mubr.bf16.mxu0 0
      %739 = vmatmul.mubr.bf16.gmra.mrb[0].mxu0 %v411
      %v740 = vpop.f32.mrb[0].mxu0
      %v741 = vadd.f32 %v656, %v740
      %v742 = vpop.f32.mrb[0].mxu0
      %v743 = vpop.f32.mrb[0].mxu0
      %v744 = vpop.f32.mrb[0].mxu0
      %745 = vdwg.mxu0
      %v746 = vpack.c.bf16 %v519, %v519
      %v747 = vpack.c.bf16 %v630, %v630
      %v748 = vpack.c.bf16 %v741, %v741
      %vm749 = vcmask 523264
      %v751 = vsel %vm749, %v746, 0
      %v754 = vsel %vm749, %v747, 0
      %756 = vmatprep.subr.bf16.mxu0 0
      %757 = vmatpush1.bf16.xpose.msra.mxu0 %v754
      %758 = vmatprep.subr.bf16.mxu0 0
      %759 = vmatpush1.bf16.xpose.msra.mxu0 0
      %760 = vmatprep.subr.bf16.mxu0 0
      %761 = vmatpush1.bf16.xpose.msra.mxu0 0
      %762 = vmatprep.subr.bf16.mxu0 0
      %763 = vmatpush1.bf16.xpose.msra.mxu0 0
      %764 = vmatprep.subr.bf16.mxu0 0
      %765 = vmatpush1.bf16.xpose.msra.mxu0 0
      %766 = vmatprep.subr.bf16.mxu0 0
      %767 = vmatpush1.bf16.xpose.msra.mxu0 0
      %768 = vmatprep.subr.bf16.mxu0 0
      %769 = vmatpush1.bf16.xpose.msra.mxu0 0
      %770 = vmatprep.subr.bf16.mxu0 0
      %771 = vmatpush1.bf16.xpose.msra.mxu0 0
      %772 = vmatprep.subr.bf16.mxu0 0
      %773 = vmatpush1.bf16.xpose.msra.mxu0 0
      %774 = vmatprep.subr.bf16.mxu0 0
      %775 = vmatpush1.bf16.xpose.msra.mxu0 0
      %776 = vmatprep.subr.bf16.mxu0 0
      %777 = vmatpush1.bf16.xpose.msra.mxu0 0
      %778 = vmatprep.subr.bf16.mxu0 0
      %779 = vmatpush1.bf16.xpose.msra.mxu0 0
      %780 = vmatprep.subr.bf16.mxu0 0
      %781 = vmatpush1.bf16.xpose.msra.mxu0 0
      %782 = vmatprep.subr.bf16.mxu0 0
      %783 = vmatpush1.bf16.xpose.msra.mxu0 0
      %784 = vmatprep.subr.bf16.mxu0 0
      %785 = vmatpush1.bf16.xpose.msra.mxu0 0
      %786 = vmatprep.subr.bf16.mxu0 0
      %787 = vmatpush1.bf16.xpose.msra.mxu0 0
      %788 = vmatprep.mubr.bf16.mxu0 0
      %789 = vmatmul.mubr.bf16.gmra.mrb[0].mxu0 %v751
      %v790 = vpop.f32.mrb[0].mxu0
      %v791 = vadd.f32 0.0, %v790
      %v792 = vpop.f32.mrb[0].mxu0
      %v793 = vpop.f32.mrb[0].mxu0
      %v794 = vpop.f32.mrb[0].mxu0
      %795 = vdwg.mxu0
      %v796 = vmul.f32 %v791, 0.125
      %v797 = vadd.f32 %v796, %v412
      %vm798 = vcmask 64512
      %v799 = vsel %vm798, %v797, -inf
      %800 = vmax.xlane.f32.xlu0 %v799
      %v801 = vpop.xlane.xlu0 %800
      %v802 = vsub.f32 %v797, %v801
      %v803 = vmul.f32 %v802, 1.442695
      %v804 = vpow.pop %v803
      %v805 = vsel %vm798, %v804, 0.0
      %806 = vadd.xlane.f32.xlu0 %v805
      %v807 = vpop.xlane.xlu0 %806
      %v808 = vrcp.pop %v807
      %v809 = vmul.f32 %v804, %v808
      %v810 = vpack.c.bf16 %v809, %v809
      %v812 = vsel %vm798, %v810, 0
      %vm814 = vcmask 1043456
      %v816 = vsel %vm814, %v748, 0
      %818 = vmatprep.subr.bf16.mxu0 0
      %819 = vmatpush1.bf16.msra.mxu0 %v816
      %820 = vmatprep.subr.bf16.mxu0 0
      %821 = vmatpush1.bf16.msra.mxu0 0
      %822 = vmatprep.subr.bf16.mxu0 0
      %823 = vmatpush1.bf16.msra.mxu0 0
      %824 = vmatprep.subr.bf16.mxu0 0
      %825 = vmatpush1.bf16.msra.mxu0 0
      %826 = vmatprep.subr.bf16.mxu0 0
      %827 = vmatpush1.bf16.msra.mxu0 0
      %828 = vmatprep.subr.bf16.mxu0 0
      %829 = vmatpush1.bf16.msra.mxu0 0
      %830 = vmatprep.subr.bf16.mxu0 0
      %831 = vmatpush1.bf16.msra.mxu0 0
      %832 = vmatprep.subr.bf16.mxu0 0
      %833 = vmatpush1.bf16.msra.mxu0 0
      %834 = vmatprep.subr.bf16.mxu0 0
      %835 = vmatpush1.bf16.msra.mxu0 0
      %836 = vmatprep.subr.bf16.mxu0 0
      %837 = vmatpush1.bf16.msra.mxu0 0
      %838 = vmatprep.subr.bf16.mxu0 0
      %839 = vmatpush1.bf16.msra.mxu0 0
      %840 = vmatprep.subr.bf16.mxu0 0
      %841 = vmatpush1.bf16.msra.mxu0 0
      %842 = vmatprep.subr.bf16.mxu0 0
      %843 = vmatpush1.bf16.msra.mxu0 0
      %844 = vmatprep.subr.bf16.mxu0 0
      %845 = vmatpush1.bf16.msra.mxu0 0
      %846 = vmatprep.subr.bf16.mxu0 0
      %847 = vmatpush1.bf16.msra.mxu0 0
      %848 = vmatprep.subr.bf16.mxu0 0
      %849 = vmatpush1.bf16.msra.mxu0 0
      %850 = vmatprep.mubr.bf16.mxu0 0
      %851 = vmatmul.mubr.bf16.gmra.mrb[0].mxu0 %v812
      %v852 = vpop.f32.mrb[0].mxu0
      %v853 = vadd.f32 0.0, %v852
      %v854 = vpop.f32.mrb[0].mxu0
      %v855 = vpop.f32.mrb[0].mxu0
      %v856 = vpop.f32.mrb[0].mxu0
      %857 = vdwg.mxu0
      %v858 = vpack.c.bf16 %v853, %v853
      %v859 = vld [vmem:[%s7] sm:$0xf]
      %v860 = vld [vmem:[%s7 + $0x4] sm:$0xf]
      %v861 = vld [vmem:[%s7 + $0x8] sm:$0xf]
      %v862 = vld [vmem:[%s7 + $0xc] sm:$0xf]
      %v863 = vld [vmem:[%s7 + $0x10] sm:$0xf]
      %v864 = vld [vmem:[%s7 + $0x14] sm:$0xf]
      %v865 = vld [vmem:[%s7 + $0x18] sm:$0xf]
      %v866 = vld [vmem:[%s7 + $0x1c] sm:$0xf]
      %s867 = scalar_lea.vmem %s1, 64
      %v868 = vld [vmem:[%s867] sm:$0xf]
      %v869 = vld [vmem:[%s867 + $0x4] sm:$0xf]
      %v870 = vld [vmem:[%s867 + $0x8] sm:$0xf]
      %v871 = vld [vmem:[%s867 + $0xc] sm:$0xf]
      %v872 = vld [vmem:[%s867 + $0x10] sm:$0xf]
      %v873 = vld [vmem:[%s867 + $0x14] sm:$0xf]
      %v874 = vld [vmem:[%s867 + $0x18] sm:$0xf]
      %v875 = vld [vmem:[%s867 + $0x1c] sm:$0xf]
      %v876 = vld [vmem:[%s867 + $0x20] sm:$0xf]
      %v877 = vld [vmem:[%s867 + $0x24] sm:$0xf]
      %v878 = vld [vmem:[%s867 + $0x28] sm:$0xf]
      %v879 = vld [vmem:[%s867 + $0x2c] sm:$0xf]
      %v880 = vld [vmem:[%s867 + $0x30] sm:$0xf]
      %v881 = vld [vmem:[%s867 + $0x34] sm:$0xf]
      %v882 = vld [vmem:[%s867 + $0x38] sm:$0xf]
      %v883 = vld [vmem:[%s867 + $0x3c] sm:$0xf]
      %s884 = scalar_lea.vmem %s4, 1
      %v885 = vld [vmem:[%s884] sm:$0x1]
      %v887 = vlaneseq
      %v888 = vshrl.u32 %v887, 7
      %v889 = vsub.s32 0, %v888
      %v890 = vrot.slane %v885, %v889
      %v908 = vunpack.c.l.b16 %v868
      %v909 = vunpack.c.l.b16 %v869
      %v910 = vunpack.c.l.b16 %v870
      %v911 = vunpack.c.l.b16 %v871
      %v912 = vunpack.c.l.b16 %v872
      %v913 = vunpack.c.l.b16 %v873
      %v914 = vunpack.c.l.b16 %v874
      %v915 = vunpack.c.l.b16 %v875
      %v916 = vunpack.c.l.b16 %v876
      %v917 = vunpack.c.l.b16 %v877
      %v918 = vunpack.c.l.b16 %v878
      %v919 = vunpack.c.l.b16 %v879
      %v920 = vunpack.c.l.b16 %v880
      %v921 = vunpack.c.l.b16 %v881
      %v922 = vunpack.c.l.b16 %v882
      %v923 = vunpack.c.l.b16 %v883
      %v924 = vpack.c.b16 %v909, %v908
      %v925 = vpack.c.b16 %v911, %v910
      %v926 = vpack.c.b16 %v913, %v912
      %v927 = vpack.c.b16 %v915, %v914
      %v928 = vpack.c.b16 %v917, %v916
      %v929 = vpack.c.b16 %v919, %v918
      %v930 = vpack.c.b16 %v921, %v920
      %v931 = vpack.c.b16 %v923, %v922
      %940 = vmatprep.subr.bf16.mxu0 0
      %941 = vmatpush1.bf16.msra.mxu0 %v924
      %942 = vmatprep.subr.bf16.mxu0 0
      %943 = vmatpush1.bf16.msra.mxu0 %v925
      %944 = vmatprep.subr.bf16.mxu0 0
      %945 = vmatpush1.bf16.msra.mxu0 %v926
      %946 = vmatprep.subr.bf16.mxu0 0
      %947 = vmatpush1.bf16.msra.mxu0 %v927
      %948 = vmatprep.subr.bf16.mxu0 0
      %949 = vmatpush1.bf16.msra.mxu0 %v928
      %950 = vmatprep.subr.bf16.mxu0 0
      %951 = vmatpush1.bf16.msra.mxu0 %v929
      %952 = vmatprep.subr.bf16.mxu0 0
      %953 = vmatpush1.bf16.msra.mxu0 %v930
      %954 = vmatprep.subr.bf16.mxu0 0
      %955 = vmatpush1.bf16.msra.mxu0 %v931
      %956 = vmatprep.subr.bf16.mxu0 0
      %957 = vmatpush1.bf16.msra.mxu0 0
      %958 = vmatprep.subr.bf16.mxu0 0
      %959 = vmatpush1.bf16.msra.mxu0 0
      %960 = vmatprep.subr.bf16.mxu0 0
      %961 = vmatpush1.bf16.msra.mxu0 0
      %962 = vmatprep.subr.bf16.mxu0 0
      %963 = vmatpush1.bf16.msra.mxu0 0
      %964 = vmatprep.subr.bf16.mxu0 0
      %965 = vmatpush1.bf16.msra.mxu0 0
      %966 = vmatprep.subr.bf16.mxu0 0
      %967 = vmatpush1.bf16.msra.mxu0 0
      %968 = vmatprep.subr.bf16.mxu0 0
      %969 = vmatpush1.bf16.msra.mxu0 0
      %970 = vmatprep.subr.bf16.mxu0 0
      %971 = vmatpush1.bf16.msra.mxu0 0
      %972 = vmatprep.mubr.bf16.mxu0 0
      %973 = vmatmul.mubr.bf16.gmra.mrb[0].mxu0 %v411
      %v974 = vpop.f32.mrb[0].mxu0
      %v975 = vadd.f32 %v890, %v974
      %v976 = vpop.f32.mrb[0].mxu0
      %v977 = vpop.f32.mrb[0].mxu0
      %v978 = vpop.f32.mrb[0].mxu0
      %979 = vdwg.mxu0
      %s980 = scalar_lea.vmem %s2, 64
      %v981 = vld [vmem:[%s980] sm:$0xf]
      %v982 = vld [vmem:[%s980 + $0x4] sm:$0xf]
      %v983 = vld [vmem:[%s980 + $0x8] sm:$0xf]
      %v984 = vld [vmem:[%s980 + $0xc] sm:$0xf]
      %v985 = vld [vmem:[%s980 + $0x10] sm:$0xf]
      %v986 = vld [vmem:[%s980 + $0x14] sm:$0xf]
      %v987 = vld [vmem:[%s980 + $0x18] sm:$0xf]
      %v988 = vld [vmem:[%s980 + $0x1c] sm:$0xf]
      %v989 = vld [vmem:[%s980 + $0x20] sm:$0xf]
      %v990 = vld [vmem:[%s980 + $0x24] sm:$0xf]
      %v991 = vld [vmem:[%s980 + $0x28] sm:$0xf]
      %v992 = vld [vmem:[%s980 + $0x2c] sm:$0xf]
      %v993 = vld [vmem:[%s980 + $0x30] sm:$0xf]
      %v994 = vld [vmem:[%s980 + $0x34] sm:$0xf]
      %v995 = vld [vmem:[%s980 + $0x38] sm:$0xf]
      %v996 = vld [vmem:[%s980 + $0x3c] sm:$0xf]
      %s997 = scalar_lea.vmem %s5, 1
      %v998 = vld [vmem:[%s997] sm:$0x1]
      %v1000 = vlaneseq
      %v1001 = vshrl.u32 %v1000, 7
      %v1002 = vsub.s32 0, %v1001
      %v1003 = vrot.slane %v998, %v1002
      %v1021 = vunpack.c.l.b16 %v981
      %v1022 = vunpack.c.l.b16 %v982
      %v1023 = vunpack.c.l.b16 %v983
      %v1024 = vunpack.c.l.b16 %v984
      %v1025 = vunpack.c.l.b16 %v985
      %v1026 = vunpack.c.l.b16 %v986
      %v1027 = vunpack.c.l.b16 %v987
      %v1028 = vunpack.c.l.b16 %v988
      %v1029 = vunpack.c.l.b16 %v989
      %v1030 = vunpack.c.l.b16 %v990
      %v1031 = vunpack.c.l.b16 %v991
      %v1032 = vunpack.c.l.b16 %v992
      %v1033 = vunpack.c.l.b16 %v993
      %v1034 = vunpack.c.l.b16 %v994
      %v1035 = vunpack.c.l.b16 %v995
      %v1036 = vunpack.c.l.b16 %v996
      %v1037 = vpack.c.b16 %v1022, %v1021
      %v1038 = vpack.c.b16 %v1024, %v1023
      %v1039 = vpack.c.b16 %v1026, %v1025
      %v1040 = vpack.c.b16 %v1028, %v1027
      %v1041 = vpack.c.b16 %v1030, %v1029
      %v1042 = vpack.c.b16 %v1032, %v1031
      %v1043 = vpack.c.b16 %v1034, %v1033
      %v1044 = vpack.c.b16 %v1036, %v1035
      %1053 = vmatprep.subr.bf16.mxu0 0
      %1054 = vmatpush1.bf16.msra.mxu0 %v1037
      %1055 = vmatprep.subr.bf16.mxu0 0
      %1056 = vmatpush1.bf16.msra.mxu0 %v1038
      %1057 = vmatprep.subr.bf16.mxu0 0
      %1058 = vmatpush1.bf16.msra.mxu0 %v1039
      %1059 = vmatprep.subr.bf16.mxu0 0
      %1060 = vmatpush1.bf16.msra.mxu0 %v1040
      %1061 = vmatprep.subr.bf16.mxu0 0
      %1062 = vmatpush1.bf16.msra.mxu0 %v1041
      %1063 = vmatprep.subr.bf16.mxu0 0
      %1064 = vmatpush1.bf16.msra.mxu0 %v1042
      %1065 = vmatprep.subr.bf16.mxu0 0
      %1066 = vmatpush1.bf16.msra.mxu0 %v1043
      %1067 = vmatprep.subr.bf16.mxu0 0
      %1068 = vmatpush1.bf16.msra.mxu0 %v1044
      %1069 = vmatprep.subr.bf16.mxu0 0
      %1070 = vmatpush1.bf16.msra.mxu0 0
      %1071 = vmatprep.subr.bf16.mxu0 0
      %1072 = vmatpush1.bf16.msra.mxu0 0
      %1073 = vmatprep.subr.bf16.mxu0 0
      %1074 = vmatpush1.bf16.msra.mxu0 0
      %1075 = vmatprep.subr.bf16.mxu0 0
      %1076 = vmatpush1.bf16.msra.mxu0 0
      %1077 = vmatprep.subr.bf16.mxu0 0
      %1078 = vmatpush1.bf16.msra.mxu0 0
      %1079 = vmatprep.subr.bf16.mxu0 0
      %1080 = vmatpush1.bf16.msra.mxu0 0
      %1081 = vmatprep.subr.bf16.mxu0 0
      %1082 = vmatpush1.bf16.msra.mxu0 0
      %1083 = vmatprep.subr.bf16.mxu0 0
      %1084 = vmatpush1.bf16.msra.mxu0 0
      %1085 = vmatprep.mubr.bf16.mxu0 0
      %1086 = vmatmul.mubr.bf16.gmra.mrb[0].mxu0 %v411
      %v1087 = vpop.f32.mrb[0].mxu0
      %v1088 = vadd.f32 %v1003, %v1087
      %v1089 = vpop.f32.mrb[0].mxu0
      %v1090 = vpop.f32.mrb[0].mxu0
      %v1091 = vpop.f32.mrb[0].mxu0
      %1092 = vdwg.mxu0
      %s1093 = scalar_lea.vmem %s3, 64
      %v1094 = vld [vmem:[%s1093] sm:$0xf]
      %v1095 = vld [vmem:[%s1093 + $0x4] sm:$0xf]
      %v1096 = vld [vmem:[%s1093 + $0x8] sm:$0xf]
      %v1097 = vld [vmem:[%s1093 + $0xc] sm:$0xf]
      %v1098 = vld [vmem:[%s1093 + $0x10] sm:$0xf]
      %v1099 = vld [vmem:[%s1093 + $0x14] sm:$0xf]
      %v1100 = vld [vmem:[%s1093 + $0x18] sm:$0xf]
      %v1101 = vld [vmem:[%s1093 + $0x1c] sm:$0xf]
      %v1102 = vld [vmem:[%s1093 + $0x20] sm:$0xf]
      %v1103 = vld [vmem:[%s1093 + $0x24] sm:$0xf]
      %v1104 = vld [vmem:[%s1093 + $0x28] sm:$0xf]
      %v1105 = vld [vmem:[%s1093 + $0x2c] sm:$0xf]
      %v1106 = vld [vmem:[%s1093 + $0x30] sm:$0xf]
      %v1107 = vld [vmem:[%s1093 + $0x34] sm:$0xf]
      %v1108 = vld [vmem:[%s1093 + $0x38] sm:$0xf]
      %v1109 = vld [vmem:[%s1093 + $0x3c] sm:$0xf]
      %s1110 = scalar_lea.vmem %s6, 1
      %v1111 = vld [vmem:[%s1110] sm:$0x1]
      %v1113 = vlaneseq
      %v1114 = vshrl.u32 %v1113, 7
      %v1115 = vsub.s32 0, %v1114
      %v1116 = vrot.slane %v1111, %v1115
      %v1134 = vunpack.c.l.b16 %v1094
      %v1135 = vunpack.c.l.b16 %v1095
      %v1136 = vunpack.c.l.b16 %v1096
      %v1137 = vunpack.c.l.b16 %v1097
      %v1138 = vunpack.c.l.b16 %v1098
      %v1139 = vunpack.c.l.b16 %v1099
      %v1140 = vunpack.c.l.b16 %v1100
      %v1141 = vunpack.c.l.b16 %v1101
      %v1142 = vunpack.c.l.b16 %v1102
      %v1143 = vunpack.c.l.b16 %v1103
      %v1144 = vunpack.c.l.b16 %v1104
      %v1145 = vunpack.c.l.b16 %v1105
      %v1146 = vunpack.c.l.b16 %v1106
      %v1147 = vunpack.c.l.b16 %v1107
      %v1148 = vunpack.c.l.b16 %v1108
      %v1149 = vunpack.c.l.b16 %v1109
      %v1150 = vpack.c.b16 %v1135, %v1134
      %v1151 = vpack.c.b16 %v1137, %v1136
      %v1152 = vpack.c.b16 %v1139, %v1138
      %v1153 = vpack.c.b16 %v1141, %v1140
      %v1154 = vpack.c.b16 %v1143, %v1142
      %v1155 = vpack.c.b16 %v1145, %v1144
      %v1156 = vpack.c.b16 %v1147, %v1146
      %v1157 = vpack.c.b16 %v1149, %v1148
      %1166 = vmatprep.subr.bf16.mxu0 0
      %1167 = vmatpush1.bf16.msra.mxu0 %v1150
      %1168 = vmatprep.subr.bf16.mxu0 0
      %1169 = vmatpush1.bf16.msra.mxu0 %v1151
      %1170 = vmatprep.subr.bf16.mxu0 0
      %1171 = vmatpush1.bf16.msra.mxu0 %v1152
      %1172 = vmatprep.subr.bf16.mxu0 0
      %1173 = vmatpush1.bf16.msra.mxu0 %v1153
      %1174 = vmatprep.subr.bf16.mxu0 0
      %1175 = vmatpush1.bf16.msra.mxu0 %v1154
      %1176 = vmatprep.subr.bf16.mxu0 0
      %1177 = vmatpush1.bf16.msra.mxu0 %v1155
      %1178 = vmatprep.subr.bf16.mxu0 0
      %1179 = vmatpush1.bf16.msra.mxu0 %v1156
      %1180 = vmatprep.subr.bf16.mxu0 0
      %1181 = vmatpush1.bf16.msra.mxu0 %v1157
      %1182 = vmatprep.subr.bf16.mxu0 0
      %1183 = vmatpush1.bf16.msra.mxu0 0
      %1184 = vmatprep.subr.bf16.mxu0 0
      %1185 = vmatpush1.bf16.msra.mxu0 0
      %1186 = vmatprep.subr.bf16.mxu0 0
      %1187 = vmatpush1.bf16.msra.mxu0 0
      %1188 = vmatprep.subr.bf16.mxu0 0
      %1189 = vmatpush1.bf16.msra.mxu0 0
      %1190 = vmatprep.subr.bf16.mxu0 0
      %1191 = vmatpush1.bf16.msra.mxu0 0
      %1192 = vmatprep.subr.bf16.mxu0 0
      %1193 = vmatpush1.bf16.msra.mxu0 0
      %1194 = vmatprep.subr.bf16.mxu0 0
      %1195 = vmatpush1.bf16.msra.mxu0 0
      %1196 = vmatprep.subr.bf16.mxu0 0
      %1197 = vmatpush1.bf16.msra.mxu0 0
      %1198 = vmatprep.mubr.bf16.mxu0 0
      %1199 = vmatmul.mubr.bf16.gmra.mrb[0].mxu0 %v411
      %v1200 = vpop.f32.mrb[0].mxu0
      %v1201 = vadd.f32 %v1116, %v1200
      %v1202 = vpop.f32.mrb[0].mxu0
      %v1203 = vpop.f32.mrb[0].mxu0
      %v1204 = vpop.f32.mrb[0].mxu0
      %1205 = vdwg.mxu0
      %v1206 = vpack.c.bf16 %v975, %v975
      %v1207 = vpack.c.bf16 %v1088, %v1088
      %v1208 = vpack.c.bf16 %v1201, %v1201
      %v1210 = vsel %vm749, %v1206, 0
      %v1213 = vsel %vm749, %v1207, 0
      %1215 = vmatprep.subr.bf16.mxu0 0
      %1216 = vmatpush1.bf16.xpose.msra.mxu0 %v1213
      %1217 = vmatprep.subr.bf16.mxu0 0
      %1218 = vmatpush1.bf16.xpose.msra.mxu0 0
      %1219 = vmatprep.subr.bf16.mxu0 0
      %1220 = vmatpush1.bf16.xpose.msra.mxu0 0
      %1221 = vmatprep.subr.bf16.mxu0 0
      %1222 = vmatpush1.bf16.xpose.msra.mxu0 0
      %1223 = vmatprep.subr.bf16.mxu0 0
      %1224 = vmatpush1.bf16.xpose.msra.mxu0 0
      %1225 = vmatprep.subr.bf16.mxu0 0
      %1226 = vmatpush1.bf16.xpose.msra.mxu0 0
      %1227 = vmatprep.subr.bf16.mxu0 0
      %1228 = vmatpush1.bf16.xpose.msra.mxu0 0
      %1229 = vmatprep.subr.bf16.mxu0 0
      %1230 = vmatpush1.bf16.xpose.msra.mxu0 0
      %1231 = vmatprep.subr.bf16.mxu0 0
      %1232 = vmatpush1.bf16.xpose.msra.mxu0 0
      %1233 = vmatprep.subr.bf16.mxu0 0
      %1234 = vmatpush1.bf16.xpose.msra.mxu0 0
      %1235 = vmatprep.subr.bf16.mxu0 0
      %1236 = vmatpush1.bf16.xpose.msra.mxu0 0
      %1237 = vmatprep.subr.bf16.mxu0 0
      %1238 = vmatpush1.bf16.xpose.msra.mxu0 0
      %1239 = vmatprep.subr.bf16.mxu0 0
      %1240 = vmatpush1.bf16.xpose.msra.mxu0 0
      %1241 = vmatprep.subr.bf16.mxu0 0
      %1242 = vmatpush1.bf16.xpose.msra.mxu0 0
      %1243 = vmatprep.subr.bf16.mxu0 0
      %1244 = vmatpush1.bf16.xpose.msra.mxu0 0
      %1245 = vmatprep.subr.bf16.mxu0 0
      %1246 = vmatpush1.bf16.xpose.msra.mxu0 0
      %1247 = vmatprep.mubr.bf16.mxu0 0
      %1248 = vmatmul.mubr.bf16.gmra.mrb[0].mxu0 %v1210
      %v1249 = vpop.f32.mrb[0].mxu0
      %v1250 = vadd.f32 0.0, %v1249
      %v1251 = vpop.f32.mrb[0].mxu0
      %v1252 = vpop.f32.mrb[0].mxu0
      %v1253 = vpop.f32.mrb[0].mxu0
      %1254 = vdwg.mxu0
      %v1255 = vmul.f32 %v1250, 0.125
      %v1256 = vadd.f32 %v1255, %v412
      %v1257 = vsel %vm798, %v1256, -inf
      %1258 = vmax.xlane.f32.xlu0 %v1257
      %v1259 = vpop.xlane.xlu0 %1258
      %v1260 = vsub.f32 %v1256, %v1259
      %v1261 = vmul.f32 %v1260, 1.442695
      %v1262 = vpow.pop %v1261
      %v1263 = vsel %vm798, %v1262, 0.0
      %1264 = vadd.xlane.f32.xlu0 %v1263
      %v1265 = vpop.xlane.xlu0 %1264
      %v1266 = vrcp.pop %v1265
      %v1267 = vmul.f32 %v1262, %v1266
      %v1268 = vpack.c.bf16 %v1267, %v1267
      %v1270 = vsel %vm798, %v1268, 0
      %v1273 = vsel %vm814, %v1208, 0
      %1275 = vmatprep.subr.bf16.mxu0 0
      %1276 = vmatpush1.bf16.msra.mxu0 %v1273
      %1277 = vmatprep.subr.bf16.mxu0 0
      %1278 = vmatpush1.bf16.msra.mxu0 0
      %1279 = vmatprep.subr.bf16.mxu0 0
      %1280 = vmatpush1.bf16.msra.mxu0 0
      %1281 = vmatprep.subr.bf16.mxu0 0
      %1282 = vmatpush1.bf16.msra.mxu0 0
      %1283 = vmatprep.subr.bf16.mxu0 0
      %1284 = vmatpush1.bf16.msra.mxu0 0
      %1285 = vmatprep.subr.bf16.mxu0 0
      %1286 = vmatpush1.bf16.msra.mxu0 0
      %1287 = vmatprep.subr.bf16.mxu0 0
      %1288 = vmatpush1.bf16.msra.mxu0 0
      %1289 = vmatprep.subr.bf16.mxu0 0
      %1290 = vmatpush1.bf16.msra.mxu0 0
      %1291 = vmatprep.subr.bf16.mxu0 0
      %1292 = vmatpush1.bf16.msra.mxu0 0
      %1293 = vmatprep.subr.bf16.mxu0 0
      %1294 = vmatpush1.bf16.msra.mxu0 0
      %1295 = vmatprep.subr.bf16.mxu0 0
      %1296 = vmatpush1.bf16.msra.mxu0 0
      %1297 = vmatprep.subr.bf16.mxu0 0
      %1298 = vmatpush1.bf16.msra.mxu0 0
      %1299 = vmatprep.subr.bf16.mxu0 0
      %1300 = vmatpush1.bf16.msra.mxu0 0
      %1301 = vmatprep.subr.bf16.mxu0 0
      %1302 = vmatpush1.bf16.msra.mxu0 0
      %1303 = vmatprep.subr.bf16.mxu0 0
      %1304 = vmatpush1.bf16.msra.mxu0 0
      %1305 = vmatprep.subr.bf16.mxu0 0
      %1306 = vmatpush1.bf16.msra.mxu0 0
      %1307 = vmatprep.mubr.bf16.mxu0 0
      %1308 = vmatmul.mubr.bf16.gmra.mrb[0].mxu0 %v1270
      %v1309 = vpop.f32.mrb[0].mxu0
      %v1310 = vadd.f32 0.0, %v1309
      %v1311 = vpop.f32.mrb[0].mxu0
      %v1312 = vpop.f32.mrb[0].mxu0
      %v1313 = vpop.f32.mrb[0].mxu0
      %1314 = vdwg.mxu0
      %v1315 = vpack.c.bf16 %v1310, %v1310
      %s1316 = scalar_lea.vmem %s7, 32
      %v1317 = vld [vmem:[%s1316] sm:$0xf]
      %v1318 = vld [vmem:[%s1316 + $0x4] sm:$0xf]
      %v1319 = vld [vmem:[%s1316 + $0x8] sm:$0xf]
      %v1320 = vld [vmem:[%s1316 + $0xc] sm:$0xf]
      %v1321 = vld [vmem:[%s1316 + $0x10] sm:$0xf]
      %v1322 = vld [vmem:[%s1316 + $0x14] sm:$0xf]
      %v1323 = vld [vmem:[%s1316 + $0x18] sm:$0xf]
      %v1324 = vld [vmem:[%s1316 + $0x1c] sm:$0xf]
      %v1333 = vunpack.c.l.b16 %v1317
      %v1334 = vunpack.c.l.b16 %v1318
      %v1335 = vunpack.c.l.b16 %v1319
      %v1336 = vunpack.c.l.b16 %v1320
      %v1337 = vunpack.c.l.b16 %v1321
      %v1338 = vunpack.c.l.b16 %v1322
      %v1339 = vunpack.c.l.b16 %v1323
      %v1340 = vunpack.c.l.b16 %v1324
      %v1341 = vpack.c.b16 %v1334, %v1333
      %v1342 = vpack.c.b16 %v1336, %v1335
      %v1343 = vpack.c.b16 %v1338, %v1337
      %v1344 = vpack.c.b16 %v1340, %v1339
      %v1350 = vsel %vm749, %v1315, 0
      %1352 = vmatprep.subr.bf16.mxu0 0
      %1353 = vmatpush1.bf16.msra.mxu0 %v1341
      %1354 = vmatprep.subr.bf16.mxu0 0
      %1355 = vmatpush1.bf16.msra.mxu0 %v1342
      %1356 = vmatprep.subr.bf16.mxu0 0
      %1357 = vmatpush1.bf16.msra.mxu0 %v1343
      %1358 = vmatprep.subr.bf16.mxu0 0
      %1359 = vmatpush1.bf16.msra.mxu0 %v1344
      %1360 = vmatprep.subr.bf16.mxu0 0
      %1361 = vmatpush1.bf16.msra.mxu0 0
      %1362 = vmatprep.subr.bf16.mxu0 0
      %1363 = vmatpush1.bf16.msra.mxu0 0
      %1364 = vmatprep.subr.bf16.mxu0 0
      %1365 = vmatpush1.bf16.msra.mxu0 0
      %1366 = vmatprep.subr.bf16.mxu0 0
      %1367 = vmatpush1.bf16.msra.mxu0 0
      %1368 = vmatprep.subr.bf16.mxu0 0
      %1369 = vmatpush1.bf16.msra.mxu0 0
      %1370 = vmatprep.subr.bf16.mxu0 0
      %1371 = vmatpush1.bf16.msra.mxu0 0
      %1372 = vmatprep.subr.bf16.mxu0 0
      %1373 = vmatpush1.bf16.msra.mxu0 0
      %1374 = vmatprep.subr.bf16.mxu0 0
      %1375 = vmatpush1.bf16.msra.mxu0 0
      %1376 = vmatprep.subr.bf16.mxu0 0
      %1377 = vmatpush1.bf16.msra.mxu0 0
      %1378 = vmatprep.subr.bf16.mxu0 0
      %1379 = vmatpush1.bf16.msra.mxu0 0
      %1380 = vmatprep.subr.bf16.mxu0 0
      %1381 = vmatpush1.bf16.msra.mxu0 0
      %1382 = vmatprep.subr.bf16.mxu0 0
      %1383 = vmatpush1.bf16.msra.mxu0 0
      %1384 = vmatprep.mubr.bf16.mxu0 0
      %1385 = vmatmul.mubr.bf16.gmra.mrb[0].mxu0 %v1350
      %v1386 = vpop.f32.mrb[0].mxu0
      %v1387 = vadd.f32 0.0, %v1386
      %v1388 = vpop.f32.mrb[0].mxu0
      %v1389 = vpop.f32.mrb[0].mxu0
      %v1390 = vpop.f32.mrb[0].mxu0
      %1391 = vdwg.mxu0
      %v1400 = vunpack.c.l.b16 %v859
      %v1401 = vunpack.c.l.b16 %v860
      %v1402 = vunpack.c.l.b16 %v861
      %v1403 = vunpack.c.l.b16 %v862
      %v1404 = vunpack.c.l.b16 %v863
      %v1405 = vunpack.c.l.b16 %v864
      %v1406 = vunpack.c.l.b16 %v865
      %v1407 = vunpack.c.l.b16 %v866
      %v1408 = vpack.c.b16 %v1401, %v1400
      %v1409 = vpack.c.b16 %v1403, %v1402
      %v1410 = vpack.c.b16 %v1405, %v1404
      %v1411 = vpack.c.b16 %v1407, %v1406
      %v1417 = vsel %vm749, %v858, 0
      %1419 = vmatprep.subr.bf16.mxu0 0
      %1420 = vmatpush1.bf16.msra.mxu0 %v1408
      %1421 = vmatprep.subr.bf16.mxu0 0
      %1422 = vmatpush1.bf16.msra.mxu0 %v1409
      %1423 = vmatprep.subr.bf16.mxu0 0
      %1424 = vmatpush1.bf16.msra.mxu0 %v1410
      %1425 = vmatprep.subr.bf16.mxu0 0
      %1426 = vmatpush1.bf16.msra.mxu0 %v1411
      %1427 = vmatprep.subr.bf16.mxu0 0
      %1428 = vmatpush1.bf16.msra.mxu0 0
      %1429 = vmatprep.subr.bf16.mxu0 0
      %1430 = vmatpush1.bf16.msra.mxu0 0
      %1431 = vmatprep.subr.bf16.mxu0 0
      %1432 = vmatpush1.bf16.msra.mxu0 0
      %1433 = vmatprep.subr.bf16.mxu0 0
      %1434 = vmatpush1.bf16.msra.mxu0 0
      %1435 = vmatprep.subr.bf16.mxu0 0
      %1436 = vmatpush1.bf16.msra.mxu0 0
      %1437 = vmatprep.subr.bf16.mxu0 0
      %1438 = vmatpush1.bf16.msra.mxu0 0
      %1439 = vmatprep.subr.bf16.mxu0 0
      %1440 = vmatpush1.bf16.msra.mxu0 0
      %1441 = vmatprep.subr.bf16.mxu0 0
      %1442 = vmatpush1.bf16.msra.mxu0 0
      %1443 = vmatprep.subr.bf16.mxu0 0
      %1444 = vmatpush1.bf16.msra.mxu0 0
      %1445 = vmatprep.subr.bf16.mxu0 0
      %1446 = vmatpush1.bf16.msra.mxu0 0
      %1447 = vmatprep.subr.bf16.mxu0 0
      %1448 = vmatpush1.bf16.msra.mxu0 0
      %1449 = vmatprep.subr.bf16.mxu0 0
      %1450 = vmatpush1.bf16.msra.mxu0 0
      %1451 = vmatprep.mubr.bf16.mxu0 0
      %1452 = vmatmul.mubr.bf16.gmra.mrb[0].mxu0 %v1417
      %v1453 = vpop.f32.mrb[0].mxu0
      %v1454 = vadd.f32 %v1387, %v1453
      %v1455 = vpop.f32.mrb[0].mxu0
      %v1456 = vpop.f32.mrb[0].mxu0
      %v1457 = vpop.f32.mrb[0].mxu0
      %1458 = vdwg.mxu0
      %v1459 = vld [vmem:[%s8] sm:$0x1]
      %v1461 = vlaneseq
      %v1462 = vshrl.u32 %v1461, 7
      %v1463 = vsub.s32 0, %v1462
      %v1464 = vrot.slane %v1459, %v1463
      %v1466 = vadd.f32 %v1454, %v1464
      %v1467 = vadd.f32 %v410, %v1466
      %1468 = vadd.xlane.f32.xlu0 %v1467
      %v1469 = vpop.xlane.xlu0 %1468
      %v1470 = vrcp.pop 128.0
      %v1471 = vmul.f32 %v1469, %v1470
      %v1472 = vmul.f32 %v1467, %v1467
      %1473 = vadd.xlane.f32.xlu0 %v1472
      %v1474 = vpop.xlane.xlu0 %1473
      %v1475 = vmul.f32 %v1474, %v1470
      %v1476 = vmul.f32 %v1471, %v1471
      %v1477 = vsub.f32 %v1475, %v1476
      %v1478 = vmax.f32 %v1477, 0.0
      %v1479 = vsub.f32 %v1467, %v1471
      %v1480 = vadd.f32 %v1478, 1e-05
      %v1481 = vrsqrt.pop %v1480
      %v1482 = vmul.f32 %v1479, %v1481
      %v1483 = vld [vmem:[%s9] sm:$0x1]
      %v1485 = vlaneseq
      %v1486 = vshrl.u32 %v1485, 7
      %v1487 = vsub.s32 0, %v1486
      %v1488 = vrot.slane %v1483, %v1487
      %v1490 = vmul.f32 %v1482, %v1488
      %v1491 = vld [vmem:[%s10] sm:$0x1]
      %v1493 = vlaneseq
      %v1494 = vshrl.u32 %v1493, 7
      %v1495 = vsub.s32 0, %v1494
      %v1496 = vrot.slane %v1491, %v1495
      %v1498 = vadd.f32 %v1490, %v1496
      %1499 = vst [vmem:[%s408] sm:$0xff] %v1498
      %p1500 = scmp.lt.s32.totalorder %s23, 1
      %s1501 = scalar_select %p1500, %s23, 1
      %s1502 = smul.addr %s1501, 8
      %s1503 = scalar_lea.vmem %s12, %s1502
      // Predicated region
      $region69: #{transformer_forward.5} parent=67 // pred_check
        %p1504 = pneg %p298
      $region70: #{transformer_forward.5} parent=67 // pred_check_branch
        %1506 = sbr.rel (%p1504) target = $region72
      $region71: #{transformer_forward.5} parent=67 // pred_region
        _
      $region72: #{transformer_forward.5} parent=67 // pred_fallthru
        _
    $region68: #{transformer_forward.5} parent=5 // pred_fallthru
      _
    %p1507 = scmp.le.s32.totalorder 2, %s18
    // Predicated region
    $region73: #{transformer_forward.5} parent=5 // pred_check
      %p1508 = pneg %p1507
    $region74: #{transformer_forward.5} parent=5 // pred_check_branch
      %1510 = sbr.rel (%p1508) target = $region76
    $region75: #{transformer_forward.5} parent=5 // pred_region
      %s1511 = ssub.s32 %s18, 2
      // Predicated region
      $region77: #{transformer_forward.5} parent=75 // pred_check
        %p1512 = pneg %p304
      $region78: #{transformer_forward.5} parent=75 // pred_check_branch
        %1514 = sbr.rel (%p1512) target = $region80
      $region79: #{transformer_forward.5} parent=75 // pred_region
        %p1515 = scmp.lt.s32.totalorder %s24, 1
        %s1516 = scalar_select %p1515, %s24, 1
        %s1517 = smul.addr %s1516, 8
        %s1518 = scalar_lea.vmem %s12, %s1517
      $region80: #{transformer_forward.5} parent=75 // pred_fallthru
        _
    $region76: #{transformer_forward.5} parent=5 // pred_fallthru
      _
  $region6: #{transformer_forward.5} parent=0 // loop_footer
    %s22 = sadd.s32 1, %s18
  $region7: #{transformer_forward.5} parent=0 // loop_footer_branch
    %17 = sbr.rel target = $region3
  $region8: #{transformer_forward.5} parent=0 // loop_exit
    _

</llo_original>
